<compile_context>
chip_gen: v7x
topology: tpu7x:2x2x1
jax: 0.10.0
libtpu: 0.0.40
codegen_flags: <defaults>
</compile_context>

<pallas_src>
import functools
import math

import jax
import jax.numpy as jnp
from jax import lax
from jax.experimental import pallas as pl
from jax.experimental.pallas import tpu as pltpu


# ----------------------------- fused forward kernel --------------------------


def _bert_forward_kernel(tok_ref, pos_ref, typ_ref, embg_ref, embb_ref, bias_ref,
                         wqkv_ref, bqkv_ref, wo_ref, bo_ref, ln1g_ref, ln1b_ref,
                         w1_ref, b1_ref, w2_ref, b2_ref, ln2g_ref, ln2b_ref,
                         pw_ref, pb_ref, cw_ref, cb_ref, o_ref,
                         *, B, S, H, nH, dH, L, eps):
    f32 = jnp.float32
    bf16 = jnp.bfloat16

    # --- embeddings: (word + position + token-type) add, then LayerNorm over hidden ---
    emb = tok_ref[...] + pos_ref[...][None, :, :] + typ_ref[...][None, :, :]   # [B, S, H]
    mean = jnp.mean(emb, axis=-1, keepdims=True)
    var = jnp.mean(jnp.square(emb - mean), axis=-1, keepdims=True)
    x = (emb - mean) * lax.rsqrt(var + eps) * embg_ref[...][None] + embb_ref[...][None]
    x = x.reshape(B * S, H)                                                    # token-major slab

    # attention-mask additive bias, one row per (batch, head): [B*nH, 1, S]
    bias3 = jnp.broadcast_to(bias_ref[...][:, None, None, :],
                             (B, nH, 1, S)).reshape(B * nH, 1, S)

    def to_heads(t):
        # [B*S, H] f32 -> [B*nH, S, dH] bf16 (head-batched slab for the MXU)
        return (t.reshape(B, S, nH, dH).transpose(0, 2, 1, 3)
                 .reshape(B * nH, S, dH).astype(bf16))

    # --- encoder layers (static Python loop over stacked [L, ...] weights) ---
    for l in range(L):
        xb = x.astype(bf16)
        # fused QKV projection: one bf16 MXU pass, lane-dense N = 3H
        qkv = jnp.dot(xb, wqkv_ref[l], preferred_element_type=f32) + bqkv_ref[l]
        q = qkv[:, 0 * H:1 * H]          # 128-lane-aligned slices
        k = qkv[:, 1 * H:2 * H]
        v = qkv[:, 2 * H:3 * H]

        qh, kh, vh = to_heads(q), to_heads(k), to_heads(v)   # [B*nH, S, dH] bf16
        # scores: contract dH, batch over (batch*head).  scale already folded into Wq.
        s = lax.dot_general(qh, kh, (((2,), (2,)), ((0,), (0,))),
                            preferred_element_type=f32)      # [B*nH, S, S]
        s = s + bias3
        s = s - jnp.max(s, axis=-1, keepdims=True)
        p = jnp.exp(s)
        p = p * pl.reciprocal(jnp.sum(p, axis=-1, keepdims=True), approx=True)
        ctx = lax.dot_general(p.astype(bf16), vh, (((2,), (1,)), ((0,), (0,))),
                              preferred_element_type=f32)    # [B*nH, S, dH]
        ctx = ctx.reshape(B, nH, S, dH).transpose(0, 2, 1, 3).reshape(B * S, H)

        # output projection + residual + LayerNorm1
        attn = jnp.dot(ctx.astype(bf16), wo_ref[l], preferred_element_type=f32) + bo_ref[l]
        h1 = attn + x
        m1 = jnp.mean(h1, axis=-1, keepdims=True)
        v1 = jnp.mean(jnp.square(h1 - m1), axis=-1, keepdims=True)
        x1 = (h1 - m1) * lax.rsqrt(v1 + eps) * ln1g_ref[l] + ln1b_ref[l]

        # FFN (gelu) + residual + LayerNorm2
        f = jnp.dot(x1.astype(bf16), w1_ref[l], preferred_element_type=f32) + b1_ref[l]
        f = jax.nn.gelu(f, approximate=True)
        f = jnp.dot(f.astype(bf16), w2_ref[l], preferred_element_type=f32) + b2_ref[l]
        h2 = f + x1
        m2 = jnp.mean(h2, axis=-1, keepdims=True)
        v2 = jnp.mean(jnp.square(h2 - m2), axis=-1, keepdims=True)
        x = (h2 - m2) * lax.rsqrt(v2 + eps) * ln2g_ref[l] + ln2b_ref[l]

    # --- pooler(tanh on [CLS]) + dropout(eval=identity) + classifier + ReLU ---
    cls_tok = x.reshape(B, S, H)[:, 0, :]                                      # [B, H]
    pooled = jnp.tanh(jnp.dot(cls_tok.astype(bf16), pw_ref[...],
                              preferred_element_type=f32) + pb_ref[...])
    logits = jnp.dot(pooled.astype(bf16), cw_ref[...],
                     preferred_element_type=f32) + cb_ref[...]
    o_ref[...] = jnp.maximum(logits, 0.0).astype(o_ref.dtype)                  # lane-dense store


# ----------------------------- model config / params -------------------------


class Config:
    vocab = 64
    type_vocab = 2
    max_pos = 16
    hidden = 128          # scaled-down stand-in for 768
    n_heads = 2
    d_head = 64
    ffn = 256
    layers = 2
    num_labels = 2


NPAD = 128  # classifier output padded to a full lane width (zero cols ReLU to 0)


def init_params(key, cfg):
    def nrm(k, shape, scale=0.02):
        return scale * jax.random.normal(k, shape, dtype=jnp.float32)

    keys = iter(jax.random.split(key, 64))
    H, F, L = cfg.hidden, cfg.ffn, cfg.layers
    att_scale = 1.0 / math.sqrt(float(cfg.d_head))

    wqkv, bqkv, wo, bo = [], [], [], []
    ln1g, ln1b, w1, b1, w2, b2, ln2g, ln2b = [], [], [], [], [], [], [], []
    for _ in range(L):
        # packed QKV weight [H, 3H]; 1/sqrt(dH) attention scale folded into the Q columns
        wq = nrm(next(keys), (H, H)) * att_scale
        wk = nrm(next(keys), (H, H))
        wv = nrm(next(keys), (H, H))
        wqkv.append(jnp.concatenate([wq, wk, wv], axis=1).astype(jnp.bfloat16))
        bqkv.append(jnp.zeros((1, 3 * H), jnp.float32))     # (Q bias would be pre-scaled too)
        wo.append(nrm(next(keys), (H, H)).astype(jnp.bfloat16))
        bo.append(jnp.zeros((1, H), jnp.float32))
        ln1g.append(jnp.ones((1, H), jnp.float32))
        ln1b.append(jnp.zeros((1, H), jnp.float32))
        w1.append(nrm(next(keys), (H, F)).astype(jnp.bfloat16))
        b1.append(jnp.zeros((1, F), jnp.float32))
        w2.append(nrm(next(keys), (F, H)).astype(jnp.bfloat16))
        b2.append(jnp.zeros((1, H), jnp.float32))
        ln2g.append(jnp.ones((1, H), jnp.float32))
        ln2b.append(jnp.zeros((1, H), jnp.float32))

    # classifier weight/bias zero-padded to 128 output lanes ONCE at init
    cls_w = nrm(next(keys), (H, cfg.num_labels))
    cls_b = jnp.zeros((cfg.num_labels,), jnp.float32)
    cls_w_p = (jnp.zeros((H, NPAD), jnp.float32)
               .at[:, :cfg.num_labels].set(cls_w).astype(jnp.bfloat16))
    cls_b_p = jnp.zeros((1, NPAD), jnp.float32).at[0, :cfg.num_labels].set(cls_b)

    return {
        "word_emb": nrm(next(keys), (cfg.vocab, H)),
        "pos_emb": nrm(next(keys), (cfg.max_pos, H)),
        "type_emb": nrm(next(keys), (cfg.type_vocab, H)),
        "emb_ln_g": jnp.ones((H,), jnp.float32),
        "emb_ln_b": jnp.zeros((H,), jnp.float32),
        "wqkv": jnp.stack(wqkv), "bqkv": jnp.stack(bqkv),
        "wo": jnp.stack(wo), "bo": jnp.stack(bo),
        "ln1_g": jnp.stack(ln1g), "ln1_b": jnp.stack(ln1b),
        "w1": jnp.stack(w1), "b1": jnp.stack(b1),
        "w2": jnp.stack(w2), "b2": jnp.stack(b2),
        "ln2_g": jnp.stack(ln2g), "ln2_b": jnp.stack(ln2b),
        "pool_w": nrm(next(keys), (H, H)).astype(jnp.bfloat16),
        "pool_b": jnp.zeros((H,), jnp.float32),
        "cls_w_p": cls_w_p, "cls_b_p": cls_b_p,
    }


# ----------------------------- forward (single pallas_call) -------------------


def bert_classifier_forward(params, input_ids, mask, cfg):
    B, S = input_ids.shape
    H = cfg.hidden

    # embedding gather stays in JAX (glue); everything else is one fused kernel
    tok = jnp.take(params["word_emb"], input_ids, axis=0)      # [B, S, H]
    pos = params["pos_emb"][:S]                                # [S, H]
    typ = params["type_emb"][0:1]                              # [1, H]  (token_type_ids == 0)
    att_bias = (1.0 - mask.astype(jnp.float32)) * -1e9         # [B, S]

    kernel = functools.partial(
        _bert_forward_kernel,
        B=B, S=S, H=H, nH=cfg.n_heads, dH=cfg.d_head, L=cfg.layers, eps=1e-12)

    out = pl.pallas_call(
        kernel,
        out_shape=jax.ShapeDtypeStruct((B, NPAD), jnp.float32),
        compiler_params=pltpu.CompilerParams(vmem_limit_bytes=32 * 1024 * 1024),
    )(tok, pos, typ,
      params["emb_ln_g"].reshape(1, H), params["emb_ln_b"].reshape(1, H),
      att_bias,
      params["wqkv"], params["bqkv"], params["wo"], params["bo"],
      params["ln1_g"], params["ln1_b"],
      params["w1"], params["b1"], params["w2"], params["b2"],
      params["ln2_g"], params["ln2_b"],
      params["pool_w"], params["pool_b"].reshape(1, H),
      params["cls_w_p"], params["cls_b_p"])

    return out[:, :cfg.num_labels]                             # [B, num_labels]


# ---------------------------------- main ---------------------------------------

if __name__ == "__main__":
    cfg = Config()
    key = jax.random.PRNGKey(0)
    k_param, k_ids = jax.random.split(key)

    B, S = 2, 8
    params = init_params(k_param, cfg)
    input_ids = jax.random.randint(k_ids, (B, S), 0, cfg.vocab, dtype=jnp.int32)
    # deterministic attention mask: first sequence full, second padded after 5 tokens
    mask = jnp.array([[1] * S, [1] * 5 + [0] * (S - 5)], dtype=jnp.int32)

    out = bert_classifier_forward(params, input_ids, mask, cfg)
    jax.block_until_ready(out)

    assert out.shape == (B, cfg.num_labels)
    assert bool(jnp.all(out >= 0.0))          # ReLU output is non-negative
    assert bool(jnp.all(jnp.isfinite(out)))
    print("KERNEL_OK")
</pallas_src>

<mosaic_0001>
module attributes {stable_mosaic.version = 11 : i64} {
  func.func @_bert_forward_kernel(%arg0: memref<2x8x128xf32, #tpu.memory_space<vmem>>, %arg1: memref<8x128xf32, #tpu.memory_space<vmem>>, %arg2: memref<1x128xf32, #tpu.memory_space<vmem>>, %arg3: memref<1x128xf32, #tpu.memory_space<vmem>>, %arg4: memref<1x128xf32, #tpu.memory_space<vmem>>, %arg5: memref<2x8xf32, #tpu.memory_space<vmem>>, %arg6: memref<2x128x384xbf16, #tpu.memory_space<vmem>>, %arg7: memref<2x1x384xf32, #tpu.memory_space<vmem>>, %arg8: memref<2x128x128xbf16, #tpu.memory_space<vmem>>, %arg9: memref<2x1x128xf32, #tpu.memory_space<vmem>>, %arg10: memref<2x1x128xf32, #tpu.memory_space<vmem>>, %arg11: memref<2x1x128xf32, #tpu.memory_space<vmem>>, %arg12: memref<2x128x256xbf16, #tpu.memory_space<vmem>>, %arg13: memref<2x1x256xf32, #tpu.memory_space<vmem>>, %arg14: memref<2x256x128xbf16, #tpu.memory_space<vmem>>, %arg15: memref<2x1x128xf32, #tpu.memory_space<vmem>>, %arg16: memref<2x1x128xf32, #tpu.memory_space<vmem>>, %arg17: memref<2x1x128xf32, #tpu.memory_space<vmem>>, %arg18: memref<128x128xbf16, #tpu.memory_space<vmem>>, %arg19: memref<1x128xf32, #tpu.memory_space<vmem>>, %arg20: memref<128x128xbf16, #tpu.memory_space<vmem>>, %arg21: memref<1x128xf32, #tpu.memory_space<vmem>>, %arg22: memref<2x128xf32, #tpu.memory_space<vmem>>) attributes {dimension_semantics = [], scalar_prefetch = 0 : i64, scratch_operands = 0 : i64, tpu.core_type = #tpu.core_type<tc>} {
    %c0 = arith.constant 0 : index
    %c0_0 = arith.constant 0 : index
    %c0_1 = arith.constant 0 : index
    %0 = vector.load %arg0[%c0, %c0_0, %c0_1] : memref<2x8x128xf32, #tpu.memory_space<vmem>>, vector<2x8x128xf32>
    %c0_2 = arith.constant 0 : index
    %c0_3 = arith.constant 0 : index
    %1 = vector.load %arg1[%c0_2, %c0_3] : memref<8x128xf32, #tpu.memory_space<vmem>>, vector<8x128xf32>
    %2 = vector.shape_cast %1 : vector<8x128xf32> to vector<1x8x128xf32>
    %3 = vector.broadcast %2 : vector<1x8x128xf32> to vector<2x8x128xf32>
    %4 = arith.addf %0, %3 : vector<2x8x128xf32>
    %c0_4 = arith.constant 0 : index
    %c0_5 = arith.constant 0 : index
    %5 = vector.load %arg2[%c0_4, %c0_5] : memref<1x128xf32, #tpu.memory_space<vmem>>, vector<1x128xf32>
    %6 = vector.shape_cast %5 : vector<1x128xf32> to vector<1x1x128xf32>
    %7 = vector.broadcast %6 : vector<1x1x128xf32> to vector<2x8x128xf32>
    %8 = arith.addf %4, %7 : vector<2x8x128xf32>
    %cst = arith.constant dense<0.000000e+00> : vector<2x8xf32>
    %9 = vector.multi_reduction <add>, %8, %cst [2] : vector<2x8x128xf32> to vector<2x8xf32>
    %10 = vector.shape_cast %9 : vector<2x8xf32> to vector<2x8x1xf32>
    %cst_6 = arith.constant 1.280000e+02 : f32
    %11 = vector.broadcast %cst_6 : f32 to vector<2x8x1xf32>
    %12 = arith.divf %10, %11 : vector<2x8x1xf32>
    %13 = vector.broadcast %12 : vector<2x8x1xf32> to vector<2x8x128xf32>
    %14 = arith.subf %8, %13 : vector<2x8x128xf32>
    %15 = arith.mulf %14, %14 : vector<2x8x128xf32>
    %cst_7 = arith.constant dense<0.000000e+00> : vector<2x8xf32>
    %16 = vector.multi_reduction <add>, %15, %cst_7 [2] : vector<2x8x128xf32> to vector<2x8xf32>
    %17 = vector.shape_cast %16 : vector<2x8xf32> to vector<2x8x1xf32>
    %cst_8 = arith.constant 1.280000e+02 : f32
    %18 = vector.broadcast %cst_8 : f32 to vector<2x8x1xf32>
    %19 = arith.divf %17, %18 : vector<2x8x1xf32>
    %20 = vector.broadcast %12 : vector<2x8x1xf32> to vector<2x8x128xf32>
    %21 = arith.subf %8, %20 : vector<2x8x128xf32>
    %cst_9 = arith.constant 9.99999996E-13 : f32
    %22 = vector.broadcast %cst_9 : f32 to vector<2x8x1xf32>
    %23 = arith.addf %19, %22 : vector<2x8x1xf32>
    %24 = math.rsqrt %23 : vector<2x8x1xf32>
    %25 = vector.broadcast %24 : vector<2x8x1xf32> to vector<2x8x128xf32>
    %26 = arith.mulf %21, %25 : vector<2x8x128xf32>
    %c0_10 = arith.constant 0 : index
    %c0_11 = arith.constant 0 : index
    %27 = vector.load %arg3[%c0_10, %c0_11] : memref<1x128xf32, #tpu.memory_space<vmem>>, vector<1x128xf32>
    %28 = vector.shape_cast %27 : vector<1x128xf32> to vector<1x1x128xf32>
    %29 = vector.broadcast %28 : vector<1x1x128xf32> to vector<2x8x128xf32>
    %30 = arith.mulf %26, %29 : vector<2x8x128xf32>
    %c0_12 = arith.constant 0 : index
    %c0_13 = arith.constant 0 : index
    %31 = vector.load %arg4[%c0_12, %c0_13] : memref<1x128xf32, #tpu.memory_space<vmem>>, vector<1x128xf32>
    %32 = vector.shape_cast %31 : vector<1x128xf32> to vector<1x1x128xf32>
    %33 = vector.broadcast %32 : vector<1x1x128xf32> to vector<2x8x128xf32>
    %34 = arith.addf %30, %33 : vector<2x8x128xf32>
    %35 = vector.shape_cast %34 : vector<2x8x128xf32> to vector<16x128xf32>
    %c0_14 = arith.constant 0 : index
    %c0_15 = arith.constant 0 : index
    %36 = vector.load %arg5[%c0_14, %c0_15] : memref<2x8xf32, #tpu.memory_space<vmem>>, vector<2x8xf32>
    %37 = vector.shape_cast %36 : vector<2x8xf32> to vector<2x1x1x8xf32>
    %38 = vector.shape_cast %37 : vector<2x1x1x8xf32> to vector<2x1x1x8xf32>
    %39 = vector.broadcast %38 : vector<2x1x1x8xf32> to vector<2x2x1x8xf32>
    %40 = vector.shape_cast %39 : vector<2x2x1x8xf32> to vector<4x1x8xf32>
    %41 = arith.truncf %35 : vector<16x128xf32> to vector<16x128xbf16>
    %c0_16 = arith.constant 0 : index
    %c0_17 = arith.constant 0 : index
    %c0_18 = arith.constant 0 : index
    %42 = vector.load %arg6[%c0_16, %c0_17, %c0_18] : memref<2x128x384xbf16, #tpu.memory_space<vmem>>, vector<1x128x384xbf16>
    %43 = vector.shape_cast %42 : vector<1x128x384xbf16> to vector<128x384xbf16>
    %cst_19 = arith.constant dense<0.000000e+00> : vector<16x384xf32>
    %44 = tpu.matmul %41, %43, %cst_19 {dimension_numbers = #tpu.dot_dimension_numbers<[1], [0], [0], [1], [0, 0, 1, 1], [], []>} : vector<16x128xbf16>, vector<128x384xbf16>, vector<16x384xf32> -> vector<16x384xf32>
    %c0_20 = arith.constant 0 : index
    %c0_21 = arith.constant 0 : index
    %c0_22 = arith.constant 0 : index
    %45 = vector.load %arg7[%c0_20, %c0_21, %c0_22] : memref<2x1x384xf32, #tpu.memory_space<vmem>>, vector<1x1x384xf32>
    %46 = vector.shape_cast %45 : vector<1x1x384xf32> to vector<1x384xf32>
    %47 = vector.broadcast %46 : vector<1x384xf32> to vector<16x384xf32>
    %48 = arith.addf %44, %47 : vector<16x384xf32>
    %49 = vector.extract_strided_slice %48 {offsets = [0, 0], sizes = [16, 128], strides = [1, 1]} : vector<16x384xf32> to vector<16x128xf32>
    %50 = vector.extract_strided_slice %48 {offsets = [0, 128], sizes = [16, 128], strides = [1, 1]} : vector<16x384xf32> to vector<16x128xf32>
    %51 = vector.extract_strided_slice %48 {offsets = [0, 256], sizes = [16, 128], strides = [1, 1]} : vector<16x384xf32> to vector<16x128xf32>
    %52 = vector.shape_cast %49 : vector<16x128xf32> to vector<2x8x2x64xf32>
    %53 = tpu.transpose %52, [0, 2, 1, 3] : vector<2x8x2x64xf32> -> vector<2x2x8x64xf32>
    %54 = vector.shape_cast %53 : vector<2x2x8x64xf32> to vector<4x8x64xf32>
    %55 = arith.truncf %54 : vector<4x8x64xf32> to vector<4x8x64xbf16>
    %56 = vector.shape_cast %50 : vector<16x128xf32> to vector<2x8x2x64xf32>
    %57 = tpu.transpose %56, [0, 2, 1, 3] : vector<2x8x2x64xf32> -> vector<2x2x8x64xf32>
    %58 = vector.shape_cast %57 : vector<2x2x8x64xf32> to vector<4x8x64xf32>
    %59 = arith.truncf %58 : vector<4x8x64xf32> to vector<4x8x64xbf16>
    %60 = vector.shape_cast %51 : vector<16x128xf32> to vector<2x8x2x64xf32>
    %61 = tpu.transpose %60, [0, 2, 1, 3] : vector<2x8x2x64xf32> -> vector<2x2x8x64xf32>
    %62 = vector.shape_cast %61 : vector<2x2x8x64xf32> to vector<4x8x64xf32>
    %63 = arith.truncf %62 : vector<4x8x64xf32> to vector<4x8x64xbf16>
    %cst_23 = arith.constant dense<0.000000e+00> : vector<4x8x8xf32>
    %64 = tpu.matmul %55, %59, %cst_23 {dimension_numbers = #tpu.dot_dimension_numbers<[2], [2], [1], [1], [0, 0, 0, 1, 1, 1], [0], [0]>} : vector<4x8x64xbf16>, vector<4x8x64xbf16>, vector<4x8x8xf32> -> vector<4x8x8xf32>
    %65 = vector.broadcast %40 : vector<4x1x8xf32> to vector<4x8x8xf32>
    %66 = arith.addf %64, %65 : vector<4x8x8xf32>
    %cst_24 = arith.constant dense<0xFF800000> : vector<4x8xf32>
    %67 = vector.multi_reduction <maximumf>, %66, %cst_24 [2] : vector<4x8x8xf32> to vector<4x8xf32>
    %68 = vector.shape_cast %67 : vector<4x8xf32> to vector<4x8x1xf32>
    %69 = vector.broadcast %68 : vector<4x8x1xf32> to vector<4x8x8xf32>
    %70 = arith.subf %66, %69 : vector<4x8x8xf32>
    %71 = math.exp %70 : vector<4x8x8xf32>
    %cst_25 = arith.constant dense<0.000000e+00> : vector<4x8xf32>
    %72 = vector.multi_reduction <add>, %71, %cst_25 [2] : vector<4x8x8xf32> to vector<4x8xf32>
    %73 = vector.shape_cast %72 : vector<4x8xf32> to vector<4x8x1xf32>
    %74 = tpu.reciprocal %73 {approx = true} : vector<4x8x1xf32> -> vector<4x8x1xf32>
    %75 = vector.broadcast %74 : vector<4x8x1xf32> to vector<4x8x8xf32>
    %76 = arith.mulf %71, %75 : vector<4x8x8xf32>
    %77 = arith.truncf %76 : vector<4x8x8xf32> to vector<4x8x8xbf16>
    %cst_26 = arith.constant dense<0.000000e+00> : vector<4x8x64xf32>
    %78 = tpu.matmul %77, %63, %cst_26 {dimension_numbers = #tpu.dot_dimension_numbers<[2], [1], [1], [2], [0, 0, 0, 1, 1, 2], [0], [0]>} : vector<4x8x8xbf16>, vector<4x8x64xbf16>, vector<4x8x64xf32> -> vector<4x8x64xf32>
    %79 = vector.shape_cast %78 : vector<4x8x64xf32> to vector<2x2x8x64xf32>
    %80 = tpu.transpose %79, [0, 2, 1, 3] : vector<2x2x8x64xf32> -> vector<2x8x2x64xf32>
    %81 = vector.shape_cast %80 : vector<2x8x2x64xf32> to vector<16x128xf32>
    %82 = arith.truncf %81 : vector<16x128xf32> to vector<16x128xbf16>
    %c0_27 = arith.constant 0 : index
    %c0_28 = arith.constant 0 : index
    %c0_29 = arith.constant 0 : index
    %83 = vector.load %arg8[%c0_27, %c0_28, %c0_29] : memref<2x128x128xbf16, #tpu.memory_space<vmem>>, vector<1x128x128xbf16>
    %84 = vector.shape_cast %83 : vector<1x128x128xbf16> to vector<128x128xbf16>
    %cst_30 = arith.constant dense<0.000000e+00> : vector<16x128xf32>
    %85 = tpu.matmul %82, %84, %cst_30 {dimension_numbers = #tpu.dot_dimension_numbers<[1], [0], [0], [1], [0, 0, 1, 1], [], []>} : vector<16x128xbf16>, vector<128x128xbf16>, vector<16x128xf32> -> vector<16x128xf32>
    %c0_31 = arith.constant 0 : index
    %c0_32 = arith.constant 0 : index
    %c0_33 = arith.constant 0 : index
    %86 = vector.load %arg9[%c0_31, %c0_32, %c0_33] : memref<2x1x128xf32, #tpu.memory_space<vmem>>, vector<1x1x128xf32>
    %87 = vector.shape_cast %86 : vector<1x1x128xf32> to vector<1x128xf32>
    %88 = vector.broadcast %87 : vector<1x128xf32> to vector<16x128xf32>
    %89 = arith.addf %85, %88 : vector<16x128xf32>
    %90 = arith.addf %89, %35 : vector<16x128xf32>
    %cst_34 = arith.constant dense<0.000000e+00> : vector<16xf32>
    %91 = vector.multi_reduction <add>, %90, %cst_34 [1] : vector<16x128xf32> to vector<16xf32>
    %92 = vector.shape_cast %91 : vector<16xf32> to vector<16x1xf32>
    %cst_35 = arith.constant 1.280000e+02 : f32
    %93 = vector.broadcast %cst_35 : f32 to vector<16x1xf32>
    %94 = arith.divf %92, %93 : vector<16x1xf32>
    %95 = vector.broadcast %94 : vector<16x1xf32> to vector<16x128xf32>
    %96 = arith.subf %90, %95 : vector<16x128xf32>
    %97 = arith.mulf %96, %96 : vector<16x128xf32>
    %cst_36 = arith.constant dense<0.000000e+00> : vector<16xf32>
    %98 = vector.multi_reduction <add>, %97, %cst_36 [1] : vector<16x128xf32> to vector<16xf32>
    %99 = vector.shape_cast %98 : vector<16xf32> to vector<16x1xf32>
    %cst_37 = arith.constant 1.280000e+02 : f32
    %100 = vector.broadcast %cst_37 : f32 to vector<16x1xf32>
    %101 = arith.divf %99, %100 : vector<16x1xf32>
    %102 = vector.broadcast %94 : vector<16x1xf32> to vector<16x128xf32>
    %103 = arith.subf %90, %102 : vector<16x128xf32>
    %cst_38 = arith.constant 9.99999996E-13 : f32
    %104 = vector.broadcast %cst_38 : f32 to vector<16x1xf32>
    %105 = arith.addf %101, %104 : vector<16x1xf32>
    %106 = math.rsqrt %105 : vector<16x1xf32>
    %107 = vector.broadcast %106 : vector<16x1xf32> to vector<16x128xf32>
    %108 = arith.mulf %103, %107 : vector<16x128xf32>
    %c0_39 = arith.constant 0 : index
    %c0_40 = arith.constant 0 : index
    %c0_41 = arith.constant 0 : index
    %109 = vector.load %arg10[%c0_39, %c0_40, %c0_41] : memref<2x1x128xf32, #tpu.memory_space<vmem>>, vector<1x1x128xf32>
    %110 = vector.shape_cast %109 : vector<1x1x128xf32> to vector<1x128xf32>
    %111 = vector.broadcast %110 : vector<1x128xf32> to vector<16x128xf32>
    %112 = arith.mulf %108, %111 : vector<16x128xf32>
    %c0_42 = arith.constant 0 : index
    %c0_43 = arith.constant 0 : index
    %c0_44 = arith.constant 0 : index
    %113 = vector.load %arg11[%c0_42, %c0_43, %c0_44] : memref<2x1x128xf32, #tpu.memory_space<vmem>>, vector<1x1x128xf32>
    %114 = vector.shape_cast %113 : vector<1x1x128xf32> to vector<1x128xf32>
    %115 = vector.broadcast %114 : vector<1x128xf32> to vector<16x128xf32>
    %116 = arith.addf %112, %115 : vector<16x128xf32>
    %117 = arith.truncf %116 : vector<16x128xf32> to vector<16x128xbf16>
    %c0_45 = arith.constant 0 : index
    %c0_46 = arith.constant 0 : index
    %c0_47 = arith.constant 0 : index
    %118 = vector.load %arg12[%c0_45, %c0_46, %c0_47] : memref<2x128x256xbf16, #tpu.memory_space<vmem>>, vector<1x128x256xbf16>
    %119 = vector.shape_cast %118 : vector<1x128x256xbf16> to vector<128x256xbf16>
    %cst_48 = arith.constant dense<0.000000e+00> : vector<16x256xf32>
    %120 = tpu.matmul %117, %119, %cst_48 {dimension_numbers = #tpu.dot_dimension_numbers<[1], [0], [0], [1], [0, 0, 1, 1], [], []>} : vector<16x128xbf16>, vector<128x256xbf16>, vector<16x256xf32> -> vector<16x256xf32>
    %c0_49 = arith.constant 0 : index
    %c0_50 = arith.constant 0 : index
    %c0_51 = arith.constant 0 : index
    %121 = vector.load %arg13[%c0_49, %c0_50, %c0_51] : memref<2x1x256xf32, #tpu.memory_space<vmem>>, vector<1x1x256xf32>
    %122 = vector.shape_cast %121 : vector<1x1x256xf32> to vector<1x256xf32>
    %123 = vector.broadcast %122 : vector<1x256xf32> to vector<16x256xf32>
    %124 = arith.addf %120, %123 : vector<16x256xf32>
    %125 = arith.mulf %124, %124 : vector<16x256xf32>
    %126 = arith.mulf %124, %125 : vector<16x256xf32>
    %cst_52 = arith.constant 4.471500e-02 : f32
    %127 = vector.broadcast %cst_52 : f32 to vector<16x256xf32>
    %128 = arith.mulf %127, %126 : vector<16x256xf32>
    %129 = arith.addf %124, %128 : vector<16x256xf32>
    %cst_53 = arith.constant 0.797884583 : f32
    %130 = vector.broadcast %cst_53 : f32 to vector<16x256xf32>
    %131 = arith.mulf %130, %129 : vector<16x256xf32>
    %132 = math.tanh %131 : vector<16x256xf32>
    %cst_54 = arith.constant 1.000000e+00 : f32
    %133 = vector.broadcast %cst_54 : f32 to vector<16x256xf32>
    %134 = arith.addf %133, %132 : vector<16x256xf32>
    %cst_55 = arith.constant 5.000000e-01 : f32
    %135 = vector.broadcast %cst_55 : f32 to vector<16x256xf32>
    %136 = arith.mulf %135, %134 : vector<16x256xf32>
    %137 = arith.mulf %124, %136 : vector<16x256xf32>
    %138 = arith.truncf %137 : vector<16x256xf32> to vector<16x256xbf16>
    %c0_56 = arith.constant 0 : index
    %c0_57 = arith.constant 0 : index
    %c0_58 = arith.constant 0 : index
    %139 = vector.load %arg14[%c0_56, %c0_57, %c0_58] : memref<2x256x128xbf16, #tpu.memory_space<vmem>>, vector<1x256x128xbf16>
    %140 = vector.shape_cast %139 : vector<1x256x128xbf16> to vector<256x128xbf16>
    %cst_59 = arith.constant dense<0.000000e+00> : vector<16x128xf32>
    %141 = tpu.matmul %138, %140, %cst_59 {dimension_numbers = #tpu.dot_dimension_numbers<[1], [0], [0], [1], [0, 0, 1, 1], [], []>} : vector<16x256xbf16>, vector<256x128xbf16>, vector<16x128xf32> -> vector<16x128xf32>
    %c0_60 = arith.constant 0 : index
    %c0_61 = arith.constant 0 : index
    %c0_62 = arith.constant 0 : index
    %142 = vector.load %arg15[%c0_60, %c0_61, %c0_62] : memref<2x1x128xf32, #tpu.memory_space<vmem>>, vector<1x1x128xf32>
    %143 = vector.shape_cast %142 : vector<1x1x128xf32> to vector<1x128xf32>
    %144 = vector.broadcast %143 : vector<1x128xf32> to vector<16x128xf32>
    %145 = arith.addf %141, %144 : vector<16x128xf32>
    %146 = arith.addf %145, %116 : vector<16x128xf32>
    %cst_63 = arith.constant dense<0.000000e+00> : vector<16xf32>
    %147 = vector.multi_reduction <add>, %146, %cst_63 [1] : vector<16x128xf32> to vector<16xf32>
    %148 = vector.shape_cast %147 : vector<16xf32> to vector<16x1xf32>
    %cst_64 = arith.constant 1.280000e+02 : f32
    %149 = vector.broadcast %cst_64 : f32 to vector<16x1xf32>
    %150 = arith.divf %148, %149 : vector<16x1xf32>
    %151 = vector.broadcast %150 : vector<16x1xf32> to vector<16x128xf32>
    %152 = arith.subf %146, %151 : vector<16x128xf32>
    %153 = arith.mulf %152, %152 : vector<16x128xf32>
    %cst_65 = arith.constant dense<0.000000e+00> : vector<16xf32>
    %154 = vector.multi_reduction <add>, %153, %cst_65 [1] : vector<16x128xf32> to vector<16xf32>
    %155 = vector.shape_cast %154 : vector<16xf32> to vector<16x1xf32>
    %cst_66 = arith.constant 1.280000e+02 : f32
    %156 = vector.broadcast %cst_66 : f32 to vector<16x1xf32>
    %157 = arith.divf %155, %156 : vector<16x1xf32>
    %158 = vector.broadcast %150 : vector<16x1xf32> to vector<16x128xf32>
    %159 = arith.subf %146, %158 : vector<16x128xf32>
    %cst_67 = arith.constant 9.99999996E-13 : f32
    %160 = vector.broadcast %cst_67 : f32 to vector<16x1xf32>
    %161 = arith.addf %157, %160 : vector<16x1xf32>
    %162 = math.rsqrt %161 : vector<16x1xf32>
    %163 = vector.broadcast %162 : vector<16x1xf32> to vector<16x128xf32>
    %164 = arith.mulf %159, %163 : vector<16x128xf32>
    %c0_68 = arith.constant 0 : index
    %c0_69 = arith.constant 0 : index
    %c0_70 = arith.constant 0 : index
    %165 = vector.load %arg16[%c0_68, %c0_69, %c0_70] : memref<2x1x128xf32, #tpu.memory_space<vmem>>, vector<1x1x128xf32>
    %166 = vector.shape_cast %165 : vector<1x1x128xf32> to vector<1x128xf32>
    %167 = vector.broadcast %166 : vector<1x128xf32> to vector<16x128xf32>
    %168 = arith.mulf %164, %167 : vector<16x128xf32>
    %c0_71 = arith.constant 0 : index
    %c0_72 = arith.constant 0 : index
    %c0_73 = arith.constant 0 : index
    %169 = vector.load %arg17[%c0_71, %c0_72, %c0_73] : memref<2x1x128xf32, #tpu.memory_space<vmem>>, vector<1x1x128xf32>
    %170 = vector.shape_cast %169 : vector<1x1x128xf32> to vector<1x128xf32>
    %171 = vector.broadcast %170 : vector<1x128xf32> to vector<16x128xf32>
    %172 = arith.addf %168, %171 : vector<16x128xf32>
    %173 = arith.truncf %172 : vector<16x128xf32> to vector<16x128xbf16>
    %c1 = arith.constant 1 : index
    %c0_74 = arith.constant 0 : index
    %c0_75 = arith.constant 0 : index
    %174 = vector.load %arg6[%c1, %c0_74, %c0_75] : memref<2x128x384xbf16, #tpu.memory_space<vmem>>, vector<1x128x384xbf16>
    %175 = vector.shape_cast %174 : vector<1x128x384xbf16> to vector<128x384xbf16>
    %cst_76 = arith.constant dense<0.000000e+00> : vector<16x384xf32>
    %176 = tpu.matmul %173, %175, %cst_76 {dimension_numbers = #tpu.dot_dimension_numbers<[1], [0], [0], [1], [0, 0, 1, 1], [], []>} : vector<16x128xbf16>, vector<128x384xbf16>, vector<16x384xf32> -> vector<16x384xf32>
    %c1_77 = arith.constant 1 : index
    %c0_78 = arith.constant 0 : index
    %c0_79 = arith.constant 0 : index
    %177 = vector.load %arg7[%c1_77, %c0_78, %c0_79] : memref<2x1x384xf32, #tpu.memory_space<vmem>>, vector<1x1x384xf32>
    %178 = vector.shape_cast %177 : vector<1x1x384xf32> to vector<1x384xf32>
    %179 = vector.broadcast %178 : vector<1x384xf32> to vector<16x384xf32>
    %180 = arith.addf %176, %179 : vector<16x384xf32>
    %181 = vector.extract_strided_slice %180 {offsets = [0, 0], sizes = [16, 128], strides = [1, 1]} : vector<16x384xf32> to vector<16x128xf32>
    %182 = vector.extract_strided_slice %180 {offsets = [0, 128], sizes = [16, 128], strides = [1, 1]} : vector<16x384xf32> to vector<16x128xf32>
    %183 = vector.extract_strided_slice %180 {offsets = [0, 256], sizes = [16, 128], strides = [1, 1]} : vector<16x384xf32> to vector<16x128xf32>
    %184 = vector.shape_cast %181 : vector<16x128xf32> to vector<2x8x2x64xf32>
    %185 = tpu.transpose %184, [0, 2, 1, 3] : vector<2x8x2x64xf32> -> vector<2x2x8x64xf32>
    %186 = vector.shape_cast %185 : vector<2x2x8x64xf32> to vector<4x8x64xf32>
    %187 = arith.truncf %186 : vector<4x8x64xf32> to vector<4x8x64xbf16>
    %188 = vector.shape_cast %182 : vector<16x128xf32> to vector<2x8x2x64xf32>
    %189 = tpu.transpose %188, [0, 2, 1, 3] : vector<2x8x2x64xf32> -> vector<2x2x8x64xf32>
    %190 = vector.shape_cast %189 : vector<2x2x8x64xf32> to vector<4x8x64xf32>
    %191 = arith.truncf %190 : vector<4x8x64xf32> to vector<4x8x64xbf16>
    %192 = vector.shape_cast %183 : vector<16x128xf32> to vector<2x8x2x64xf32>
    %193 = tpu.transpose %192, [0, 2, 1, 3] : vector<2x8x2x64xf32> -> vector<2x2x8x64xf32>
    %194 = vector.shape_cast %193 : vector<2x2x8x64xf32> to vector<4x8x64xf32>
    %195 = arith.truncf %194 : vector<4x8x64xf32> to vector<4x8x64xbf16>
    %cst_80 = arith.constant dense<0.000000e+00> : vector<4x8x8xf32>
    %196 = tpu.matmul %187, %191, %cst_80 {dimension_numbers = #tpu.dot_dimension_numbers<[2], [2], [1], [1], [0, 0, 0, 1, 1, 1], [0], [0]>} : vector<4x8x64xbf16>, vector<4x8x64xbf16>, vector<4x8x8xf32> -> vector<4x8x8xf32>
    %197 = vector.broadcast %40 : vector<4x1x8xf32> to vector<4x8x8xf32>
    %198 = arith.addf %196, %197 : vector<4x8x8xf32>
    %cst_81 = arith.constant dense<0xFF800000> : vector<4x8xf32>
    %199 = vector.multi_reduction <maximumf>, %198, %cst_81 [2] : vector<4x8x8xf32> to vector<4x8xf32>
    %200 = vector.shape_cast %199 : vector<4x8xf32> to vector<4x8x1xf32>
    %201 = vector.broadcast %200 : vector<4x8x1xf32> to vector<4x8x8xf32>
    %202 = arith.subf %198, %201 : vector<4x8x8xf32>
    %203 = math.exp %202 : vector<4x8x8xf32>
    %cst_82 = arith.constant dense<0.000000e+00> : vector<4x8xf32>
    %204 = vector.multi_reduction <add>, %203, %cst_82 [2] : vector<4x8x8xf32> to vector<4x8xf32>
    %205 = vector.shape_cast %204 : vector<4x8xf32> to vector<4x8x1xf32>
    %206 = tpu.reciprocal %205 {approx = true} : vector<4x8x1xf32> -> vector<4x8x1xf32>
    %207 = vector.broadcast %206 : vector<4x8x1xf32> to vector<4x8x8xf32>
    %208 = arith.mulf %203, %207 : vector<4x8x8xf32>
    %209 = arith.truncf %208 : vector<4x8x8xf32> to vector<4x8x8xbf16>
    %cst_83 = arith.constant dense<0.000000e+00> : vector<4x8x64xf32>
    %210 = tpu.matmul %209, %195, %cst_83 {dimension_numbers = #tpu.dot_dimension_numbers<[2], [1], [1], [2], [0, 0, 0, 1, 1, 2], [0], [0]>} : vector<4x8x8xbf16>, vector<4x8x64xbf16>, vector<4x8x64xf32> -> vector<4x8x64xf32>
    %211 = vector.shape_cast %210 : vector<4x8x64xf32> to vector<2x2x8x64xf32>
    %212 = tpu.transpose %211, [0, 2, 1, 3] : vector<2x2x8x64xf32> -> vector<2x8x2x64xf32>
    %213 = vector.shape_cast %212 : vector<2x8x2x64xf32> to vector<16x128xf32>
    %214 = arith.truncf %213 : vector<16x128xf32> to vector<16x128xbf16>
    %c1_84 = arith.constant 1 : index
    %c0_85 = arith.constant 0 : index
    %c0_86 = arith.constant 0 : index
    %215 = vector.load %arg8[%c1_84, %c0_85, %c0_86] : memref<2x128x128xbf16, #tpu.memory_space<vmem>>, vector<1x128x128xbf16>
    %216 = vector.shape_cast %215 : vector<1x128x128xbf16> to vector<128x128xbf16>
    %cst_87 = arith.constant dense<0.000000e+00> : vector<16x128xf32>
    %217 = tpu.matmul %214, %216, %cst_87 {dimension_numbers = #tpu.dot_dimension_numbers<[1], [0], [0], [1], [0, 0, 1, 1], [], []>} : vector<16x128xbf16>, vector<128x128xbf16>, vector<16x128xf32> -> vector<16x128xf32>
    %c1_88 = arith.constant 1 : index
    %c0_89 = arith.constant 0 : index
    %c0_90 = arith.constant 0 : index
    %218 = vector.load %arg9[%c1_88, %c0_89, %c0_90] : memref<2x1x128xf32, #tpu.memory_space<vmem>>, vector<1x1x128xf32>
    %219 = vector.shape_cast %218 : vector<1x1x128xf32> to vector<1x128xf32>
    %220 = vector.broadcast %219 : vector<1x128xf32> to vector<16x128xf32>
    %221 = arith.addf %217, %220 : vector<16x128xf32>
    %222 = arith.addf %221, %172 : vector<16x128xf32>
    %cst_91 = arith.constant dense<0.000000e+00> : vector<16xf32>
    %223 = vector.multi_reduction <add>, %222, %cst_91 [1] : vector<16x128xf32> to vector<16xf32>
    %224 = vector.shape_cast %223 : vector<16xf32> to vector<16x1xf32>
    %cst_92 = arith.constant 1.280000e+02 : f32
    %225 = vector.broadcast %cst_92 : f32 to vector<16x1xf32>
    %226 = arith.divf %224, %225 : vector<16x1xf32>
    %227 = vector.broadcast %226 : vector<16x1xf32> to vector<16x128xf32>
    %228 = arith.subf %222, %227 : vector<16x128xf32>
    %229 = arith.mulf %228, %228 : vector<16x128xf32>
    %cst_93 = arith.constant dense<0.000000e+00> : vector<16xf32>
    %230 = vector.multi_reduction <add>, %229, %cst_93 [1] : vector<16x128xf32> to vector<16xf32>
    %231 = vector.shape_cast %230 : vector<16xf32> to vector<16x1xf32>
    %cst_94 = arith.constant 1.280000e+02 : f32
    %232 = vector.broadcast %cst_94 : f32 to vector<16x1xf32>
    %233 = arith.divf %231, %232 : vector<16x1xf32>
    %234 = vector.broadcast %226 : vector<16x1xf32> to vector<16x128xf32>
    %235 = arith.subf %222, %234 : vector<16x128xf32>
    %cst_95 = arith.constant 9.99999996E-13 : f32
    %236 = vector.broadcast %cst_95 : f32 to vector<16x1xf32>
    %237 = arith.addf %233, %236 : vector<16x1xf32>
    %238 = math.rsqrt %237 : vector<16x1xf32>
    %239 = vector.broadcast %238 : vector<16x1xf32> to vector<16x128xf32>
    %240 = arith.mulf %235, %239 : vector<16x128xf32>
    %c1_96 = arith.constant 1 : index
    %c0_97 = arith.constant 0 : index
    %c0_98 = arith.constant 0 : index
    %241 = vector.load %arg10[%c1_96, %c0_97, %c0_98] : memref<2x1x128xf32, #tpu.memory_space<vmem>>, vector<1x1x128xf32>
    %242 = vector.shape_cast %241 : vector<1x1x128xf32> to vector<1x128xf32>
    %243 = vector.broadcast %242 : vector<1x128xf32> to vector<16x128xf32>
    %244 = arith.mulf %240, %243 : vector<16x128xf32>
    %c1_99 = arith.constant 1 : index
    %c0_100 = arith.constant 0 : index
    %c0_101 = arith.constant 0 : index
    %245 = vector.load %arg11[%c1_99, %c0_100, %c0_101] : memref<2x1x128xf32, #tpu.memory_space<vmem>>, vector<1x1x128xf32>
    %246 = vector.shape_cast %245 : vector<1x1x128xf32> to vector<1x128xf32>
    %247 = vector.broadcast %246 : vector<1x128xf32> to vector<16x128xf32>
    %248 = arith.addf %244, %247 : vector<16x128xf32>
    %249 = arith.truncf %248 : vector<16x128xf32> to vector<16x128xbf16>
    %c1_102 = arith.constant 1 : index
    %c0_103 = arith.constant 0 : index
    %c0_104 = arith.constant 0 : index
    %250 = vector.load %arg12[%c1_102, %c0_103, %c0_104] : memref<2x128x256xbf16, #tpu.memory_space<vmem>>, vector<1x128x256xbf16>
    %251 = vector.shape_cast %250 : vector<1x128x256xbf16> to vector<128x256xbf16>
    %cst_105 = arith.constant dense<0.000000e+00> : vector<16x256xf32>
    %252 = tpu.matmul %249, %251, %cst_105 {dimension_numbers = #tpu.dot_dimension_numbers<[1], [0], [0], [1], [0, 0, 1, 1], [], []>} : vector<16x128xbf16>, vector<128x256xbf16>, vector<16x256xf32> -> vector<16x256xf32>
    %c1_106 = arith.constant 1 : index
    %c0_107 = arith.constant 0 : index
    %c0_108 = arith.constant 0 : index
    %253 = vector.load %arg13[%c1_106, %c0_107, %c0_108] : memref<2x1x256xf32, #tpu.memory_space<vmem>>, vector<1x1x256xf32>
    %254 = vector.shape_cast %253 : vector<1x1x256xf32> to vector<1x256xf32>
    %255 = vector.broadcast %254 : vector<1x256xf32> to vector<16x256xf32>
    %256 = arith.addf %252, %255 : vector<16x256xf32>
    %257 = arith.mulf %256, %256 : vector<16x256xf32>
    %258 = arith.mulf %256, %257 : vector<16x256xf32>
    %cst_109 = arith.constant 4.471500e-02 : f32
    %259 = vector.broadcast %cst_109 : f32 to vector<16x256xf32>
    %260 = arith.mulf %259, %258 : vector<16x256xf32>
    %261 = arith.addf %256, %260 : vector<16x256xf32>
    %cst_110 = arith.constant 0.797884583 : f32
    %262 = vector.broadcast %cst_110 : f32 to vector<16x256xf32>
    %263 = arith.mulf %262, %261 : vector<16x256xf32>
    %264 = math.tanh %263 : vector<16x256xf32>
    %cst_111 = arith.constant 1.000000e+00 : f32
    %265 = vector.broadcast %cst_111 : f32 to vector<16x256xf32>
    %266 = arith.addf %265, %264 : vector<16x256xf32>
    %cst_112 = arith.constant 5.000000e-01 : f32
    %267 = vector.broadcast %cst_112 : f32 to vector<16x256xf32>
    %268 = arith.mulf %267, %266 : vector<16x256xf32>
    %269 = arith.mulf %256, %268 : vector<16x256xf32>
    %270 = arith.truncf %269 : vector<16x256xf32> to vector<16x256xbf16>
    %c1_113 = arith.constant 1 : index
    %c0_114 = arith.constant 0 : index
    %c0_115 = arith.constant 0 : index
    %271 = vector.load %arg14[%c1_113, %c0_114, %c0_115] : memref<2x256x128xbf16, #tpu.memory_space<vmem>>, vector<1x256x128xbf16>
    %272 = vector.shape_cast %271 : vector<1x256x128xbf16> to vector<256x128xbf16>
    %cst_116 = arith.constant dense<0.000000e+00> : vector<16x128xf32>
    %273 = tpu.matmul %270, %272, %cst_116 {dimension_numbers = #tpu.dot_dimension_numbers<[1], [0], [0], [1], [0, 0, 1, 1], [], []>} : vector<16x256xbf16>, vector<256x128xbf16>, vector<16x128xf32> -> vector<16x128xf32>
    %c1_117 = arith.constant 1 : index
    %c0_118 = arith.constant 0 : index
    %c0_119 = arith.constant 0 : index
    %274 = vector.load %arg15[%c1_117, %c0_118, %c0_119] : memref<2x1x128xf32, #tpu.memory_space<vmem>>, vector<1x1x128xf32>
    %275 = vector.shape_cast %274 : vector<1x1x128xf32> to vector<1x128xf32>
    %276 = vector.broadcast %275 : vector<1x128xf32> to vector<16x128xf32>
    %277 = arith.addf %273, %276 : vector<16x128xf32>
    %278 = arith.addf %277, %248 : vector<16x128xf32>
    %cst_120 = arith.constant dense<0.000000e+00> : vector<16xf32>
    %279 = vector.multi_reduction <add>, %278, %cst_120 [1] : vector<16x128xf32> to vector<16xf32>
    %280 = vector.shape_cast %279 : vector<16xf32> to vector<16x1xf32>
    %cst_121 = arith.constant 1.280000e+02 : f32
    %281 = vector.broadcast %cst_121 : f32 to vector<16x1xf32>
    %282 = arith.divf %280, %281 : vector<16x1xf32>
    %283 = vector.broadcast %282 : vector<16x1xf32> to vector<16x128xf32>
    %284 = arith.subf %278, %283 : vector<16x128xf32>
    %285 = arith.mulf %284, %284 : vector<16x128xf32>
    %cst_122 = arith.constant dense<0.000000e+00> : vector<16xf32>
    %286 = vector.multi_reduction <add>, %285, %cst_122 [1] : vector<16x128xf32> to vector<16xf32>
    %287 = vector.shape_cast %286 : vector<16xf32> to vector<16x1xf32>
    %cst_123 = arith.constant 1.280000e+02 : f32
    %288 = vector.broadcast %cst_123 : f32 to vector<16x1xf32>
    %289 = arith.divf %287, %288 : vector<16x1xf32>
    %290 = vector.broadcast %282 : vector<16x1xf32> to vector<16x128xf32>
    %291 = arith.subf %278, %290 : vector<16x128xf32>
    %cst_124 = arith.constant 9.99999996E-13 : f32
    %292 = vector.broadcast %cst_124 : f32 to vector<16x1xf32>
    %293 = arith.addf %289, %292 : vector<16x1xf32>
    %294 = math.rsqrt %293 : vector<16x1xf32>
    %295 = vector.broadcast %294 : vector<16x1xf32> to vector<16x128xf32>
    %296 = arith.mulf %291, %295 : vector<16x128xf32>
    %c1_125 = arith.constant 1 : index
    %c0_126 = arith.constant 0 : index
    %c0_127 = arith.constant 0 : index
    %297 = vector.load %arg16[%c1_125, %c0_126, %c0_127] : memref<2x1x128xf32, #tpu.memory_space<vmem>>, vector<1x1x128xf32>
    %298 = vector.shape_cast %297 : vector<1x1x128xf32> to vector<1x128xf32>
    %299 = vector.broadcast %298 : vector<1x128xf32> to vector<16x128xf32>
    %300 = arith.mulf %296, %299 : vector<16x128xf32>
    %c1_128 = arith.constant 1 : index
    %c0_129 = arith.constant 0 : index
    %c0_130 = arith.constant 0 : index
    %301 = vector.load %arg17[%c1_128, %c0_129, %c0_130] : memref<2x1x128xf32, #tpu.memory_space<vmem>>, vector<1x1x128xf32>
    %302 = vector.shape_cast %301 : vector<1x1x128xf32> to vector<1x128xf32>
    %303 = vector.broadcast %302 : vector<1x128xf32> to vector<16x128xf32>
    %304 = arith.addf %300, %303 : vector<16x128xf32>
    %305 = vector.shape_cast %304 : vector<16x128xf32> to vector<2x8x128xf32>
    %306 = vector.extract_strided_slice %305 {offsets = [0, 0, 0], sizes = [2, 1, 128], strides = [1, 1, 1]} : vector<2x8x128xf32> to vector<2x1x128xf32>
    %307 = vector.shape_cast %306 : vector<2x1x128xf32> to vector<2x128xf32>
    %308 = arith.truncf %307 : vector<2x128xf32> to vector<2x128xbf16>
    %c0_131 = arith.constant 0 : index
    %c0_132 = arith.constant 0 : index
    %309 = vector.load %arg18[%c0_131, %c0_132] : memref<128x128xbf16, #tpu.memory_space<vmem>>, vector<128x128xbf16>
    %cst_133 = arith.constant dense<0.000000e+00> : vector<2x128xf32>
    %310 = tpu.matmul %308, %309, %cst_133 {dimension_numbers = #tpu.dot_dimension_numbers<[1], [0], [0], [1], [0, 0, 1, 1], [], []>} : vector<2x128xbf16>, vector<128x128xbf16>, vector<2x128xf32> -> vector<2x128xf32>
    %c0_134 = arith.constant 0 : index
    %c0_135 = arith.constant 0 : index
    %311 = vector.load %arg19[%c0_134, %c0_135] : memref<1x128xf32, #tpu.memory_space<vmem>>, vector<1x128xf32>
    %312 = vector.broadcast %311 : vector<1x128xf32> to vector<2x128xf32>
    %313 = arith.addf %310, %312 : vector<2x128xf32>
    %314 = math.tanh %313 : vector<2x128xf32>
    %315 = arith.truncf %314 : vector<2x128xf32> to vector<2x128xbf16>
    %c0_136 = arith.constant 0 : index
    %c0_137 = arith.constant 0 : index
    %316 = vector.load %arg20[%c0_136, %c0_137] : memref<128x128xbf16, #tpu.memory_space<vmem>>, vector<128x128xbf16>
    %cst_138 = arith.constant dense<0.000000e+00> : vector<2x128xf32>
    %317 = tpu.matmul %315, %316, %cst_138 {dimension_numbers = #tpu.dot_dimension_numbers<[1], [0], [0], [1], [0, 0, 1, 1], [], []>} : vector<2x128xbf16>, vector<128x128xbf16>, vector<2x128xf32> -> vector<2x128xf32>
    %c0_139 = arith.constant 0 : index
    %c0_140 = arith.constant 0 : index
    %318 = vector.load %arg21[%c0_139, %c0_140] : memref<1x128xf32, #tpu.memory_space<vmem>>, vector<1x128xf32>
    %319 = vector.broadcast %318 : vector<1x128xf32> to vector<2x128xf32>
    %320 = arith.addf %317, %319 : vector<2x128xf32>
    %cst_141 = arith.constant 0.000000e+00 : f32
    %321 = vector.broadcast %cst_141 : f32 to vector<2x128xf32>
    %322 = arith.maximumf %320, %321 : vector<2x128xf32>
    %c0_142 = arith.constant 0 : index
    %c0_143 = arith.constant 0 : index
    %323 = vector.load %arg22[%c0_142, %c0_143] : memref<2x128xf32, #tpu.memory_space<vmem>>, vector<2x128xf32>
    tpu.vector_store %arg22[%c0_142, %c0_143], %322 {strides = array<i32>} : memref<2x128xf32, #tpu.memory_space<vmem>>, vector<2x128xf32>,
    return
  }
}

</mosaic_0001>

<llo_original>
// kernel: tpu_custom_call.1
$region0: #{tpu_custom_call.1}
  #allocation0 [shape = 'u32[]', space=smem, size = 0x4, offset = 0x4, fixed_abs, tag = 'smem constant byte address 0x4 - core index']
  #allocation1 [shape = 'u32[144,128]{1,0:T(1,128)}', space=vmem, size = 0x12000, scoped, tag = 'internal scratch']
  %s0 = inlined_call_operand.hbm [shape: f32[2,8,128], index: 0, kind: input, shape index: {}]
  %s1 = inlined_call_operand.hbm [shape: f32[8,128], index: 1, kind: input, shape index: {}]
  %s2 = inlined_call_operand.hbm [shape: f32[1,128], index: 2, kind: input, shape index: {}]
  %s3 = inlined_call_operand.hbm [shape: f32[1,128], index: 3, kind: input, shape index: {}]
  %s4 = inlined_call_operand.hbm [shape: f32[1,128], index: 4, kind: input, shape index: {}]
  %s5 = inlined_call_operand.hbm [shape: f32[2,8], index: 5, kind: input, shape index: {}]
  %s6 = inlined_call_operand.hbm [shape: bf16[2,128,384], index: 6, kind: input, shape index: {}]
  %s7 = inlined_call_operand.hbm [shape: f32[2,1,384], index: 7, kind: input, shape index: {}]
  %s8 = inlined_call_operand.hbm [shape: bf16[2,128,128], index: 8, kind: input, shape index: {}]
  %s9 = inlined_call_operand.hbm [shape: f32[2,1,128], index: 9, kind: input, shape index: {}]
  %s10 = inlined_call_operand.hbm [shape: f32[2,1,128], index: 10, kind: input, shape index: {}]
  %s11 = inlined_call_operand.hbm [shape: f32[2,1,128], index: 11, kind: input, shape index: {}]
  %s12 = inlined_call_operand.hbm [shape: bf16[2,128,256], index: 12, kind: input, shape index: {}]
  %s13 = inlined_call_operand.vmem [shape: f32[2,1,256], index: 13, kind: input, shape index: {}]
  %s14 = inlined_call_operand.hbm [shape: bf16[2,256,128], index: 14, kind: input, shape index: {}]
  %s15 = inlined_call_operand.hbm [shape: f32[2,1,128], index: 15, kind: input, shape index: {}]
  %s16 = inlined_call_operand.hbm [shape: f32[2,1,128], index: 16, kind: input, shape index: {}]
  %s17 = inlined_call_operand.hbm [shape: f32[2,1,128], index: 17, kind: input, shape index: {}]
  %s18 = inlined_call_operand.vmem [shape: bf16[128,128], index: 18, kind: input, shape index: {}]
  %s19 = inlined_call_operand.vmem [shape: f32[1,128], index: 19, kind: input, shape index: {}]
  %s20 = inlined_call_operand.hbm [shape: bf16[128,128], index: 20, kind: input, shape index: {}]
  %s21 = inlined_call_operand.vmem [shape: f32[1,128], index: 21, kind: input, shape index: {}]
  %s22 = inlined_call_operand.hbm [shape: f32[2,128], index: 22, kind: output, shape index: {}]
  %s23 = sld [smem:[#allocation0]]
  $region170: #{tpu_custom_call.1} parent=0
    _
  %s25 = ssub.s32 1, %s23
  %s26 = scalar_select 0, %s25, %s23
  $region1: #{tpu_custom_call.1} parent=0
    #allocation2 [shape = 'u8[8192]{0}', space=vmem, size = 0x2000, scoped, tag = 'input window, operand 0, single buffered']
    #allocation3 [shape = 's32[1]{0}', space=sflag, size = 0x4, scoped, tag = 'scoped memory for tpu_custom_call.1']
    #allocation4 [shape = 's32[1]{0}', space=sflag, size = 0x4, scoped, tag = 'scoped memory for tpu_custom_call.1']
    #allocation5 [shape = 'u8[4096]{0}', space=vmem, size = 0x1000, scoped, tag = 'input window, operand 1, single buffered']
    #allocation6 [shape = 's32[1]{0}', space=sflag, size = 0x4, scoped, tag = 'scoped memory for tpu_custom_call.1']
    #allocation7 [shape = 'u8[512]{0}', space=vmem, size = 0x400, scoped, tag = 'input window, operand 2, single buffered']
    #allocation8 [shape = 'u8[512]{0}', space=vmem, size = 0x400, scoped, tag = 'input window, operand 3, single buffered']
    #allocation9 [shape = 's32[1]{0}', space=sflag, size = 0x4, scoped, tag = 'scoped memory for tpu_custom_call.1']
    #allocation10 [shape = 'u8[512]{0}', space=vmem, size = 0x400, scoped, tag = 'input window, operand 4, single buffered']
    #allocation11 [shape = 'u8[1024]{0}', space=vmem, size = 0x400, scoped, tag = 'input window, operand 5, single buffered']
    #allocation12 [shape = 's32[1]{0}', space=sflag, size = 0x4, scoped, tag = 'scoped memory for tpu_custom_call.1']
    #allocation13 [shape = 'u8[196608]{0}', space=vmem, size = 0x30000, scoped, tag = 'input window, operand 6, single buffered']
    #allocation14 [shape = 'u8[3072]{0}', space=vmem, size = 0xc00, scoped, tag = 'input window, operand 7, single buffered']
    #allocation15 [shape = 's32[1]{0}', space=sflag, size = 0x4, scoped, tag = 'scoped memory for tpu_custom_call.1']
    #allocation16 [shape = 'u8[65536]{0}', space=vmem, size = 0x10000, scoped, tag = 'input window, operand 8, single buffered']
    #allocation17 [shape = 'u8[1024]{0}', space=vmem, size = 0x400, scoped, tag = 'input window, operand 9, single buffered']
    #allocation18 [shape = 's32[1]{0}', space=sflag, size = 0x4, scoped, tag = 'scoped memory for tpu_custom_call.1']
    #allocation19 [shape = 'u8[1024]{0}', space=vmem, size = 0x400, scoped, tag = 'input window, operand 10, single buffered']
    #allocation20 [shape = 'u8[1024]{0}', space=vmem, size = 0x400, scoped, tag = 'input window, operand 11, single buffered']
    #allocation21 [shape = 's32[1]{0}', space=sflag, size = 0x4, scoped, tag = 'scoped memory for tpu_custom_call.1']
    #allocation22 [shape = 'u8[131072]{0}', space=vmem, size = 0x20000, scoped, tag = 'input window, operand 12, single buffered']
    #allocation23 [shape = 'u8[131072]{0}', space=vmem, size = 0x20000, scoped, tag = 'input window, operand 14, single buffered']
    #allocation24 [shape = 's32[1]{0}', space=sflag, size = 0x4, scoped, tag = 'scoped memory for tpu_custom_call.1']
    #allocation25 [shape = 'u8[1024]{0}', space=vmem, size = 0x400, scoped, tag = 'input window, operand 15, single buffered']
    #allocation26 [shape = 'u8[1024]{0}', space=vmem, size = 0x400, scoped, tag = 'input window, operand 16, single buffered']
    #allocation27 [shape = 's32[1]{0}', space=sflag, size = 0x4, scoped, tag = 'scoped memory for tpu_custom_call.1']
    #allocation28 [shape = 'u8[1024]{0}', space=vmem, size = 0x400, scoped, tag = 'input window, operand 17, single buffered']
    #allocation29 [shape = 'u8[32768]{0}', space=vmem, size = 0x8000, scoped, tag = 'input window, operand 20, single buffered']
    #allocation30 [shape = 's32[1]{0}', space=sflag, size = 0x4, scoped, tag = 'scoped memory for tpu_custom_call.1']
    #allocation31 [shape = 'u8[1024]{0}', space=vmem, size = 0x400, scoped, tag = 'output window, operand 0, single buffered']
    %27 = vsyncpa [#allocation3], 0
    %28 = vsyncpa [#allocation6], 0
    %29 = vsyncpa [#allocation9], 0
    %30 = vsyncpa [#allocation12], 0
    %31 = vsyncpa [#allocation15], 0
    %32 = vsyncpa [#allocation18], 0
    %33 = vsyncpa [#allocation21], 0
    %34 = vsyncpa [#allocation24], 0
    %35 = vsyncpa [#allocation27], 0
    %36 = vsyncpa [#allocation30], 0
    %37 = vsyncpa [#allocation4], 0
    // Predicated region
    $region2: #{tpu_custom_call.1} parent=1 // pred_check
      _
    $region3: #{tpu_custom_call.1} parent=1 // pred_check_branch
      %39 = sbr.rel (0) target = $region5
    $region4: #{tpu_custom_call.1} parent=1 // pred_region
      %s41 = ssub.s32 256, 256
      %42 = vsyncadd [#allocation3], %s41
      %s43 = sshll.u32 [#allocation2], 4
      %s44 = int_to_ptr.vmem [resolvable:$true] %s43
      %49 = dma.hbm_to_vmem [thread:$0]  %s0, 256, %s44, [#allocation3], 128, 128, 8
    $region5: #{tpu_custom_call.1} parent=1 // pred_fallthru
      _
    // Predicated region
    $region6: #{tpu_custom_call.1} parent=1 // pred_check
      _
    $region7: #{tpu_custom_call.1} parent=1 // pred_check_branch
      %51 = sbr.rel (0) target = $region9
    $region8: #{tpu_custom_call.1} parent=1 // pred_region
      %s53 = ssub.s32 128, 128
      %54 = vsyncadd [#allocation6], %s53
      %s56 = sshll.u32 [#allocation5], 4
      %s57 = int_to_ptr.vmem [resolvable:$true] %s56
      %59 = dma.hbm_to_vmem [thread:$0]  %s1, 128, %s57, [#allocation6]
    $region9: #{tpu_custom_call.1} parent=1 // pred_fallthru
      _
    // Predicated region
    $region10: #{tpu_custom_call.1} parent=1 // pred_check
      _
    $region11: #{tpu_custom_call.1} parent=1 // pred_check_branch
      %61 = sbr.rel (0) target = $region13
    $region12: #{tpu_custom_call.1} parent=1 // pred_region
      %s63 = ssub.s32 16, 16
      %64 = vsyncadd [#allocation6], %s63
      %s66 = sshll.u32 [#allocation7], 4
      %s67 = int_to_ptr.vmem [resolvable:$true] %s66
      %69 = dma.hbm_to_vmem [thread:$0]  %s2, 16, %s67, [#allocation6]
    $region13: #{tpu_custom_call.1} parent=1 // pred_fallthru
      _
    // Predicated region
    $region14: #{tpu_custom_call.1} parent=1 // pred_check
      _
    $region15: #{tpu_custom_call.1} parent=1 // pred_check_branch
      %71 = sbr.rel (0) target = $region17
    $region16: #{tpu_custom_call.1} parent=1 // pred_region
      %s73 = ssub.s32 16, 16
      %74 = vsyncadd [#allocation9], %s73
      %s76 = sshll.u32 [#allocation8], 4
      %s77 = int_to_ptr.vmem [resolvable:$true] %s76
      %79 = dma.hbm_to_vmem [thread:$0]  %s3, 16, %s77, [#allocation9]
    $region17: #{tpu_custom_call.1} parent=1 // pred_fallthru
      _
    // Predicated region
    $region18: #{tpu_custom_call.1} parent=1 // pred_check
      _
    $region19: #{tpu_custom_call.1} parent=1 // pred_check_branch
      %81 = sbr.rel (0) target = $region21
    $region20: #{tpu_custom_call.1} parent=1 // pred_region
      %s83 = ssub.s32 16, 16
      %84 = vsyncadd [#allocation9], %s83
      %s86 = sshll.u32 [#allocation10], 4
      %s87 = int_to_ptr.vmem [resolvable:$true] %s86
      %89 = dma.hbm_to_vmem [thread:$0]  %s4, 16, %s87, [#allocation9]
    $region21: #{tpu_custom_call.1} parent=1 // pred_fallthru
      _
    // Predicated region
    $region22: #{tpu_custom_call.1} parent=1 // pred_check
      _
    $region23: #{tpu_custom_call.1} parent=1 // pred_check_branch
      %91 = sbr.rel (0) target = $region25
    $region24: #{tpu_custom_call.1} parent=1 // pred_region
      %s93 = ssub.s32 32, 32
      %94 = vsyncadd [#allocation12], %s93
      %s96 = sshll.u32 [#allocation11], 4
      %s97 = int_to_ptr.vmem [resolvable:$true] %s96
      %99 = dma.hbm_to_vmem [thread:$0]  %s5, 32, %s97, [#allocation12]
    $region25: #{tpu_custom_call.1} parent=1 // pred_fallthru
      _
    // Predicated region
    $region26: #{tpu_custom_call.1} parent=1 // pred_check
      _
    $region27: #{tpu_custom_call.1} parent=1 // pred_check_branch
      %101 = sbr.rel (0) target = $region29
    $region28: #{tpu_custom_call.1} parent=1 // pred_region
      %s103 = ssub.s32 6144, 6144
      %104 = vsyncadd [#allocation12], %s103
      %s105 = sshll.u32 [#allocation13], 4
      %s106 = int_to_ptr.vmem [resolvable:$true] %s105
      %111 = dma.hbm_to_vmem [thread:$0]  %s6, 6144, %s106, [#allocation12], 192, 192, 12
    $region29: #{tpu_custom_call.1} parent=1 // pred_fallthru
      _
    // Predicated region
    $region30: #{tpu_custom_call.1} parent=1 // pred_check
      _
    $region31: #{tpu_custom_call.1} parent=1 // pred_check_branch
      %113 = sbr.rel (0) target = $region33
    $region32: #{tpu_custom_call.1} parent=1 // pred_region
      %s115 = ssub.s32 96, 96
      %116 = vsyncadd [#allocation15], %s115
      %s117 = sshll.u32 [#allocation14], 4
      %s118 = int_to_ptr.vmem [resolvable:$true] %s117
      %123 = dma.hbm_to_vmem [thread:$0]  %s7, 96, %s118, [#allocation15], 48, 48, 3
    $region33: #{tpu_custom_call.1} parent=1 // pred_fallthru
      _
    // Predicated region
    $region34: #{tpu_custom_call.1} parent=1 // pred_check
      _
    $region35: #{tpu_custom_call.1} parent=1 // pred_check_branch
      %125 = sbr.rel (0) target = $region37
    $region36: #{tpu_custom_call.1} parent=1 // pred_region
      %s127 = ssub.s32 2048, 2048
      %128 = vsyncadd [#allocation15], %s127
      %s129 = sshll.u32 [#allocation16], 4
      %s130 = int_to_ptr.vmem [resolvable:$true] %s129
      %135 = dma.hbm_to_vmem [thread:$0]  %s8, 2048, %s130, [#allocation15], 64, 64, 4
    $region37: #{tpu_custom_call.1} parent=1 // pred_fallthru
      _
    // Predicated region
    $region38: #{tpu_custom_call.1} parent=1 // pred_check
      _
    $region39: #{tpu_custom_call.1} parent=1 // pred_check_branch
      %137 = sbr.rel (0) target = $region41
    $region40: #{tpu_custom_call.1} parent=1 // pred_region
      %s139 = ssub.s32 32, 32
      %140 = vsyncadd [#allocation18], %s139
      %s141 = sshll.u32 [#allocation17], 4
      %s142 = int_to_ptr.vmem [resolvable:$true] %s141
      %147 = dma.hbm_to_vmem [thread:$0]  %s9, 32, %s142, [#allocation18], 16, 16, 1
    $region41: #{tpu_custom_call.1} parent=1 // pred_fallthru
      _
    // Predicated region
    $region42: #{tpu_custom_call.1} parent=1 // pred_check
      _
    $region43: #{tpu_custom_call.1} parent=1 // pred_check_branch
      %149 = sbr.rel (0) target = $region45
    $region44: #{tpu_custom_call.1} parent=1 // pred_region
      %s151 = ssub.s32 32, 32
      %152 = vsyncadd [#allocation18], %s151
      %s153 = sshll.u32 [#allocation19], 4
      %s154 = int_to_ptr.vmem [resolvable:$true] %s153
      %159 = dma.hbm_to_vmem [thread:$0]  %s10, 32, %s154, [#allocation18], 16, 16, 1
    $region45: #{tpu_custom_call.1} parent=1 // pred_fallthru
      _
    // Predicated region
    $region46: #{tpu_custom_call.1} parent=1 // pred_check
      _
    $region47: #{tpu_custom_call.1} parent=1 // pred_check_branch
      %161 = sbr.rel (0) target = $region49
    $region48: #{tpu_custom_call.1} parent=1 // pred_region
      %s163 = ssub.s32 32, 32
      %164 = vsyncadd [#allocation21], %s163
      %s165 = sshll.u32 [#allocation20], 4
      %s166 = int_to_ptr.vmem [resolvable:$true] %s165
      %171 = dma.hbm_to_vmem [thread:$0]  %s11, 32, %s166, [#allocation21], 16, 16, 1
    $region49: #{tpu_custom_call.1} parent=1 // pred_fallthru
      _
    // Predicated region
    $region50: #{tpu_custom_call.1} parent=1 // pred_check
      _
    $region51: #{tpu_custom_call.1} parent=1 // pred_check_branch
      %173 = sbr.rel (0) target = $region53
    $region52: #{tpu_custom_call.1} parent=1 // pred_region
      %s175 = ssub.s32 4096, 4096
      %176 = vsyncadd [#allocation21], %s175
      %s177 = sshll.u32 [#allocation22], 4
      %s178 = int_to_ptr.vmem [resolvable:$true] %s177
      %183 = dma.hbm_to_vmem [thread:$0]  %s12, 4096, %s178, [#allocation21], 128, 128, 8
    $region53: #{tpu_custom_call.1} parent=1 // pred_fallthru
      _
    // Predicated region
    $region54: #{tpu_custom_call.1} parent=1 // pred_check
      _
    $region55: #{tpu_custom_call.1} parent=1 // pred_check_branch
      %185 = sbr.rel (0) target = $region57
    $region56: #{tpu_custom_call.1} parent=1 // pred_region
      _
    $region57: #{tpu_custom_call.1} parent=1 // pred_fallthru
      _
    // Predicated region
    $region58: #{tpu_custom_call.1} parent=1 // pred_check
      _
    $region59: #{tpu_custom_call.1} parent=1 // pred_check_branch
      %187 = sbr.rel (0) target = $region61
    $region60: #{tpu_custom_call.1} parent=1 // pred_region
      %s189 = ssub.s32 4096, 4096
      %190 = vsyncadd [#allocation24], %s189
      %s191 = sshll.u32 [#allocation23], 4
      %s192 = int_to_ptr.vmem [resolvable:$true] %s191
      %197 = dma.hbm_to_vmem [thread:$0]  %s14, 4096, %s192, [#allocation24], 64, 64, 4
    $region61: #{tpu_custom_call.1} parent=1 // pred_fallthru
      _
    // Predicated region
    $region62: #{tpu_custom_call.1} parent=1 // pred_check
      _
    $region63: #{tpu_custom_call.1} parent=1 // pred_check_branch
      %199 = sbr.rel (0) target = $region65
    $region64: #{tpu_custom_call.1} parent=1 // pred_region
      %s201 = ssub.s32 32, 32
      %202 = vsyncadd [#allocation24], %s201
      %s203 = sshll.u32 [#allocation25], 4
      %s204 = int_to_ptr.vmem [resolvable:$true] %s203
      %209 = dma.hbm_to_vmem [thread:$0]  %s15, 32, %s204, [#allocation24], 16, 16, 1
    $region65: #{tpu_custom_call.1} parent=1 // pred_fallthru
      _
    // Predicated region
    $region66: #{tpu_custom_call.1} parent=1 // pred_check
      _
    $region67: #{tpu_custom_call.1} parent=1 // pred_check_branch
      %211 = sbr.rel (0) target = $region69
    $region68: #{tpu_custom_call.1} parent=1 // pred_region
      %s213 = ssub.s32 32, 32
      %214 = vsyncadd [#allocation27], %s213
      %s215 = sshll.u32 [#allocation26], 4
      %s216 = int_to_ptr.vmem [resolvable:$true] %s215
      %221 = dma.hbm_to_vmem [thread:$0]  %s16, 32, %s216, [#allocation27], 16, 16, 1
    $region69: #{tpu_custom_call.1} parent=1 // pred_fallthru
      _
    // Predicated region
    $region70: #{tpu_custom_call.1} parent=1 // pred_check
      _
    $region71: #{tpu_custom_call.1} parent=1 // pred_check_branch
      %223 = sbr.rel (0) target = $region73
    $region72: #{tpu_custom_call.1} parent=1 // pred_region
      %s225 = ssub.s32 32, 32
      %226 = vsyncadd [#allocation27], %s225
      %s227 = sshll.u32 [#allocation28], 4
      %s228 = int_to_ptr.vmem [resolvable:$true] %s227
      %233 = dma.hbm_to_vmem [thread:$0]  %s17, 32, %s228, [#allocation27], 16, 16, 1
    $region73: #{tpu_custom_call.1} parent=1 // pred_fallthru
      _
    // Predicated region
    $region74: #{tpu_custom_call.1} parent=1 // pred_check
      _
    $region75: #{tpu_custom_call.1} parent=1 // pred_check_branch
      %235 = sbr.rel (0) target = $region77
    $region76: #{tpu_custom_call.1} parent=1 // pred_region
      _
    $region77: #{tpu_custom_call.1} parent=1 // pred_fallthru
      _
    // Predicated region
    $region78: #{tpu_custom_call.1} parent=1 // pred_check
      _
    $region79: #{tpu_custom_call.1} parent=1 // pred_check_branch
      %237 = sbr.rel (0) target = $region81
    $region80: #{tpu_custom_call.1} parent=1 // pred_region
      _
    $region81: #{tpu_custom_call.1} parent=1 // pred_fallthru
      _
    // Predicated region
    $region82: #{tpu_custom_call.1} parent=1 // pred_check
      _
    $region83: #{tpu_custom_call.1} parent=1 // pred_check_branch
      %239 = sbr.rel (0) target = $region85
    $region84: #{tpu_custom_call.1} parent=1 // pred_region
      %s241 = ssub.s32 1024, 1024
      %242 = vsyncadd [#allocation30], %s241
      %s243 = sshll.u32 [#allocation29], 4
      %s244 = int_to_ptr.vmem [resolvable:$true] %s243
      %249 = dma.hbm_to_vmem [thread:$0]  %s20, 1024, %s244, [#allocation30], 64, 64, 4
    $region85: #{tpu_custom_call.1} parent=1 // pred_fallthru
      _
    // Predicated region
    $region86: #{tpu_custom_call.1} parent=1 // pred_check
      _
    $region87: #{tpu_custom_call.1} parent=1 // pred_check_branch
      %251 = sbr.rel (0) target = $region89
    $region88: #{tpu_custom_call.1} parent=1 // pred_region
      _
    $region89: #{tpu_custom_call.1} parent=1 // pred_fallthru
      _
    // Predicated region
    $region90: #{tpu_custom_call.1} parent=1 // pred_check
      _
    $region91: #{tpu_custom_call.1} parent=1 // pred_check_branch
      %253 = sbr.rel (0) target = $region93
    $region92: #{tpu_custom_call.1} parent=1 // pred_region
      %254 = dma.done [#allocation3], 256
    $region93: #{tpu_custom_call.1} parent=1 // pred_fallthru
      _
    // Predicated region
    $region94: #{tpu_custom_call.1} parent=1 // pred_check
      _
    $region95: #{tpu_custom_call.1} parent=1 // pred_check_branch
      %256 = sbr.rel (0) target = $region97
    $region96: #{tpu_custom_call.1} parent=1 // pred_region
      %257 = dma.done [#allocation6], 128
    $region97: #{tpu_custom_call.1} parent=1 // pred_fallthru
      _
    // Predicated region
    $region98: #{tpu_custom_call.1} parent=1 // pred_check
      _
    $region99: #{tpu_custom_call.1} parent=1 // pred_check_branch
      %259 = sbr.rel (0) target = $region101
    $region100: #{tpu_custom_call.1} parent=1 // pred_region
      %260 = dma.done [#allocation6], 16
    $region101: #{tpu_custom_call.1} parent=1 // pred_fallthru
      _
    // Predicated region
    $region102: #{tpu_custom_call.1} parent=1 // pred_check
      _
    $region103: #{tpu_custom_call.1} parent=1 // pred_check_branch
      %262 = sbr.rel (0) target = $region105
    $region104: #{tpu_custom_call.1} parent=1 // pred_region
      %263 = dma.done [#allocation9], 16
    $region105: #{tpu_custom_call.1} parent=1 // pred_fallthru
      _
    // Predicated region
    $region106: #{tpu_custom_call.1} parent=1 // pred_check
      _
    $region107: #{tpu_custom_call.1} parent=1 // pred_check_branch
      %265 = sbr.rel (0) target = $region109
    $region108: #{tpu_custom_call.1} parent=1 // pred_region
      %266 = dma.done [#allocation9], 16
    $region109: #{tpu_custom_call.1} parent=1 // pred_fallthru
      _
    // Predicated region
    $region110: #{tpu_custom_call.1} parent=1 // pred_check
      _
    $region111: #{tpu_custom_call.1} parent=1 // pred_check_branch
      %268 = sbr.rel (0) target = $region113
    $region112: #{tpu_custom_call.1} parent=1 // pred_region
      %269 = dma.done [#allocation12], 32
    $region113: #{tpu_custom_call.1} parent=1 // pred_fallthru
      _
    // Predicated region
    $region114: #{tpu_custom_call.1} parent=1 // pred_check
      _
    $region115: #{tpu_custom_call.1} parent=1 // pred_check_branch
      %271 = sbr.rel (0) target = $region117
    $region116: #{tpu_custom_call.1} parent=1 // pred_region
      %272 = dma.done [#allocation12], 6144
    $region117: #{tpu_custom_call.1} parent=1 // pred_fallthru
      _
    // Predicated region
    $region118: #{tpu_custom_call.1} parent=1 // pred_check
      _
    $region119: #{tpu_custom_call.1} parent=1 // pred_check_branch
      %274 = sbr.rel (0) target = $region121
    $region120: #{tpu_custom_call.1} parent=1 // pred_region
      %275 = dma.done [#allocation15], 96
    $region121: #{tpu_custom_call.1} parent=1 // pred_fallthru
      _
    // Predicated region
    $region122: #{tpu_custom_call.1} parent=1 // pred_check
      _
    $region123: #{tpu_custom_call.1} parent=1 // pred_check_branch
      %277 = sbr.rel (0) target = $region125
    $region124: #{tpu_custom_call.1} parent=1 // pred_region
      %278 = dma.done [#allocation15], 2048
    $region125: #{tpu_custom_call.1} parent=1 // pred_fallthru
      _
    // Predicated region
    $region126: #{tpu_custom_call.1} parent=1 // pred_check
      _
    $region127: #{tpu_custom_call.1} parent=1 // pred_check_branch
      %280 = sbr.rel (0) target = $region129
    $region128: #{tpu_custom_call.1} parent=1 // pred_region
      %281 = dma.done [#allocation18], 32
    $region129: #{tpu_custom_call.1} parent=1 // pred_fallthru
      _
    // Predicated region
    $region130: #{tpu_custom_call.1} parent=1 // pred_check
      _
    $region131: #{tpu_custom_call.1} parent=1 // pred_check_branch
      %283 = sbr.rel (0) target = $region133
    $region132: #{tpu_custom_call.1} parent=1 // pred_region
      %284 = dma.done [#allocation18], 32
    $region133: #{tpu_custom_call.1} parent=1 // pred_fallthru
      _
    // Predicated region
    $region134: #{tpu_custom_call.1} parent=1 // pred_check
      _
    $region135: #{tpu_custom_call.1} parent=1 // pred_check_branch
      %286 = sbr.rel (0) target = $region137
    $region136: #{tpu_custom_call.1} parent=1 // pred_region
      %287 = dma.done [#allocation21], 32
    $region137: #{tpu_custom_call.1} parent=1 // pred_fallthru
      _
    // Predicated region
    $region138: #{tpu_custom_call.1} parent=1 // pred_check
      _
    $region139: #{tpu_custom_call.1} parent=1 // pred_check_branch
      %289 = sbr.rel (0) target = $region141
    $region140: #{tpu_custom_call.1} parent=1 // pred_region
      %290 = dma.done [#allocation21], 4096
    $region141: #{tpu_custom_call.1} parent=1 // pred_fallthru
      _
    // Predicated region
    $region142: #{tpu_custom_call.1} parent=1 // pred_check
      _
    $region143: #{tpu_custom_call.1} parent=1 // pred_check_branch
      %292 = sbr.rel (0) target = $region145
    $region144: #{tpu_custom_call.1} parent=1 // pred_region
      %293 = dma.done [#allocation24], 4096
    $region145: #{tpu_custom_call.1} parent=1 // pred_fallthru
      _
    // Predicated region
    $region146: #{tpu_custom_call.1} parent=1 // pred_check
      _
    $region147: #{tpu_custom_call.1} parent=1 // pred_check_branch
      %295 = sbr.rel (0) target = $region149
    $region148: #{tpu_custom_call.1} parent=1 // pred_region
      %296 = dma.done [#allocation24], 32
    $region149: #{tpu_custom_call.1} parent=1 // pred_fallthru
      _
    // Predicated region
    $region150: #{tpu_custom_call.1} parent=1 // pred_check
      _
    $region151: #{tpu_custom_call.1} parent=1 // pred_check_branch
      %298 = sbr.rel (0) target = $region153
    $region152: #{tpu_custom_call.1} parent=1 // pred_region
      %299 = dma.done [#allocation27], 32
    $region153: #{tpu_custom_call.1} parent=1 // pred_fallthru
      _
    // Predicated region
    $region154: #{tpu_custom_call.1} parent=1 // pred_check
      _
    $region155: #{tpu_custom_call.1} parent=1 // pred_check_branch
      %301 = sbr.rel (0) target = $region157
    $region156: #{tpu_custom_call.1} parent=1 // pred_region
      %302 = dma.done [#allocation27], 32
    $region157: #{tpu_custom_call.1} parent=1 // pred_fallthru
      _
    // Predicated region
    $region158: #{tpu_custom_call.1} parent=1 // pred_check
      _
    $region159: #{tpu_custom_call.1} parent=1 // pred_check_branch
      %304 = sbr.rel (0) target = $region161
    $region160: #{tpu_custom_call.1} parent=1 // pred_region
      %305 = dma.done [#allocation30], 1024
    $region161: #{tpu_custom_call.1} parent=1 // pred_fallthru
      _
    %v307 = vld [vmem:[#allocation2] sm:$0xff]
    %v308 = vld [vmem:[#allocation2 + $0x8] sm:$0xff]
    %v309 = vld [vmem:[#allocation5] sm:$0xff]
    %v310 = vadd.f32 %v307, %v309
    %v311 = vadd.f32 %v308, %v309
    %v312 = vld [vmem:[#allocation7] sm:$0x1]
    %v314 = vlaneseq
    %v315 = vshrl.u32 %v314, 7
    %v316 = vsub.s32 0, %v315
    %v317 = vrot.slane %v312, %v316
    %v319 = vadd.f32 %v310, %v317
    %v320 = vadd.f32 %v311, %v317
    %321 = vadd.xlane.f32.xlu0 %v319
    %v322 = vpop.xlane.xlu0 %321
    %323 = vadd.xlane.f32.xlu0 %v320
    %v324 = vpop.xlane.xlu0 %323
    %v325 = vrcp.pop 128.0
    %v326 = vmul.f32 %v322, %v325
    %v327 = vmul.f32 %v324, %v325
    %v328 = vsub.f32 %v319, %v326
    %v329 = vsub.f32 %v320, %v327
    %v330 = vmul.f32 %v328, %v328
    %v331 = vmul.f32 %v329, %v329
    %332 = vadd.xlane.f32.xlu0 %v330
    %v333 = vpop.xlane.xlu0 %332
    %334 = vadd.xlane.f32.xlu0 %v331
    %v335 = vpop.xlane.xlu0 %334
    %v336 = vmul.f32 %v333, %v325
    %v337 = vmul.f32 %v335, %v325
    %v338 = vadd.f32 %v336, 1e-12
    %v339 = vadd.f32 %v337, 1e-12
    %v340 = vrsqrt.pop %v338
    %v341 = vrsqrt.pop %v339
    %v342 = vmul.f32 %v328, %v340
    %v343 = vmul.f32 %v329, %v341
    %v344 = vld [vmem:[#allocation8] sm:$0x1]
    %v346 = vlaneseq
    %v347 = vshrl.u32 %v346, 7
    %v348 = vsub.s32 0, %v347
    %v349 = vrot.slane %v344, %v348
    %v351 = vmul.f32 %v342, %v349
    %v352 = vmul.f32 %v343, %v349
    %v353 = vld [vmem:[#allocation10] sm:$0x1]
    %v355 = vlaneseq
    %v356 = vshrl.u32 %v355, 7
    %v357 = vsub.s32 0, %v356
    %v358 = vrot.slane %v353, %v357
    %v360 = vadd.f32 %v351, %v358
    %v361 = vadd.f32 %v352, %v358
    %v362 = vld [vmem:[#allocation11] sm:$0x3]
    %v365 = vunpack.c.l.s4 1966171168
    %v366 = vunpack.c.0.s8 %v365
    %v367 = vlaneseq
    %v368 = vshrl.u32 %v367, 7
    %v369 = vsub.s32 %v366, %v368
    %v370 = vrot.slane %v362, %v369
    %v371 = vcombine.high %v370, %v370
    %v373 = vunpack.c.l.s4 1966171168
    %v374 = vunpack.c.0.s8 %v373
    %v375 = vlaneseq
    %v376 = vshrl.u32 %v375, 7
    %v377 = vsub.s32 %v374, %v376
    %v378 = vrot.slane %v370, %v377
    %v380 = vunpack.c.l.s4 1966171168
    %v381 = vunpack.c.0.s8 %v380
    %v382 = vlaneseq
    %v383 = vshrl.u32 %v382, 7
    %v384 = vsub.s32 %v381, %v383
    %v385 = vrot.slane %v371, %v384
    %v386 = vpack.c.bf16 %v361, %v360
    %v387 = vld [vmem:[#allocation13] sm:$0xff]
    %v388 = vld [vmem:[#allocation13 + $0x8] sm:$0xf]
    %v389 = vld [vmem:[#allocation13 + $0xc] sm:$0xff]
    %v390 = vld [vmem:[#allocation13 + $0x14] sm:$0xf]
    %v391 = vld [vmem:[#allocation13 + $0x18] sm:$0xff]
    %v392 = vld [vmem:[#allocation13 + $0x20] sm:$0xf]
    %v393 = vld [vmem:[#allocation13 + $0x24] sm:$0xff]
    %v394 = vld [vmem:[#allocation13 + $0x2c] sm:$0xf]
    %v395 = vld [vmem:[#allocation13 + $0x30] sm:$0xff]
    %v396 = vld [vmem:[#allocation13 + $0x38] sm:$0xf]
    %v397 = vld [vmem:[#allocation13 + $0x3c] sm:$0xff]
    %v398 = vld [vmem:[#allocation13 + $0x44] sm:$0xf]
    %v399 = vld [vmem:[#allocation13 + $0x48] sm:$0xff]
    %v400 = vld [vmem:[#allocation13 + $0x50] sm:$0xf]
    %v401 = vld [vmem:[#allocation13 + $0x54] sm:$0xff]
    %v402 = vld [vmem:[#allocation13 + $0x5c] sm:$0xf]
    %v403 = vld [vmem:[#allocation13 + $0x60] sm:$0xff]
    %v404 = vld [vmem:[#allocation13 + $0x68] sm:$0xf]
    %v405 = vld [vmem:[#allocation13 + $0x6c] sm:$0xff]
    %v406 = vld [vmem:[#allocation13 + $0x74] sm:$0xf]
    %v407 = vld [vmem:[#allocation13 + $0x78] sm:$0xff]
    %v408 = vld [vmem:[#allocation13 + $0x80] sm:$0xf]
    %v409 = vld [vmem:[#allocation13 + $0x84] sm:$0xff]
    %v410 = vld [vmem:[#allocation13 + $0x8c] sm:$0xf]
    %v411 = vld [vmem:[#allocation13 + $0x90] sm:$0xff]
    %v412 = vld [vmem:[#allocation13 + $0x98] sm:$0xf]
    %v413 = vld [vmem:[#allocation13 + $0x9c] sm:$0xff]
    %v414 = vld [vmem:[#allocation13 + $0xa4] sm:$0xf]
    %v415 = vld [vmem:[#allocation13 + $0xa8] sm:$0xff]
    %v416 = vld [vmem:[#allocation13 + $0xb0] sm:$0xf]
    %v417 = vld [vmem:[#allocation13 + $0xb4] sm:$0xff]
    %v418 = vld [vmem:[#allocation13 + $0xbc] sm:$0xf]
    %v419 = vld [vmem:[#allocation14] sm:$0x7]
    %v421 = vlaneseq
    %v422 = vshrl.u32 %v421, 7
    %v423 = vsub.s32 0, %v422
    %v424 = vrot.slane %v419, %v423
    %v425 = vlaneseq
    %v426 = vshrl.u32 %v425, 7
    %v427 = vsub.s32 1, %v426
    %v428 = vrot.slane %v419, %v427
    %v429 = vlaneseq
    %v430 = vshrl.u32 %v429, 7
    %v431 = vsub.s32 2, %v430
    %v432 = vrot.slane %v419, %v431
    %v468 = vunpack.c.l.b16 %v387
    %v469 = vunpack.c.h.b16 %v387
    %v470 = vunpack.c.l.b16 %v388
    %v471 = vunpack.c.l.b16 %v389
    %v472 = vunpack.c.h.b16 %v389
    %v473 = vunpack.c.l.b16 %v390
    %v474 = vunpack.c.l.b16 %v391
    %v475 = vunpack.c.h.b16 %v391
    %v476 = vunpack.c.l.b16 %v392
    %v477 = vunpack.c.l.b16 %v393
    %v478 = vunpack.c.h.b16 %v393
    %v479 = vunpack.c.l.b16 %v394
    %v480 = vunpack.c.l.b16 %v395
    %v481 = vunpack.c.h.b16 %v395
    %v482 = vunpack.c.l.b16 %v396
    %v483 = vunpack.c.l.b16 %v397
    %v484 = vunpack.c.h.b16 %v397
    %v485 = vunpack.c.l.b16 %v398
    %v486 = vunpack.c.l.b16 %v399
    %v487 = vunpack.c.h.b16 %v399
    %v488 = vunpack.c.l.b16 %v400
    %v489 = vunpack.c.l.b16 %v401
    %v490 = vunpack.c.h.b16 %v401
    %v491 = vunpack.c.l.b16 %v402
    %v492 = vunpack.c.l.b16 %v403
    %v493 = vunpack.c.h.b16 %v403
    %v494 = vunpack.c.l.b16 %v404
    %v495 = vunpack.c.l.b16 %v405
    %v496 = vunpack.c.h.b16 %v405
    %v497 = vunpack.c.l.b16 %v406
    %v498 = vunpack.c.l.b16 %v407
    %v499 = vunpack.c.h.b16 %v407
    %v500 = vunpack.c.l.b16 %v408
    %v501 = vunpack.c.l.b16 %v409
    %v502 = vunpack.c.h.b16 %v409
    %v503 = vunpack.c.l.b16 %v410
    %v504 = vunpack.c.l.b16 %v411
    %v505 = vunpack.c.h.b16 %v411
    %v506 = vunpack.c.l.b16 %v412
    %v507 = vunpack.c.l.b16 %v413
    %v508 = vunpack.c.h.b16 %v413
    %v509 = vunpack.c.l.b16 %v414
    %v510 = vunpack.c.l.b16 %v415
    %v511 = vunpack.c.h.b16 %v415
    %v512 = vunpack.c.l.b16 %v416
    %v513 = vunpack.c.l.b16 %v417
    %v514 = vunpack.c.h.b16 %v417
    %v515 = vunpack.c.l.b16 %v418
    %v516 = vpack.c.b16 %v471, %v468
    %v517 = vpack.c.b16 %v472, %v469
    %v518 = vpack.c.b16 %v473, %v470
    %v519 = vpack.c.b16 %v477, %v474
    %v520 = vpack.c.b16 %v478, %v475
    %v521 = vpack.c.b16 %v479, %v476
    %v522 = vpack.c.b16 %v483, %v480
    %v523 = vpack.c.b16 %v484, %v481
    %v524 = vpack.c.b16 %v485, %v482
    %v525 = vpack.c.b16 %v489, %v486
    %v526 = vpack.c.b16 %v490, %v487
    %v527 = vpack.c.b16 %v491, %v488
    %v528 = vpack.c.b16 %v495, %v492
    %v529 = vpack.c.b16 %v496, %v493
    %v530 = vpack.c.b16 %v497, %v494
    %v531 = vpack.c.b16 %v501, %v498
    %v532 = vpack.c.b16 %v502, %v499
    %v533 = vpack.c.b16 %v503, %v500
    %v534 = vpack.c.b16 %v507, %v504
    %v535 = vpack.c.b16 %v508, %v505
    %v536 = vpack.c.b16 %v509, %v506
    %v537 = vpack.c.b16 %v513, %v510
    %v538 = vpack.c.b16 %v514, %v511
    %v539 = vpack.c.b16 %v515, %v512
    %564 = vmatprep.subr.bf16.mxu0 %v517
    %565 = vmatpush1.bf16.msra.mxu0 %v516
    %566 = vmatprep.subr.bf16.mxu0 %v520
    %567 = vmatpush1.bf16.msra.mxu0 %v519
    %568 = vmatprep.subr.bf16.mxu0 %v523
    %569 = vmatpush1.bf16.msra.mxu0 %v522
    %570 = vmatprep.subr.bf16.mxu0 %v526
    %571 = vmatpush1.bf16.msra.mxu0 %v525
    %572 = vmatprep.subr.bf16.mxu0 %v529
    %573 = vmatpush1.bf16.msra.mxu0 %v528
    %574 = vmatprep.subr.bf16.mxu0 %v532
    %575 = vmatpush1.bf16.msra.mxu0 %v531
    %576 = vmatprep.subr.bf16.mxu0 %v535
    %577 = vmatpush1.bf16.msra.mxu0 %v534
    %578 = vmatprep.subr.bf16.mxu0 %v538
    %579 = vmatpush1.bf16.msra.mxu0 %v537
    %580 = vmatprep.subr.bf16.mxu0 0
    %581 = vmatpush1.bf16.msra.mxu0 0
    %582 = vmatprep.subr.bf16.mxu0 0
    %583 = vmatpush1.bf16.msra.mxu0 0
    %584 = vmatprep.subr.bf16.mxu0 0
    %585 = vmatpush1.bf16.msra.mxu0 0
    %586 = vmatprep.subr.bf16.mxu0 0
    %587 = vmatpush1.bf16.msra.mxu0 0
    %588 = vmatprep.subr.bf16.mxu0 0
    %589 = vmatpush1.bf16.msra.mxu0 0
    %590 = vmatprep.subr.bf16.mxu0 0
    %591 = vmatpush1.bf16.msra.mxu0 0
    %592 = vmatprep.subr.bf16.mxu0 0
    %593 = vmatpush1.bf16.msra.mxu0 0
    %594 = vmatprep.subr.bf16.mxu0 0
    %595 = vmatpush1.bf16.msra.mxu0 0
    %596 = vmatprep.mubr.bf16.mxu0 0
    %597 = vmatmul.mubr.bf16.gmra.mrb[0].mxu0 %v386
    %v598 = vpop.f32.mrb[0].mxu0
    %v599 = vadd.f32 %v424, %v598
    %v600 = vpop.f32.mrb[0].mxu0
    %v601 = vadd.f32 %v428, %v600
    %v602 = vpop.f32.mrb[0].mxu0
    %v603 = vadd.f32 %v424, %v602
    %v604 = vpop.f32.mrb[0].mxu0
    %v605 = vadd.f32 %v428, %v604
    %606 = vdwg.mxu0
    %607 = vmatprep.subr.bf16.mxu0 0
    %608 = vmatpush1.bf16.msra.mxu0 %v518
    %609 = vmatprep.subr.bf16.mxu0 0
    %610 = vmatpush1.bf16.msra.mxu0 %v521
    %611 = vmatprep.subr.bf16.mxu0 0
    %612 = vmatpush1.bf16.msra.mxu0 %v524
    %613 = vmatprep.subr.bf16.mxu0 0
    %614 = vmatpush1.bf16.msra.mxu0 %v527
    %615 = vmatprep.subr.bf16.mxu0 0
    %616 = vmatpush1.bf16.msra.mxu0 %v530
    %617 = vmatprep.subr.bf16.mxu0 0
    %618 = vmatpush1.bf16.msra.mxu0 %v533
    %619 = vmatprep.subr.bf16.mxu0 0
    %620 = vmatpush1.bf16.msra.mxu0 %v536
    %621 = vmatprep.subr.bf16.mxu0 0
    %622 = vmatpush1.bf16.msra.mxu0 %v539
    %623 = vmatprep.subr.bf16.mxu0 0
    %624 = vmatpush1.bf16.msra.mxu0 0
    %625 = vmatprep.subr.bf16.mxu0 0
    %626 = vmatpush1.bf16.msra.mxu0 0
    %627 = vmatprep.subr.bf16.mxu0 0
    %628 = vmatpush1.bf16.msra.mxu0 0
    %629 = vmatprep.subr.bf16.mxu0 0
    %630 = vmatpush1.bf16.msra.mxu0 0
    %631 = vmatprep.subr.bf16.mxu0 0
    %632 = vmatpush1.bf16.msra.mxu0 0
    %633 = vmatprep.subr.bf16.mxu0 0
    %634 = vmatpush1.bf16.msra.mxu0 0
    %635 = vmatprep.subr.bf16.mxu0 0
    %636 = vmatpush1.bf16.msra.mxu0 0
    %637 = vmatprep.subr.bf16.mxu0 0
    %638 = vmatpush1.bf16.msra.mxu0 0
    %639 = vmatprep.mubr.bf16.mxu0 0
    %640 = vmatmul.mubr.bf16.gmra.mrb[0].mxu0 %v386
    %v641 = vpop.f32.mrb[0].mxu0
    %v642 = vadd.f32 %v432, %v641
    %v643 = vpop.f32.mrb[0].mxu0
    %v644 = vpop.f32.mrb[0].mxu0
    %v645 = vadd.f32 %v432, %v644
    %v646 = vpop.f32.mrb[0].mxu0
    %647 = vdwg.mxu0
    %650 = vrot.lane.b32.xlu0 %v599, 64
    %v651 = vpop.permute.xlu0 %650
    %652 = vrot.lane.b32.xlu0 %v603, 64
    %v653 = vpop.permute.xlu0 %652
    %v656 = vcombine.high %v599, 0.0
    %v658 = vunpack.c.l.s4 1983009808
    %v659 = vunpack.c.0.s8 %v658
    %v660 = vlaneseq
    %v661 = vshrl.u32 %v660, 7
    %v662 = vsub.s32 %v659, %v661
    %v663 = vrot.slane %v599, %v662
    %v665 = vunpack.c.l.s4 1983009808
    %v666 = vunpack.c.0.s8 %v665
    %v667 = vlaneseq
    %v668 = vshrl.u32 %v667, 7
    %v669 = vsub.s32 %v666, %v668
    %v670 = vrot.slane %v656, %v669
    %v671 = vcombine.high %v651, 0.0
    %v673 = vunpack.c.l.s4 1983009808
    %v674 = vunpack.c.0.s8 %v673
    %v675 = vlaneseq
    %v676 = vshrl.u32 %v675, 7
    %v677 = vsub.s32 %v674, %v676
    %v678 = vrot.slane %v651, %v677
    %v680 = vunpack.c.l.s4 1983009808
    %v681 = vunpack.c.0.s8 %v680
    %v682 = vlaneseq
    %v683 = vshrl.u32 %v682, 7
    %v684 = vsub.s32 %v681, %v683
    %v685 = vrot.slane %v671, %v684
    %v686 = vcombine.low %v663, %v678
    %v687 = vcombine.high %v663, %v678
    %v689 = vunpack.c.l.s4 1934713408
    %v690 = vunpack.c.0.s8 %v689
    %v691 = vlaneseq
    %v692 = vshrl.u32 %v691, 7
    %v693 = vsub.s32 %v690, %v692
    %v694 = vrot.slane %v686, %v693
    %v696 = vunpack.c.l.s4 1934713408
    %v697 = vunpack.c.0.s8 %v696
    %v698 = vlaneseq
    %v699 = vshrl.u32 %v698, 7
    %v700 = vsub.s32 %v697, %v699
    %v701 = vrot.slane %v687, %v700
    %v702 = vcombine.low %v670, %v685
    %v703 = vcombine.high %v670, %v685
    %v705 = vunpack.c.l.s4 1934713408
    %v706 = vunpack.c.0.s8 %v705
    %v707 = vlaneseq
    %v708 = vshrl.u32 %v707, 7
    %v709 = vsub.s32 %v706, %v708
    %v710 = vrot.slane %v702, %v709
    %v712 = vunpack.c.l.s4 1934713408
    %v713 = vunpack.c.0.s8 %v712
    %v714 = vlaneseq
    %v715 = vshrl.u32 %v714, 7
    %v716 = vsub.s32 %v713, %v715
    %v717 = vrot.slane %v703, %v716
    %v718 = vcombine.high %v694, 0.0
    %v719 = vcombine.high %v701, 0.0
    %v720 = vcombine.high %v710, 0.0
    %v721 = vcombine.high %v717, 0.0
    %v722 = vcombine.high %v603, 0.0
    %v724 = vunpack.c.l.s4 1983009808
    %v725 = vunpack.c.0.s8 %v724
    %v726 = vlaneseq
    %v727 = vshrl.u32 %v726, 7
    %v728 = vsub.s32 %v725, %v727
    %v729 = vrot.slane %v603, %v728
    %v731 = vunpack.c.l.s4 1983009808
    %v732 = vunpack.c.0.s8 %v731
    %v733 = vlaneseq
    %v734 = vshrl.u32 %v733, 7
    %v735 = vsub.s32 %v732, %v734
    %v736 = vrot.slane %v722, %v735
    %v737 = vcombine.high %v653, 0.0
    %v739 = vunpack.c.l.s4 1983009808
    %v740 = vunpack.c.0.s8 %v739
    %v741 = vlaneseq
    %v742 = vshrl.u32 %v741, 7
    %v743 = vsub.s32 %v740, %v742
    %v744 = vrot.slane %v653, %v743
    %v746 = vunpack.c.l.s4 1983009808
    %v747 = vunpack.c.0.s8 %v746
    %v748 = vlaneseq
    %v749 = vshrl.u32 %v748, 7
    %v750 = vsub.s32 %v747, %v749
    %v751 = vrot.slane %v737, %v750
    %v752 = vcombine.low %v729, %v744
    %v753 = vcombine.high %v729, %v744
    %v755 = vunpack.c.l.s4 1934713408
    %v756 = vunpack.c.0.s8 %v755
    %v757 = vlaneseq
    %v758 = vshrl.u32 %v757, 7
    %v759 = vsub.s32 %v756, %v758
    %v760 = vrot.slane %v752, %v759
    %v762 = vunpack.c.l.s4 1934713408
    %v763 = vunpack.c.0.s8 %v762
    %v764 = vlaneseq
    %v765 = vshrl.u32 %v764, 7
    %v766 = vsub.s32 %v763, %v765
    %v767 = vrot.slane %v753, %v766
    %v768 = vcombine.low %v736, %v751
    %v769 = vcombine.high %v736, %v751
    %v771 = vunpack.c.l.s4 1934713408
    %v772 = vunpack.c.0.s8 %v771
    %v773 = vlaneseq
    %v774 = vshrl.u32 %v773, 7
    %v775 = vsub.s32 %v772, %v774
    %v776 = vrot.slane %v768, %v775
    %v778 = vunpack.c.l.s4 1934713408
    %v779 = vunpack.c.0.s8 %v778
    %v780 = vlaneseq
    %v781 = vshrl.u32 %v780, 7
    %v782 = vsub.s32 %v779, %v781
    %v783 = vrot.slane %v769, %v782
    %v784 = vcombine.high %v760, 0.0
    %v785 = vcombine.high %v767, 0.0
    %v786 = vcombine.high %v776, 0.0
    %v787 = vcombine.high %v783, 0.0
    %v788 = vcombine.low %v694, %v701
    %v790 = vunpack.c.l.s4 1983009808
    %v791 = vunpack.c.0.s8 %v790
    %v792 = vlaneseq
    %v793 = vshrl.u32 %v792, 7
    %v794 = vsub.s32 %v791, %v793
    %v795 = vrot.slane %v788, %v794
    %v796 = vcombine.low %v718, %v719
    %v798 = vunpack.c.l.s4 1983009808
    %v799 = vunpack.c.0.s8 %v798
    %v800 = vlaneseq
    %v801 = vshrl.u32 %v800, 7
    %v802 = vsub.s32 %v799, %v801
    %v803 = vrot.slane %v796, %v802
    %v804 = vcombine.low %v710, %v717
    %v806 = vunpack.c.l.s4 1983009808
    %v807 = vunpack.c.0.s8 %v806
    %v808 = vlaneseq
    %v809 = vshrl.u32 %v808, 7
    %v810 = vsub.s32 %v807, %v809
    %v811 = vrot.slane %v804, %v810
    %v812 = vcombine.low %v720, %v721
    %v814 = vunpack.c.l.s4 1983009808
    %v815 = vunpack.c.0.s8 %v814
    %v816 = vlaneseq
    %v817 = vshrl.u32 %v816, 7
    %v818 = vsub.s32 %v815, %v817
    %v819 = vrot.slane %v812, %v818
    %v820 = vcombine.low %v795, %v803
    %v822 = vunpack.c.l.s4 1934713408
    %v823 = vunpack.c.0.s8 %v822
    %v824 = vlaneseq
    %v825 = vshrl.u32 %v824, 7
    %v826 = vsub.s32 %v823, %v825
    %v827 = vrot.slane %v820, %v826
    %v828 = vcombine.low %v811, %v819
    %v830 = vunpack.c.l.s4 1934713408
    %v831 = vunpack.c.0.s8 %v830
    %v832 = vlaneseq
    %v833 = vshrl.u32 %v832, 7
    %v834 = vsub.s32 %v831, %v833
    %v835 = vrot.slane %v828, %v834
    %v836 = vcombine.low %v827, %v835
    %v837 = vcombine.high %v827, %v835
    %v838 = vcombine.low %v760, %v767
    %v840 = vunpack.c.l.s4 1983009808
    %v841 = vunpack.c.0.s8 %v840
    %v842 = vlaneseq
    %v843 = vshrl.u32 %v842, 7
    %v844 = vsub.s32 %v841, %v843
    %v845 = vrot.slane %v838, %v844
    %v846 = vcombine.low %v784, %v785
    %v848 = vunpack.c.l.s4 1983009808
    %v849 = vunpack.c.0.s8 %v848
    %v850 = vlaneseq
    %v851 = vshrl.u32 %v850, 7
    %v852 = vsub.s32 %v849, %v851
    %v853 = vrot.slane %v846, %v852
    %v854 = vcombine.low %v776, %v783
    %v856 = vunpack.c.l.s4 1983009808
    %v857 = vunpack.c.0.s8 %v856
    %v858 = vlaneseq
    %v859 = vshrl.u32 %v858, 7
    %v860 = vsub.s32 %v857, %v859
    %v861 = vrot.slane %v854, %v860
    %v862 = vcombine.low %v786, %v787
    %v864 = vunpack.c.l.s4 1983009808
    %v865 = vunpack.c.0.s8 %v864
    %v866 = vlaneseq
    %v867 = vshrl.u32 %v866, 7
    %v868 = vsub.s32 %v865, %v867
    %v869 = vrot.slane %v862, %v868
    %v870 = vcombine.low %v845, %v853
    %v872 = vunpack.c.l.s4 1934713408
    %v873 = vunpack.c.0.s8 %v872
    %v874 = vlaneseq
    %v875 = vshrl.u32 %v874, 7
    %v876 = vsub.s32 %v873, %v875
    %v877 = vrot.slane %v870, %v876
    %v878 = vcombine.low %v861, %v869
    %v880 = vunpack.c.l.s4 1934713408
    %v881 = vunpack.c.0.s8 %v880
    %v882 = vlaneseq
    %v883 = vshrl.u32 %v882, 7
    %v884 = vsub.s32 %v881, %v883
    %v885 = vrot.slane %v878, %v884
    %v886 = vcombine.low %v877, %v885
    %v887 = vcombine.high %v877, %v885
    %v888 = vpack.c.bf16 %v836, %v836
    %v889 = vpack.c.bf16 %v837, %v837
    %v890 = vpack.c.bf16 %v886, %v886
    %v891 = vpack.c.bf16 %v887, %v887
    %894 = vrot.lane.b32.xlu0 %v601, 64
    %v895 = vpop.permute.xlu0 %894
    %896 = vrot.lane.b32.xlu0 %v605, 64
    %v897 = vpop.permute.xlu0 %896
    %v900 = vcombine.high %v601, 0.0
    %v902 = vunpack.c.l.s4 1983009808
    %v903 = vunpack.c.0.s8 %v902
    %v904 = vlaneseq
    %v905 = vshrl.u32 %v904, 7
    %v906 = vsub.s32 %v903, %v905
    %v907 = vrot.slane %v601, %v906
    %v909 = vunpack.c.l.s4 1983009808
    %v910 = vunpack.c.0.s8 %v909
    %v911 = vlaneseq
    %v912 = vshrl.u32 %v911, 7
    %v913 = vsub.s32 %v910, %v912
    %v914 = vrot.slane %v900, %v913
    %v915 = vcombine.high %v895, 0.0
    %v917 = vunpack.c.l.s4 1983009808
    %v918 = vunpack.c.0.s8 %v917
    %v919 = vlaneseq
    %v920 = vshrl.u32 %v919, 7
    %v921 = vsub.s32 %v918, %v920
    %v922 = vrot.slane %v895, %v921
    %v924 = vunpack.c.l.s4 1983009808
    %v925 = vunpack.c.0.s8 %v924
    %v926 = vlaneseq
    %v927 = vshrl.u32 %v926, 7
    %v928 = vsub.s32 %v925, %v927
    %v929 = vrot.slane %v915, %v928
    %v930 = vcombine.low %v907, %v922
    %v931 = vcombine.high %v907, %v922
    %v933 = vunpack.c.l.s4 1934713408
    %v934 = vunpack.c.0.s8 %v933
    %v935 = vlaneseq
    %v936 = vshrl.u32 %v935, 7
    %v937 = vsub.s32 %v934, %v936
    %v938 = vrot.slane %v930, %v937
    %v940 = vunpack.c.l.s4 1934713408
    %v941 = vunpack.c.0.s8 %v940
    %v942 = vlaneseq
    %v943 = vshrl.u32 %v942, 7
    %v944 = vsub.s32 %v941, %v943
    %v945 = vrot.slane %v931, %v944
    %v946 = vcombine.low %v914, %v929
    %v947 = vcombine.high %v914, %v929
    %v949 = vunpack.c.l.s4 1934713408
    %v950 = vunpack.c.0.s8 %v949
    %v951 = vlaneseq
    %v952 = vshrl.u32 %v951, 7
    %v953 = vsub.s32 %v950, %v952
    %v954 = vrot.slane %v946, %v953
    %v956 = vunpack.c.l.s4 1934713408
    %v957 = vunpack.c.0.s8 %v956
    %v958 = vlaneseq
    %v959 = vshrl.u32 %v958, 7
    %v960 = vsub.s32 %v957, %v959
    %v961 = vrot.slane %v947, %v960
    %v962 = vcombine.high %v938, 0.0
    %v963 = vcombine.high %v945, 0.0
    %v964 = vcombine.high %v954, 0.0
    %v965 = vcombine.high %v961, 0.0
    %v966 = vcombine.high %v605, 0.0
    %v968 = vunpack.c.l.s4 1983009808
    %v969 = vunpack.c.0.s8 %v968
    %v970 = vlaneseq
    %v971 = vshrl.u32 %v970, 7
    %v972 = vsub.s32 %v969, %v971
    %v973 = vrot.slane %v605, %v972
    %v975 = vunpack.c.l.s4 1983009808
    %v976 = vunpack.c.0.s8 %v975
    %v977 = vlaneseq
    %v978 = vshrl.u32 %v977, 7
    %v979 = vsub.s32 %v976, %v978
    %v980 = vrot.slane %v966, %v979
    %v981 = vcombine.high %v897, 0.0
    %v983 = vunpack.c.l.s4 1983009808
    %v984 = vunpack.c.0.s8 %v983
    %v985 = vlaneseq
    %v986 = vshrl.u32 %v985, 7
    %v987 = vsub.s32 %v984, %v986
    %v988 = vrot.slane %v897, %v987
    %v990 = vunpack.c.l.s4 1983009808
    %v991 = vunpack.c.0.s8 %v990
    %v992 = vlaneseq
    %v993 = vshrl.u32 %v992, 7
    %v994 = vsub.s32 %v991, %v993
    %v995 = vrot.slane %v981, %v994
    %v996 = vcombine.low %v973, %v988
    %v997 = vcombine.high %v973, %v988
    %v999 = vunpack.c.l.s4 1934713408
    %v1000 = vunpack.c.0.s8 %v999
    %v1001 = vlaneseq
    %v1002 = vshrl.u32 %v1001, 7
    %v1003 = vsub.s32 %v1000, %v1002
    %v1004 = vrot.slane %v996, %v1003
    %v1006 = vunpack.c.l.s4 1934713408
    %v1007 = vunpack.c.0.s8 %v1006
    %v1008 = vlaneseq
    %v1009 = vshrl.u32 %v1008, 7
    %v1010 = vsub.s32 %v1007, %v1009
    %v1011 = vrot.slane %v997, %v1010
    %v1012 = vcombine.low %v980, %v995
    %v1013 = vcombine.high %v980, %v995
    %v1015 = vunpack.c.l.s4 1934713408
    %v1016 = vunpack.c.0.s8 %v1015
    %v1017 = vlaneseq
    %v1018 = vshrl.u32 %v1017, 7
    %v1019 = vsub.s32 %v1016, %v1018
    %v1020 = vrot.slane %v1012, %v1019
    %v1022 = vunpack.c.l.s4 1934713408
    %v1023 = vunpack.c.0.s8 %v1022
    %v1024 = vlaneseq
    %v1025 = vshrl.u32 %v1024, 7
    %v1026 = vsub.s32 %v1023, %v1025
    %v1027 = vrot.slane %v1013, %v1026
    %v1028 = vcombine.high %v1004, 0.0
    %v1029 = vcombine.high %v1011, 0.0
    %v1030 = vcombine.high %v1020, 0.0
    %v1031 = vcombine.high %v1027, 0.0
    %v1032 = vcombine.low %v938, %v945
    %v1034 = vunpack.c.l.s4 1983009808
    %v1035 = vunpack.c.0.s8 %v1034
    %v1036 = vlaneseq
    %v1037 = vshrl.u32 %v1036, 7
    %v1038 = vsub.s32 %v1035, %v1037
    %v1039 = vrot.slane %v1032, %v1038
    %v1040 = vcombine.low %v962, %v963
    %v1042 = vunpack.c.l.s4 1983009808
    %v1043 = vunpack.c.0.s8 %v1042
    %v1044 = vlaneseq
    %v1045 = vshrl.u32 %v1044, 7
    %v1046 = vsub.s32 %v1043, %v1045
    %v1047 = vrot.slane %v1040, %v1046
    %v1048 = vcombine.low %v954, %v961
    %v1050 = vunpack.c.l.s4 1983009808
    %v1051 = vunpack.c.0.s8 %v1050
    %v1052 = vlaneseq
    %v1053 = vshrl.u32 %v1052, 7
    %v1054 = vsub.s32 %v1051, %v1053
    %v1055 = vrot.slane %v1048, %v1054
    %v1056 = vcombine.low %v964, %v965
    %v1058 = vunpack.c.l.s4 1983009808
    %v1059 = vunpack.c.0.s8 %v1058
    %v1060 = vlaneseq
    %v1061 = vshrl.u32 %v1060, 7
    %v1062 = vsub.s32 %v1059, %v1061
    %v1063 = vrot.slane %v1056, %v1062
    %v1064 = vcombine.low %v1039, %v1047
    %v1066 = vunpack.c.l.s4 1934713408
    %v1067 = vunpack.c.0.s8 %v1066
    %v1068 = vlaneseq
    %v1069 = vshrl.u32 %v1068, 7
    %v1070 = vsub.s32 %v1067, %v1069
    %v1071 = vrot.slane %v1064, %v1070
    %v1072 = vcombine.low %v1055, %v1063
    %v1074 = vunpack.c.l.s4 1934713408
    %v1075 = vunpack.c.0.s8 %v1074
    %v1076 = vlaneseq
    %v1077 = vshrl.u32 %v1076, 7
    %v1078 = vsub.s32 %v1075, %v1077
    %v1079 = vrot.slane %v1072, %v1078
    %v1080 = vcombine.low %v1071, %v1079
    %v1081 = vcombine.high %v1071, %v1079
    %v1082 = vcombine.low %v1004, %v1011
    %v1084 = vunpack.c.l.s4 1983009808
    %v1085 = vunpack.c.0.s8 %v1084
    %v1086 = vlaneseq
    %v1087 = vshrl.u32 %v1086, 7
    %v1088 = vsub.s32 %v1085, %v1087
    %v1089 = vrot.slane %v1082, %v1088
    %v1090 = vcombine.low %v1028, %v1029
    %v1092 = vunpack.c.l.s4 1983009808
    %v1093 = vunpack.c.0.s8 %v1092
    %v1094 = vlaneseq
    %v1095 = vshrl.u32 %v1094, 7
    %v1096 = vsub.s32 %v1093, %v1095
    %v1097 = vrot.slane %v1090, %v1096
    %v1098 = vcombine.low %v1020, %v1027
    %v1100 = vunpack.c.l.s4 1983009808
    %v1101 = vunpack.c.0.s8 %v1100
    %v1102 = vlaneseq
    %v1103 = vshrl.u32 %v1102, 7
    %v1104 = vsub.s32 %v1101, %v1103
    %v1105 = vrot.slane %v1098, %v1104
    %v1106 = vcombine.low %v1030, %v1031
    %v1108 = vunpack.c.l.s4 1983009808
    %v1109 = vunpack.c.0.s8 %v1108
    %v1110 = vlaneseq
    %v1111 = vshrl.u32 %v1110, 7
    %v1112 = vsub.s32 %v1109, %v1111
    %v1113 = vrot.slane %v1106, %v1112
    %v1114 = vcombine.low %v1089, %v1097
    %v1116 = vunpack.c.l.s4 1934713408
    %v1117 = vunpack.c.0.s8 %v1116
    %v1118 = vlaneseq
    %v1119 = vshrl.u32 %v1118, 7
    %v1120 = vsub.s32 %v1117, %v1119
    %v1121 = vrot.slane %v1114, %v1120
    %v1122 = vcombine.low %v1105, %v1113
    %v1124 = vunpack.c.l.s4 1934713408
    %v1125 = vunpack.c.0.s8 %v1124
    %v1126 = vlaneseq
    %v1127 = vshrl.u32 %v1126, 7
    %v1128 = vsub.s32 %v1125, %v1127
    %v1129 = vrot.slane %v1122, %v1128
    %v1130 = vcombine.low %v1121, %v1129
    %v1131 = vcombine.high %v1121, %v1129
    %v1132 = vpack.c.bf16 %v1080, %v1080
    %v1133 = vpack.c.bf16 %v1081, %v1081
    %v1134 = vpack.c.bf16 %v1130, %v1130
    %v1135 = vpack.c.bf16 %v1131, %v1131
    %1138 = vrot.lane.b32.xlu0 %v642, 64
    %v1139 = vpop.permute.xlu0 %1138
    %1140 = vrot.lane.b32.xlu0 %v645, 64
    %v1141 = vpop.permute.xlu0 %1140
    %v1144 = vcombine.high %v642, 0.0
    %v1146 = vunpack.c.l.s4 1983009808
    %v1147 = vunpack.c.0.s8 %v1146
    %v1148 = vlaneseq
    %v1149 = vshrl.u32 %v1148, 7
    %v1150 = vsub.s32 %v1147, %v1149
    %v1151 = vrot.slane %v642, %v1150
    %v1153 = vunpack.c.l.s4 1983009808
    %v1154 = vunpack.c.0.s8 %v1153
    %v1155 = vlaneseq
    %v1156 = vshrl.u32 %v1155, 7
    %v1157 = vsub.s32 %v1154, %v1156
    %v1158 = vrot.slane %v1144, %v1157
    %v1159 = vcombine.high %v1139, 0.0
    %v1161 = vunpack.c.l.s4 1983009808
    %v1162 = vunpack.c.0.s8 %v1161
    %v1163 = vlaneseq
    %v1164 = vshrl.u32 %v1163, 7
    %v1165 = vsub.s32 %v1162, %v1164
    %v1166 = vrot.slane %v1139, %v1165
    %v1168 = vunpack.c.l.s4 1983009808
    %v1169 = vunpack.c.0.s8 %v1168
    %v1170 = vlaneseq
    %v1171 = vshrl.u32 %v1170, 7
    %v1172 = vsub.s32 %v1169, %v1171
    %v1173 = vrot.slane %v1159, %v1172
    %v1174 = vcombine.low %v1151, %v1166
    %v1175 = vcombine.high %v1151, %v1166
    %v1177 = vunpack.c.l.s4 1934713408
    %v1178 = vunpack.c.0.s8 %v1177
    %v1179 = vlaneseq
    %v1180 = vshrl.u32 %v1179, 7
    %v1181 = vsub.s32 %v1178, %v1180
    %v1182 = vrot.slane %v1174, %v1181
    %v1184 = vunpack.c.l.s4 1934713408
    %v1185 = vunpack.c.0.s8 %v1184
    %v1186 = vlaneseq
    %v1187 = vshrl.u32 %v1186, 7
    %v1188 = vsub.s32 %v1185, %v1187
    %v1189 = vrot.slane %v1175, %v1188
    %v1190 = vcombine.low %v1158, %v1173
    %v1191 = vcombine.high %v1158, %v1173
    %v1193 = vunpack.c.l.s4 1934713408
    %v1194 = vunpack.c.0.s8 %v1193
    %v1195 = vlaneseq
    %v1196 = vshrl.u32 %v1195, 7
    %v1197 = vsub.s32 %v1194, %v1196
    %v1198 = vrot.slane %v1190, %v1197
    %v1200 = vunpack.c.l.s4 1934713408
    %v1201 = vunpack.c.0.s8 %v1200
    %v1202 = vlaneseq
    %v1203 = vshrl.u32 %v1202, 7
    %v1204 = vsub.s32 %v1201, %v1203
    %v1205 = vrot.slane %v1191, %v1204
    %v1206 = vcombine.high %v1182, 0.0
    %v1207 = vcombine.high %v1189, 0.0
    %v1208 = vcombine.high %v1198, 0.0
    %v1209 = vcombine.high %v1205, 0.0
    %v1210 = vcombine.high %v645, 0.0
    %v1212 = vunpack.c.l.s4 1983009808
    %v1213 = vunpack.c.0.s8 %v1212
    %v1214 = vlaneseq
    %v1215 = vshrl.u32 %v1214, 7
    %v1216 = vsub.s32 %v1213, %v1215
    %v1217 = vrot.slane %v645, %v1216
    %v1219 = vunpack.c.l.s4 1983009808
    %v1220 = vunpack.c.0.s8 %v1219
    %v1221 = vlaneseq
    %v1222 = vshrl.u32 %v1221, 7
    %v1223 = vsub.s32 %v1220, %v1222
    %v1224 = vrot.slane %v1210, %v1223
    %v1225 = vcombine.high %v1141, 0.0
    %v1227 = vunpack.c.l.s4 1983009808
    %v1228 = vunpack.c.0.s8 %v1227
    %v1229 = vlaneseq
    %v1230 = vshrl.u32 %v1229, 7
    %v1231 = vsub.s32 %v1228, %v1230
    %v1232 = vrot.slane %v1141, %v1231
    %v1234 = vunpack.c.l.s4 1983009808
    %v1235 = vunpack.c.0.s8 %v1234
    %v1236 = vlaneseq
    %v1237 = vshrl.u32 %v1236, 7
    %v1238 = vsub.s32 %v1235, %v1237
    %v1239 = vrot.slane %v1225, %v1238
    %v1240 = vcombine.low %v1217, %v1232
    %v1241 = vcombine.high %v1217, %v1232
    %v1243 = vunpack.c.l.s4 1934713408
    %v1244 = vunpack.c.0.s8 %v1243
    %v1245 = vlaneseq
    %v1246 = vshrl.u32 %v1245, 7
    %v1247 = vsub.s32 %v1244, %v1246
    %v1248 = vrot.slane %v1240, %v1247
    %v1250 = vunpack.c.l.s4 1934713408
    %v1251 = vunpack.c.0.s8 %v1250
    %v1252 = vlaneseq
    %v1253 = vshrl.u32 %v1252, 7
    %v1254 = vsub.s32 %v1251, %v1253
    %v1255 = vrot.slane %v1241, %v1254
    %v1256 = vcombine.low %v1224, %v1239
    %v1257 = vcombine.high %v1224, %v1239
    %v1259 = vunpack.c.l.s4 1934713408
    %v1260 = vunpack.c.0.s8 %v1259
    %v1261 = vlaneseq
    %v1262 = vshrl.u32 %v1261, 7
    %v1263 = vsub.s32 %v1260, %v1262
    %v1264 = vrot.slane %v1256, %v1263
    %v1266 = vunpack.c.l.s4 1934713408
    %v1267 = vunpack.c.0.s8 %v1266
    %v1268 = vlaneseq
    %v1269 = vshrl.u32 %v1268, 7
    %v1270 = vsub.s32 %v1267, %v1269
    %v1271 = vrot.slane %v1257, %v1270
    %v1272 = vcombine.high %v1248, 0.0
    %v1273 = vcombine.high %v1255, 0.0
    %v1274 = vcombine.high %v1264, 0.0
    %v1275 = vcombine.high %v1271, 0.0
    %v1276 = vcombine.low %v1182, %v1189
    %v1278 = vunpack.c.l.s4 1983009808
    %v1279 = vunpack.c.0.s8 %v1278
    %v1280 = vlaneseq
    %v1281 = vshrl.u32 %v1280, 7
    %v1282 = vsub.s32 %v1279, %v1281
    %v1283 = vrot.slane %v1276, %v1282
    %v1284 = vcombine.low %v1206, %v1207
    %v1286 = vunpack.c.l.s4 1983009808
    %v1287 = vunpack.c.0.s8 %v1286
    %v1288 = vlaneseq
    %v1289 = vshrl.u32 %v1288, 7
    %v1290 = vsub.s32 %v1287, %v1289
    %v1291 = vrot.slane %v1284, %v1290
    %v1292 = vcombine.low %v1198, %v1205
    %v1294 = vunpack.c.l.s4 1983009808
    %v1295 = vunpack.c.0.s8 %v1294
    %v1296 = vlaneseq
    %v1297 = vshrl.u32 %v1296, 7
    %v1298 = vsub.s32 %v1295, %v1297
    %v1299 = vrot.slane %v1292, %v1298
    %v1300 = vcombine.low %v1208, %v1209
    %v1302 = vunpack.c.l.s4 1983009808
    %v1303 = vunpack.c.0.s8 %v1302
    %v1304 = vlaneseq
    %v1305 = vshrl.u32 %v1304, 7
    %v1306 = vsub.s32 %v1303, %v1305
    %v1307 = vrot.slane %v1300, %v1306
    %v1308 = vcombine.low %v1283, %v1291
    %v1310 = vunpack.c.l.s4 1934713408
    %v1311 = vunpack.c.0.s8 %v1310
    %v1312 = vlaneseq
    %v1313 = vshrl.u32 %v1312, 7
    %v1314 = vsub.s32 %v1311, %v1313
    %v1315 = vrot.slane %v1308, %v1314
    %v1316 = vcombine.low %v1299, %v1307
    %v1318 = vunpack.c.l.s4 1934713408
    %v1319 = vunpack.c.0.s8 %v1318
    %v1320 = vlaneseq
    %v1321 = vshrl.u32 %v1320, 7
    %v1322 = vsub.s32 %v1319, %v1321
    %v1323 = vrot.slane %v1316, %v1322
    %v1324 = vcombine.low %v1315, %v1323
    %v1325 = vcombine.high %v1315, %v1323
    %v1326 = vcombine.low %v1248, %v1255
    %v1328 = vunpack.c.l.s4 1983009808
    %v1329 = vunpack.c.0.s8 %v1328
    %v1330 = vlaneseq
    %v1331 = vshrl.u32 %v1330, 7
    %v1332 = vsub.s32 %v1329, %v1331
    %v1333 = vrot.slane %v1326, %v1332
    %v1334 = vcombine.low %v1272, %v1273
    %v1336 = vunpack.c.l.s4 1983009808
    %v1337 = vunpack.c.0.s8 %v1336
    %v1338 = vlaneseq
    %v1339 = vshrl.u32 %v1338, 7
    %v1340 = vsub.s32 %v1337, %v1339
    %v1341 = vrot.slane %v1334, %v1340
    %v1342 = vcombine.low %v1264, %v1271
    %v1344 = vunpack.c.l.s4 1983009808
    %v1345 = vunpack.c.0.s8 %v1344
    %v1346 = vlaneseq
    %v1347 = vshrl.u32 %v1346, 7
    %v1348 = vsub.s32 %v1345, %v1347
    %v1349 = vrot.slane %v1342, %v1348
    %v1350 = vcombine.low %v1274, %v1275
    %v1352 = vunpack.c.l.s4 1983009808
    %v1353 = vunpack.c.0.s8 %v1352
    %v1354 = vlaneseq
    %v1355 = vshrl.u32 %v1354, 7
    %v1356 = vsub.s32 %v1353, %v1355
    %v1357 = vrot.slane %v1350, %v1356
    %v1358 = vcombine.low %v1333, %v1341
    %v1360 = vunpack.c.l.s4 1934713408
    %v1361 = vunpack.c.0.s8 %v1360
    %v1362 = vlaneseq
    %v1363 = vshrl.u32 %v1362, 7
    %v1364 = vsub.s32 %v1361, %v1363
    %v1365 = vrot.slane %v1358, %v1364
    %v1366 = vcombine.low %v1349, %v1357
    %v1368 = vunpack.c.l.s4 1934713408
    %v1369 = vunpack.c.0.s8 %v1368
    %v1370 = vlaneseq
    %v1371 = vshrl.u32 %v1370, 7
    %v1372 = vsub.s32 %v1369, %v1371
    %v1373 = vrot.slane %v1366, %v1372
    %v1374 = vcombine.low %v1365, %v1373
    %v1375 = vcombine.high %v1365, %v1373
    %v1376 = vpack.c.bf16 %v1324, %v1324
    %v1377 = vpack.c.bf16 %v1325, %v1325
    %v1378 = vpack.c.bf16 %v1374, %v1374
    %v1379 = vpack.c.bf16 %v1375, %v1375
    %v1380 = vlaneseq
    %v1381 = vshrl.u32 %v1380, 7
    %v1382 = vsub.s32 0, %v1381
    %v1383 = vrot.slane %v378, %v1382
    %v1384 = vlaneseq
    %v1385 = vshrl.u32 %v1384, 7
    %v1386 = vsub.s32 0, %v1385
    %v1387 = vrot.slane %v385, %v1386
    %vm1390 = vcmask 523264
    %v1392 = vsel %vm1390, %v888, 0
    %v1395 = vsel %vm1390, %v1132, 0
    %1397 = vmatprep.subr.bf16.mxu0 0
    %1398 = vmatpush1.bf16.xpose.msra.mxu0 %v1395
    %1399 = vmatprep.subr.bf16.mxu0 0
    %1400 = vmatpush1.bf16.xpose.msra.mxu0 0
    %1401 = vmatprep.subr.bf16.mxu0 0
    %1402 = vmatpush1.bf16.xpose.msra.mxu0 0
    %1403 = vmatprep.subr.bf16.mxu0 0
    %1404 = vmatpush1.bf16.xpose.msra.mxu0 0
    %1405 = vmatprep.subr.bf16.mxu0 0
    %1406 = vmatpush1.bf16.xpose.msra.mxu0 0
    %1407 = vmatprep.subr.bf16.mxu0 0
    %1408 = vmatpush1.bf16.xpose.msra.mxu0 0
    %1409 = vmatprep.subr.bf16.mxu0 0
    %1410 = vmatpush1.bf16.xpose.msra.mxu0 0
    %1411 = vmatprep.subr.bf16.mxu0 0
    %1412 = vmatpush1.bf16.xpose.msra.mxu0 0
    %1413 = vmatprep.subr.bf16.mxu0 0
    %1414 = vmatpush1.bf16.xpose.msra.mxu0 0
    %1415 = vmatprep.subr.bf16.mxu0 0
    %1416 = vmatpush1.bf16.xpose.msra.mxu0 0
    %1417 = vmatprep.subr.bf16.mxu0 0
    %1418 = vmatpush1.bf16.xpose.msra.mxu0 0
    %1419 = vmatprep.subr.bf16.mxu0 0
    %1420 = vmatpush1.bf16.xpose.msra.mxu0 0
    %1421 = vmatprep.subr.bf16.mxu0 0
    %1422 = vmatpush1.bf16.xpose.msra.mxu0 0
    %1423 = vmatprep.subr.bf16.mxu0 0
    %1424 = vmatpush1.bf16.xpose.msra.mxu0 0
    %1425 = vmatprep.subr.bf16.mxu0 0
    %1426 = vmatpush1.bf16.xpose.msra.mxu0 0
    %1427 = vmatprep.subr.bf16.mxu0 0
    %1428 = vmatpush1.bf16.xpose.msra.mxu0 0
    %1429 = vmatprep.mubr.bf16.mxu0 0
    %1430 = vmatmul.mubr.bf16.gmra.mrb[0].mxu0 %v1392
    %v1431 = vpop.f32.mrb[0].mxu0
    %v1432 = vadd.f32 %v1383, %v1431
    %v1433 = vpop.f32.mrb[0].mxu0
    %v1434 = vpop.f32.mrb[0].mxu0
    %v1435 = vpop.f32.mrb[0].mxu0
    %1436 = vdwg.mxu0
    %v1438 = vsel %vm1390, %v889, 0
    %v1441 = vsel %vm1390, %v1133, 0
    %1443 = vmatprep.subr.bf16.mxu0 0
    %1444 = vmatpush1.bf16.xpose.msra.mxu0 %v1441
    %1445 = vmatprep.subr.bf16.mxu0 0
    %1446 = vmatpush1.bf16.xpose.msra.mxu0 0
    %1447 = vmatprep.subr.bf16.mxu0 0
    %1448 = vmatpush1.bf16.xpose.msra.mxu0 0
    %1449 = vmatprep.subr.bf16.mxu0 0
    %1450 = vmatpush1.bf16.xpose.msra.mxu0 0
    %1451 = vmatprep.subr.bf16.mxu0 0
    %1452 = vmatpush1.bf16.xpose.msra.mxu0 0
    %1453 = vmatprep.subr.bf16.mxu0 0
    %1454 = vmatpush1.bf16.xpose.msra.mxu0 0
    %1455 = vmatprep.subr.bf16.mxu0 0
    %1456 = vmatpush1.bf16.xpose.msra.mxu0 0
    %1457 = vmatprep.subr.bf16.mxu0 0
    %1458 = vmatpush1.bf16.xpose.msra.mxu0 0
    %1459 = vmatprep.subr.bf16.mxu0 0
    %1460 = vmatpush1.bf16.xpose.msra.mxu0 0
    %1461 = vmatprep.subr.bf16.mxu0 0
    %1462 = vmatpush1.bf16.xpose.msra.mxu0 0
    %1463 = vmatprep.subr.bf16.mxu0 0
    %1464 = vmatpush1.bf16.xpose.msra.mxu0 0
    %1465 = vmatprep.subr.bf16.mxu0 0
    %1466 = vmatpush1.bf16.xpose.msra.mxu0 0
    %1467 = vmatprep.subr.bf16.mxu0 0
    %1468 = vmatpush1.bf16.xpose.msra.mxu0 0
    %1469 = vmatprep.subr.bf16.mxu0 0
    %1470 = vmatpush1.bf16.xpose.msra.mxu0 0
    %1471 = vmatprep.subr.bf16.mxu0 0
    %1472 = vmatpush1.bf16.xpose.msra.mxu0 0
    %1473 = vmatprep.subr.bf16.mxu0 0
    %1474 = vmatpush1.bf16.xpose.msra.mxu0 0
    %1475 = vmatprep.mubr.bf16.mxu0 0
    %1476 = vmatmul.mubr.bf16.gmra.mrb[0].mxu0 %v1438
    %v1477 = vpop.f32.mrb[0].mxu0
    %v1478 = vadd.f32 %v1383, %v1477
    %v1479 = vpop.f32.mrb[0].mxu0
    %v1480 = vpop.f32.mrb[0].mxu0
    %v1481 = vpop.f32.mrb[0].mxu0
    %1482 = vdwg.mxu0
    %v1484 = vsel %vm1390, %v890, 0
    %v1487 = vsel %vm1390, %v1134, 0
    %1489 = vmatprep.subr.bf16.mxu0 0
    %1490 = vmatpush1.bf16.xpose.msra.mxu0 %v1487
    %1491 = vmatprep.subr.bf16.mxu0 0
    %1492 = vmatpush1.bf16.xpose.msra.mxu0 0
    %1493 = vmatprep.subr.bf16.mxu0 0
    %1494 = vmatpush1.bf16.xpose.msra.mxu0 0
    %1495 = vmatprep.subr.bf16.mxu0 0
    %1496 = vmatpush1.bf16.xpose.msra.mxu0 0
    %1497 = vmatprep.subr.bf16.mxu0 0
    %1498 = vmatpush1.bf16.xpose.msra.mxu0 0
    %1499 = vmatprep.subr.bf16.mxu0 0
    %1500 = vmatpush1.bf16.xpose.msra.mxu0 0
    %1501 = vmatprep.subr.bf16.mxu0 0
    %1502 = vmatpush1.bf16.xpose.msra.mxu0 0
    %1503 = vmatprep.subr.bf16.mxu0 0
    %1504 = vmatpush1.bf16.xpose.msra.mxu0 0
    %1505 = vmatprep.subr.bf16.mxu0 0
    %1506 = vmatpush1.bf16.xpose.msra.mxu0 0
    %1507 = vmatprep.subr.bf16.mxu0 0
    %1508 = vmatpush1.bf16.xpose.msra.mxu0 0
    %1509 = vmatprep.subr.bf16.mxu0 0
    %1510 = vmatpush1.bf16.xpose.msra.mxu0 0
    %1511 = vmatprep.subr.bf16.mxu0 0
    %1512 = vmatpush1.bf16.xpose.msra.mxu0 0
    %1513 = vmatprep.subr.bf16.mxu0 0
    %1514 = vmatpush1.bf16.xpose.msra.mxu0 0
    %1515 = vmatprep.subr.bf16.mxu0 0
    %1516 = vmatpush1.bf16.xpose.msra.mxu0 0
    %1517 = vmatprep.subr.bf16.mxu0 0
    %1518 = vmatpush1.bf16.xpose.msra.mxu0 0
    %1519 = vmatprep.subr.bf16.mxu0 0
    %1520 = vmatpush1.bf16.xpose.msra.mxu0 0
    %1521 = vmatprep.mubr.bf16.mxu0 0
    %1522 = vmatmul.mubr.bf16.gmra.mrb[0].mxu0 %v1484
    %v1523 = vpop.f32.mrb[0].mxu0
    %v1524 = vadd.f32 %v1387, %v1523
    %v1525 = vpop.f32.mrb[0].mxu0
    %v1526 = vpop.f32.mrb[0].mxu0
    %v1527 = vpop.f32.mrb[0].mxu0
    %1528 = vdwg.mxu0
    %v1530 = vsel %vm1390, %v891, 0
    %v1533 = vsel %vm1390, %v1135, 0
    %1535 = vmatprep.subr.bf16.mxu0 0
    %1536 = vmatpush1.bf16.xpose.msra.mxu0 %v1533
    %1537 = vmatprep.subr.bf16.mxu0 0
    %1538 = vmatpush1.bf16.xpose.msra.mxu0 0
    %1539 = vmatprep.subr.bf16.mxu0 0
    %1540 = vmatpush1.bf16.xpose.msra.mxu0 0
    %1541 = vmatprep.subr.bf16.mxu0 0
    %1542 = vmatpush1.bf16.xpose.msra.mxu0 0
    %1543 = vmatprep.subr.bf16.mxu0 0
    %1544 = vmatpush1.bf16.xpose.msra.mxu0 0
    %1545 = vmatprep.subr.bf16.mxu0 0
    %1546 = vmatpush1.bf16.xpose.msra.mxu0 0
    %1547 = vmatprep.subr.bf16.mxu0 0
    %1548 = vmatpush1.bf16.xpose.msra.mxu0 0
    %1549 = vmatprep.subr.bf16.mxu0 0
    %1550 = vmatpush1.bf16.xpose.msra.mxu0 0
    %1551 = vmatprep.subr.bf16.mxu0 0
    %1552 = vmatpush1.bf16.xpose.msra.mxu0 0
    %1553 = vmatprep.subr.bf16.mxu0 0
    %1554 = vmatpush1.bf16.xpose.msra.mxu0 0
    %1555 = vmatprep.subr.bf16.mxu0 0
    %1556 = vmatpush1.bf16.xpose.msra.mxu0 0
    %1557 = vmatprep.subr.bf16.mxu0 0
    %1558 = vmatpush1.bf16.xpose.msra.mxu0 0
    %1559 = vmatprep.subr.bf16.mxu0 0
    %1560 = vmatpush1.bf16.xpose.msra.mxu0 0
    %1561 = vmatprep.subr.bf16.mxu0 0
    %1562 = vmatpush1.bf16.xpose.msra.mxu0 0
    %1563 = vmatprep.subr.bf16.mxu0 0
    %1564 = vmatpush1.bf16.xpose.msra.mxu0 0
    %1565 = vmatprep.subr.bf16.mxu0 0
    %1566 = vmatpush1.bf16.xpose.msra.mxu0 0
    %1567 = vmatprep.mubr.bf16.mxu0 0
    %1568 = vmatmul.mubr.bf16.gmra.mrb[0].mxu0 %v1530
    %v1569 = vpop.f32.mrb[0].mxu0
    %v1570 = vadd.f32 %v1387, %v1569
    %v1571 = vpop.f32.mrb[0].mxu0
    %v1572 = vpop.f32.mrb[0].mxu0
    %v1573 = vpop.f32.mrb[0].mxu0
    %1574 = vdwg.mxu0
    %vm1575 = vcmask 64512
    %v1576 = vsel %vm1575, %v1432, -inf
    %1577 = vmax.xlane.f32.xlu0 %v1576
    %v1578 = vpop.xlane.xlu0 %1577
    %v1579 = vsel %vm1575, %v1478, -inf
    %1580 = vmax.xlane.f32.xlu0 %v1579
    %v1581 = vpop.xlane.xlu0 %1580
    %v1582 = vsel %vm1575, %v1524, -inf
    %1583 = vmax.xlane.f32.xlu0 %v1582
    %v1584 = vpop.xlane.xlu0 %1583
    %v1585 = vsel %vm1575, %v1570, -inf
    %1586 = vmax.xlane.f32.xlu0 %v1585
    %v1587 = vpop.xlane.xlu0 %1586
    %v1588 = vsub.f32 %v1432, %v1578
    %v1589 = vsub.f32 %v1478, %v1581
    %v1590 = vsub.f32 %v1524, %v1584
    %v1591 = vsub.f32 %v1570, %v1587
    %v1592 = vmul.f32 %v1588, 1.442695
    %v1593 = vpow.pop %v1592
    %v1594 = vmul.f32 %v1589, 1.442695
    %v1595 = vpow.pop %v1594
    %v1596 = vmul.f32 %v1590, 1.442695
    %v1597 = vpow.pop %v1596
    %v1598 = vmul.f32 %v1591, 1.442695
    %v1599 = vpow.pop %v1598
    %v1600 = vsel %vm1575, %v1593, 0.0
    %1601 = vadd.xlane.f32.xlu0 %v1600
    %v1602 = vpop.xlane.xlu0 %1601
    %v1603 = vsel %vm1575, %v1595, 0.0
    %1604 = vadd.xlane.f32.xlu0 %v1603
    %v1605 = vpop.xlane.xlu0 %1604
    %v1606 = vsel %vm1575, %v1597, 0.0
    %1607 = vadd.xlane.f32.xlu0 %v1606
    %v1608 = vpop.xlane.xlu0 %1607
    %v1609 = vsel %vm1575, %v1599, 0.0
    %1610 = vadd.xlane.f32.xlu0 %v1609
    %v1611 = vpop.xlane.xlu0 %1610
    %v1612 = vrcp.pop %v1602
    %v1613 = vrcp.pop %v1605
    %v1614 = vrcp.pop %v1608
    %v1615 = vrcp.pop %v1611
    %v1616 = vmul.f32 %v1593, %v1612
    %v1617 = vmul.f32 %v1595, %v1613
    %v1618 = vmul.f32 %v1597, %v1614
    %v1619 = vmul.f32 %v1599, %v1615
    %v1620 = vpack.c.bf16 %v1616, %v1616
    %v1621 = vpack.c.bf16 %v1617, %v1617
    %v1622 = vpack.c.bf16 %v1618, %v1618
    %v1623 = vpack.c.bf16 %v1619, %v1619
    %v1625 = vsel %vm1575, %v1620, 0
    %vm1627 = vcmask 1043456
    %v1629 = vsel %vm1627, %v1376, 0
    %1631 = vmatprep.subr.bf16.mxu0 0
    %1632 = vmatpush1.bf16.msra.mxu0 %v1629
    %1633 = vmatprep.subr.bf16.mxu0 0
    %1634 = vmatpush1.bf16.msra.mxu0 0
    %1635 = vmatprep.subr.bf16.mxu0 0
    %1636 = vmatpush1.bf16.msra.mxu0 0
    %1637 = vmatprep.subr.bf16.mxu0 0
    %1638 = vmatpush1.bf16.msra.mxu0 0
    %1639 = vmatprep.subr.bf16.mxu0 0
    %1640 = vmatpush1.bf16.msra.mxu0 0
    %1641 = vmatprep.subr.bf16.mxu0 0
    %1642 = vmatpush1.bf16.msra.mxu0 0
    %1643 = vmatprep.subr.bf16.mxu0 0
    %1644 = vmatpush1.bf16.msra.mxu0 0
    %1645 = vmatprep.subr.bf16.mxu0 0
    %1646 = vmatpush1.bf16.msra.mxu0 0
    %1647 = vmatprep.subr.bf16.mxu0 0
    %1648 = vmatpush1.bf16.msra.mxu0 0
    %1649 = vmatprep.subr.bf16.mxu0 0
    %1650 = vmatpush1.bf16.msra.mxu0 0
    %1651 = vmatprep.subr.bf16.mxu0 0
    %1652 = vmatpush1.bf16.msra.mxu0 0
    %1653 = vmatprep.subr.bf16.mxu0 0
    %1654 = vmatpush1.bf16.msra.mxu0 0
    %1655 = vmatprep.subr.bf16.mxu0 0
    %1656 = vmatpush1.bf16.msra.mxu0 0
    %1657 = vmatprep.subr.bf16.mxu0 0
    %1658 = vmatpush1.bf16.msra.mxu0 0
    %1659 = vmatprep.subr.bf16.mxu0 0
    %1660 = vmatpush1.bf16.msra.mxu0 0
    %1661 = vmatprep.subr.bf16.mxu0 0
    %1662 = vmatpush1.bf16.msra.mxu0 0
    %1663 = vmatprep.mubr.bf16.mxu0 0
    %1664 = vmatmul.mubr.bf16.gmra.mrb[0].mxu0 %v1625
    %v1665 = vpop.f32.mrb[0].mxu0
    %v1666 = vadd.f32 0.0, %v1665
    %v1667 = vpop.f32.mrb[0].mxu0
    %v1668 = vpop.f32.mrb[0].mxu0
    %v1669 = vpop.f32.mrb[0].mxu0
    %1670 = vdwg.mxu0
    %v1672 = vsel %vm1575, %v1621, 0
    %v1675 = vsel %vm1627, %v1377, 0
    %1677 = vmatprep.subr.bf16.mxu0 0
    %1678 = vmatpush1.bf16.msra.mxu0 %v1675
    %1679 = vmatprep.subr.bf16.mxu0 0
    %1680 = vmatpush1.bf16.msra.mxu0 0
    %1681 = vmatprep.subr.bf16.mxu0 0
    %1682 = vmatpush1.bf16.msra.mxu0 0
    %1683 = vmatprep.subr.bf16.mxu0 0
    %1684 = vmatpush1.bf16.msra.mxu0 0
    %1685 = vmatprep.subr.bf16.mxu0 0
    %1686 = vmatpush1.bf16.msra.mxu0 0
    %1687 = vmatprep.subr.bf16.mxu0 0
    %1688 = vmatpush1.bf16.msra.mxu0 0
    %1689 = vmatprep.subr.bf16.mxu0 0
    %1690 = vmatpush1.bf16.msra.mxu0 0
    %1691 = vmatprep.subr.bf16.mxu0 0
    %1692 = vmatpush1.bf16.msra.mxu0 0
    %1693 = vmatprep.subr.bf16.mxu0 0
    %1694 = vmatpush1.bf16.msra.mxu0 0
    %1695 = vmatprep.subr.bf16.mxu0 0
    %1696 = vmatpush1.bf16.msra.mxu0 0
    %1697 = vmatprep.subr.bf16.mxu0 0
    %1698 = vmatpush1.bf16.msra.mxu0 0
    %1699 = vmatprep.subr.bf16.mxu0 0
    %1700 = vmatpush1.bf16.msra.mxu0 0
    %1701 = vmatprep.subr.bf16.mxu0 0
    %1702 = vmatpush1.bf16.msra.mxu0 0
    %1703 = vmatprep.subr.bf16.mxu0 0
    %1704 = vmatpush1.bf16.msra.mxu0 0
    %1705 = vmatprep.subr.bf16.mxu0 0
    %1706 = vmatpush1.bf16.msra.mxu0 0
    %1707 = vmatprep.subr.bf16.mxu0 0
    %1708 = vmatpush1.bf16.msra.mxu0 0
    %1709 = vmatprep.mubr.bf16.mxu0 0
    %1710 = vmatmul.mubr.bf16.gmra.mrb[0].mxu0 %v1672
    %v1711 = vpop.f32.mrb[0].mxu0
    %v1712 = vadd.f32 0.0, %v1711
    %v1713 = vpop.f32.mrb[0].mxu0
    %v1714 = vpop.f32.mrb[0].mxu0
    %v1715 = vpop.f32.mrb[0].mxu0
    %1716 = vdwg.mxu0
    %v1718 = vsel %vm1575, %v1622, 0
    %v1721 = vsel %vm1627, %v1378, 0
    %1723 = vmatprep.subr.bf16.mxu0 0
    %1724 = vmatpush1.bf16.msra.mxu0 %v1721
    %1725 = vmatprep.subr.bf16.mxu0 0
    %1726 = vmatpush1.bf16.msra.mxu0 0
    %1727 = vmatprep.subr.bf16.mxu0 0
    %1728 = vmatpush1.bf16.msra.mxu0 0
    %1729 = vmatprep.subr.bf16.mxu0 0
    %1730 = vmatpush1.bf16.msra.mxu0 0
    %1731 = vmatprep.subr.bf16.mxu0 0
    %1732 = vmatpush1.bf16.msra.mxu0 0
    %1733 = vmatprep.subr.bf16.mxu0 0
    %1734 = vmatpush1.bf16.msra.mxu0 0
    %1735 = vmatprep.subr.bf16.mxu0 0
    %1736 = vmatpush1.bf16.msra.mxu0 0
    %1737 = vmatprep.subr.bf16.mxu0 0
    %1738 = vmatpush1.bf16.msra.mxu0 0
    %1739 = vmatprep.subr.bf16.mxu0 0
    %1740 = vmatpush1.bf16.msra.mxu0 0
    %1741 = vmatprep.subr.bf16.mxu0 0
    %1742 = vmatpush1.bf16.msra.mxu0 0
    %1743 = vmatprep.subr.bf16.mxu0 0
    %1744 = vmatpush1.bf16.msra.mxu0 0
    %1745 = vmatprep.subr.bf16.mxu0 0
    %1746 = vmatpush1.bf16.msra.mxu0 0
    %1747 = vmatprep.subr.bf16.mxu0 0
    %1748 = vmatpush1.bf16.msra.mxu0 0
    %1749 = vmatprep.subr.bf16.mxu0 0
    %1750 = vmatpush1.bf16.msra.mxu0 0
    %1751 = vmatprep.subr.bf16.mxu0 0
    %1752 = vmatpush1.bf16.msra.mxu0 0
    %1753 = vmatprep.subr.bf16.mxu0 0
    %1754 = vmatpush1.bf16.msra.mxu0 0
    %1755 = vmatprep.mubr.bf16.mxu0 0
    %1756 = vmatmul.mubr.bf16.gmra.mrb[0].mxu0 %v1718
    %v1757 = vpop.f32.mrb[0].mxu0
    %v1758 = vadd.f32 0.0, %v1757
    %v1759 = vpop.f32.mrb[0].mxu0
    %v1760 = vpop.f32.mrb[0].mxu0
    %v1761 = vpop.f32.mrb[0].mxu0
    %1762 = vdwg.mxu0
    %v1764 = vsel %vm1575, %v1623, 0
    %v1767 = vsel %vm1627, %v1379, 0
    %1769 = vmatprep.subr.bf16.mxu0 0
    %1770 = vmatpush1.bf16.msra.mxu0 %v1767
    %1771 = vmatprep.subr.bf16.mxu0 0
    %1772 = vmatpush1.bf16.msra.mxu0 0
    %1773 = vmatprep.subr.bf16.mxu0 0
    %1774 = vmatpush1.bf16.msra.mxu0 0
    %1775 = vmatprep.subr.bf16.mxu0 0
    %1776 = vmatpush1.bf16.msra.mxu0 0
    %1777 = vmatprep.subr.bf16.mxu0 0
    %1778 = vmatpush1.bf16.msra.mxu0 0
    %1779 = vmatprep.subr.bf16.mxu0 0
    %1780 = vmatpush1.bf16.msra.mxu0 0
    %1781 = vmatprep.subr.bf16.mxu0 0
    %1782 = vmatpush1.bf16.msra.mxu0 0
    %1783 = vmatprep.subr.bf16.mxu0 0
    %1784 = vmatpush1.bf16.msra.mxu0 0
    %1785 = vmatprep.subr.bf16.mxu0 0
    %1786 = vmatpush1.bf16.msra.mxu0 0
    %1787 = vmatprep.subr.bf16.mxu0 0
    %1788 = vmatpush1.bf16.msra.mxu0 0
    %1789 = vmatprep.subr.bf16.mxu0 0
    %1790 = vmatpush1.bf16.msra.mxu0 0
    %1791 = vmatprep.subr.bf16.mxu0 0
    %1792 = vmatpush1.bf16.msra.mxu0 0
    %1793 = vmatprep.subr.bf16.mxu0 0
    %1794 = vmatpush1.bf16.msra.mxu0 0
    %1795 = vmatprep.subr.bf16.mxu0 0
    %1796 = vmatpush1.bf16.msra.mxu0 0
    %1797 = vmatprep.subr.bf16.mxu0 0
    %1798 = vmatpush1.bf16.msra.mxu0 0
    %1799 = vmatprep.subr.bf16.mxu0 0
    %1800 = vmatpush1.bf16.msra.mxu0 0
    %1801 = vmatprep.mubr.bf16.mxu0 0
    %1802 = vmatmul.mubr.bf16.gmra.mrb[0].mxu0 %v1764
    %v1803 = vpop.f32.mrb[0].mxu0
    %v1804 = vadd.f32 0.0, %v1803
    %v1805 = vpop.f32.mrb[0].mxu0
    %v1806 = vpop.f32.mrb[0].mxu0
    %v1807 = vpop.f32.mrb[0].mxu0
    %1808 = vdwg.mxu0
    %v1809 = vcombine.high %v1666, 0.0
    %v1811 = vunpack.c.l.s4 1983009808
    %v1812 = vunpack.c.0.s8 %v1811
    %v1813 = vlaneseq
    %v1814 = vshrl.u32 %v1813, 7
    %v1815 = vsub.s32 %v1812, %v1814
    %v1816 = vrot.slane %v1666, %v1815
    %v1818 = vunpack.c.l.s4 1983009808
    %v1819 = vunpack.c.0.s8 %v1818
    %v1820 = vlaneseq
    %v1821 = vshrl.u32 %v1820, 7
    %v1822 = vsub.s32 %v1819, %v1821
    %v1823 = vrot.slane %v1809, %v1822
    %v1824 = vcombine.high %v1712, 0.0
    %v1826 = vunpack.c.l.s4 1983009808
    %v1827 = vunpack.c.0.s8 %v1826
    %v1828 = vlaneseq
    %v1829 = vshrl.u32 %v1828, 7
    %v1830 = vsub.s32 %v1827, %v1829
    %v1831 = vrot.slane %v1712, %v1830
    %v1833 = vunpack.c.l.s4 1983009808
    %v1834 = vunpack.c.0.s8 %v1833
    %v1835 = vlaneseq
    %v1836 = vshrl.u32 %v1835, 7
    %v1837 = vsub.s32 %v1834, %v1836
    %v1838 = vrot.slane %v1824, %v1837
    %v1839 = vcombine.low %v1816, %v1831
    %v1840 = vcombine.high %v1816, %v1831
    %v1842 = vunpack.c.l.s4 1934713408
    %v1843 = vunpack.c.0.s8 %v1842
    %v1844 = vlaneseq
    %v1845 = vshrl.u32 %v1844, 7
    %v1846 = vsub.s32 %v1843, %v1845
    %v1847 = vrot.slane %v1839, %v1846
    %v1849 = vunpack.c.l.s4 1934713408
    %v1850 = vunpack.c.0.s8 %v1849
    %v1851 = vlaneseq
    %v1852 = vshrl.u32 %v1851, 7
    %v1853 = vsub.s32 %v1850, %v1852
    %v1854 = vrot.slane %v1840, %v1853
    %v1855 = vcombine.low %v1823, %v1838
    %v1856 = vcombine.high %v1823, %v1838
    %v1858 = vunpack.c.l.s4 1934713408
    %v1859 = vunpack.c.0.s8 %v1858
    %v1860 = vlaneseq
    %v1861 = vshrl.u32 %v1860, 7
    %v1862 = vsub.s32 %v1859, %v1861
    %v1863 = vrot.slane %v1855, %v1862
    %v1865 = vunpack.c.l.s4 1934713408
    %v1866 = vunpack.c.0.s8 %v1865
    %v1867 = vlaneseq
    %v1868 = vshrl.u32 %v1867, 7
    %v1869 = vsub.s32 %v1866, %v1868
    %v1870 = vrot.slane %v1856, %v1869
    %v1871 = vcombine.high %v1847, 0.0
    %v1872 = vcombine.high %v1854, 0.0
    %v1873 = vcombine.high %v1863, 0.0
    %v1874 = vcombine.high %v1870, 0.0
    %v1875 = vcombine.high %v1758, 0.0
    %v1877 = vunpack.c.l.s4 1983009808
    %v1878 = vunpack.c.0.s8 %v1877
    %v1879 = vlaneseq
    %v1880 = vshrl.u32 %v1879, 7
    %v1881 = vsub.s32 %v1878, %v1880
    %v1882 = vrot.slane %v1758, %v1881
    %v1884 = vunpack.c.l.s4 1983009808
    %v1885 = vunpack.c.0.s8 %v1884
    %v1886 = vlaneseq
    %v1887 = vshrl.u32 %v1886, 7
    %v1888 = vsub.s32 %v1885, %v1887
    %v1889 = vrot.slane %v1875, %v1888
    %v1890 = vcombine.high %v1804, 0.0
    %v1892 = vunpack.c.l.s4 1983009808
    %v1893 = vunpack.c.0.s8 %v1892
    %v1894 = vlaneseq
    %v1895 = vshrl.u32 %v1894, 7
    %v1896 = vsub.s32 %v1893, %v1895
    %v1897 = vrot.slane %v1804, %v1896
    %v1899 = vunpack.c.l.s4 1983009808
    %v1900 = vunpack.c.0.s8 %v1899
    %v1901 = vlaneseq
    %v1902 = vshrl.u32 %v1901, 7
    %v1903 = vsub.s32 %v1900, %v1902
    %v1904 = vrot.slane %v1890, %v1903
    %v1905 = vcombine.low %v1882, %v1897
    %v1906 = vcombine.high %v1882, %v1897
    %v1908 = vunpack.c.l.s4 1934713408
    %v1909 = vunpack.c.0.s8 %v1908
    %v1910 = vlaneseq
    %v1911 = vshrl.u32 %v1910, 7
    %v1912 = vsub.s32 %v1909, %v1911
    %v1913 = vrot.slane %v1905, %v1912
    %v1915 = vunpack.c.l.s4 1934713408
    %v1916 = vunpack.c.0.s8 %v1915
    %v1917 = vlaneseq
    %v1918 = vshrl.u32 %v1917, 7
    %v1919 = vsub.s32 %v1916, %v1918
    %v1920 = vrot.slane %v1906, %v1919
    %v1921 = vcombine.low %v1889, %v1904
    %v1922 = vcombine.high %v1889, %v1904
    %v1924 = vunpack.c.l.s4 1934713408
    %v1925 = vunpack.c.0.s8 %v1924
    %v1926 = vlaneseq
    %v1927 = vshrl.u32 %v1926, 7
    %v1928 = vsub.s32 %v1925, %v1927
    %v1929 = vrot.slane %v1921, %v1928
    %v1931 = vunpack.c.l.s4 1934713408
    %v1932 = vunpack.c.0.s8 %v1931
    %v1933 = vlaneseq
    %v1934 = vshrl.u32 %v1933, 7
    %v1935 = vsub.s32 %v1932, %v1934
    %v1936 = vrot.slane %v1922, %v1935
    %v1937 = vcombine.high %v1913, 0.0
    %v1938 = vcombine.high %v1920, 0.0
    %v1939 = vcombine.high %v1929, 0.0
    %v1940 = vcombine.high %v1936, 0.0
    %v1941 = vcombine.low %v1847, %v1854
    %v1943 = vunpack.c.l.s4 1983009808
    %v1944 = vunpack.c.0.s8 %v1943
    %v1945 = vlaneseq
    %v1946 = vshrl.u32 %v1945, 7
    %v1947 = vsub.s32 %v1944, %v1946
    %v1948 = vrot.slane %v1941, %v1947
    %v1949 = vcombine.low %v1871, %v1872
    %v1951 = vunpack.c.l.s4 1983009808
    %v1952 = vunpack.c.0.s8 %v1951
    %v1953 = vlaneseq
    %v1954 = vshrl.u32 %v1953, 7
    %v1955 = vsub.s32 %v1952, %v1954
    %v1956 = vrot.slane %v1949, %v1955
    %v1957 = vcombine.low %v1863, %v1870
    %v1959 = vunpack.c.l.s4 1983009808
    %v1960 = vunpack.c.0.s8 %v1959
    %v1961 = vlaneseq
    %v1962 = vshrl.u32 %v1961, 7
    %v1963 = vsub.s32 %v1960, %v1962
    %v1964 = vrot.slane %v1957, %v1963
    %v1965 = vcombine.low %v1873, %v1874
    %v1967 = vunpack.c.l.s4 1983009808
    %v1968 = vunpack.c.0.s8 %v1967
    %v1969 = vlaneseq
    %v1970 = vshrl.u32 %v1969, 7
    %v1971 = vsub.s32 %v1968, %v1970
    %v1972 = vrot.slane %v1965, %v1971
    %v1973 = vcombine.low %v1948, %v1956
    %v1975 = vunpack.c.l.s4 1934713408
    %v1976 = vunpack.c.0.s8 %v1975
    %v1977 = vlaneseq
    %v1978 = vshrl.u32 %v1977, 7
    %v1979 = vsub.s32 %v1976, %v1978
    %v1980 = vrot.slane %v1973, %v1979
    %v1981 = vcombine.low %v1964, %v1972
    %v1983 = vunpack.c.l.s4 1934713408
    %v1984 = vunpack.c.0.s8 %v1983
    %v1985 = vlaneseq
    %v1986 = vshrl.u32 %v1985, 7
    %v1987 = vsub.s32 %v1984, %v1986
    %v1988 = vrot.slane %v1981, %v1987
    %v1989 = vcombine.low %v1980, %v1988
    %v1990 = vcombine.high %v1980, %v1988
    %v1991 = vcombine.low %v1913, %v1920
    %v1993 = vunpack.c.l.s4 1983009808
    %v1994 = vunpack.c.0.s8 %v1993
    %v1995 = vlaneseq
    %v1996 = vshrl.u32 %v1995, 7
    %v1997 = vsub.s32 %v1994, %v1996
    %v1998 = vrot.slane %v1991, %v1997
    %v1999 = vcombine.low %v1937, %v1938
    %v2001 = vunpack.c.l.s4 1983009808
    %v2002 = vunpack.c.0.s8 %v2001
    %v2003 = vlaneseq
    %v2004 = vshrl.u32 %v2003, 7
    %v2005 = vsub.s32 %v2002, %v2004
    %v2006 = vrot.slane %v1999, %v2005
    %v2007 = vcombine.low %v1929, %v1936
    %v2009 = vunpack.c.l.s4 1983009808
    %v2010 = vunpack.c.0.s8 %v2009
    %v2011 = vlaneseq
    %v2012 = vshrl.u32 %v2011, 7
    %v2013 = vsub.s32 %v2010, %v2012
    %v2014 = vrot.slane %v2007, %v2013
    %v2015 = vcombine.low %v1939, %v1940
    %v2017 = vunpack.c.l.s4 1983009808
    %v2018 = vunpack.c.0.s8 %v2017
    %v2019 = vlaneseq
    %v2020 = vshrl.u32 %v2019, 7
    %v2021 = vsub.s32 %v2018, %v2020
    %v2022 = vrot.slane %v2015, %v2021
    %v2023 = vcombine.low %v1998, %v2006
    %v2025 = vunpack.c.l.s4 1934713408
    %v2026 = vunpack.c.0.s8 %v2025
    %v2027 = vlaneseq
    %v2028 = vshrl.u32 %v2027, 7
    %v2029 = vsub.s32 %v2026, %v2028
    %v2030 = vrot.slane %v2023, %v2029
    %v2031 = vcombine.low %v2014, %v2022
    %v2033 = vunpack.c.l.s4 1934713408
    %v2034 = vunpack.c.0.s8 %v2033
    %v2035 = vlaneseq
    %v2036 = vshrl.u32 %v2035, 7
    %v2037 = vsub.s32 %v2034, %v2036
    %v2038 = vrot.slane %v2031, %v2037
    %v2039 = vcombine.low %v2030, %v2038
    %v2040 = vcombine.high %v2030, %v2038
    %2043 = vrot.lane.b32.xlu0 %v1990, 64
    %v2044 = vpop.permute.xlu0 %2043
    %2045 = vrot.lane.b32.xlu0 %v2040, 64
    %v2046 = vpop.permute.xlu0 %2045
    %v2049 = vsel %vm1390, %v1989, %v2044
    %v2050 = vsel %vm1390, %v2039, %v2046
    %v2051 = vpack.c.bf16 %v2050, %v2049
    %v2052 = vld [vmem:[#allocation16] sm:$0xf]
    %v2053 = vld [vmem:[#allocation16 + $0x4] sm:$0xf]
    %v2054 = vld [vmem:[#allocation16 + $0x8] sm:$0xf]
    %v2055 = vld [vmem:[#allocation16 + $0xc] sm:$0xf]
    %v2056 = vld [vmem:[#allocation16 + $0x10] sm:$0xf]
    %v2057 = vld [vmem:[#allocation16 + $0x14] sm:$0xf]
    %v2058 = vld [vmem:[#allocation16 + $0x18] sm:$0xf]
    %v2059 = vld [vmem:[#allocation16 + $0x1c] sm:$0xf]
    %v2060 = vld [vmem:[#allocation16 + $0x20] sm:$0xf]
    %v2061 = vld [vmem:[#allocation16 + $0x24] sm:$0xf]
    %v2062 = vld [vmem:[#allocation16 + $0x28] sm:$0xf]
    %v2063 = vld [vmem:[#allocation16 + $0x2c] sm:$0xf]
    %v2064 = vld [vmem:[#allocation16 + $0x30] sm:$0xf]
    %v2065 = vld [vmem:[#allocation16 + $0x34] sm:$0xf]
    %v2066 = vld [vmem:[#allocation16 + $0x38] sm:$0xf]
    %v2067 = vld [vmem:[#allocation16 + $0x3c] sm:$0xf]
    %v2068 = vld [vmem:[#allocation17] sm:$0x1]
    %v2070 = vlaneseq
    %v2071 = vshrl.u32 %v2070, 7
    %v2072 = vsub.s32 0, %v2071
    %v2073 = vrot.slane %v2068, %v2072
    %v2091 = vunpack.c.l.b16 %v2052
    %v2092 = vunpack.c.l.b16 %v2053
    %v2093 = vunpack.c.l.b16 %v2054
    %v2094 = vunpack.c.l.b16 %v2055
    %v2095 = vunpack.c.l.b16 %v2056
    %v2096 = vunpack.c.l.b16 %v2057
    %v2097 = vunpack.c.l.b16 %v2058
    %v2098 = vunpack.c.l.b16 %v2059
    %v2099 = vunpack.c.l.b16 %v2060
    %v2100 = vunpack.c.l.b16 %v2061
    %v2101 = vunpack.c.l.b16 %v2062
    %v2102 = vunpack.c.l.b16 %v2063
    %v2103 = vunpack.c.l.b16 %v2064
    %v2104 = vunpack.c.l.b16 %v2065
    %v2105 = vunpack.c.l.b16 %v2066
    %v2106 = vunpack.c.l.b16 %v2067
    %v2107 = vpack.c.b16 %v2092, %v2091
    %v2108 = vpack.c.b16 %v2094, %v2093
    %v2109 = vpack.c.b16 %v2096, %v2095
    %v2110 = vpack.c.b16 %v2098, %v2097
    %v2111 = vpack.c.b16 %v2100, %v2099
    %v2112 = vpack.c.b16 %v2102, %v2101
    %v2113 = vpack.c.b16 %v2104, %v2103
    %v2114 = vpack.c.b16 %v2106, %v2105
    %2123 = vmatprep.subr.bf16.mxu0 0
    %2124 = vmatpush1.bf16.msra.mxu0 %v2107
    %2125 = vmatprep.subr.bf16.mxu0 0
    %2126 = vmatpush1.bf16.msra.mxu0 %v2108
    %2127 = vmatprep.subr.bf16.mxu0 0
    %2128 = vmatpush1.bf16.msra.mxu0 %v2109
    %2129 = vmatprep.subr.bf16.mxu0 0
    %2130 = vmatpush1.bf16.msra.mxu0 %v2110
    %2131 = vmatprep.subr.bf16.mxu0 0
    %2132 = vmatpush1.bf16.msra.mxu0 %v2111
    %2133 = vmatprep.subr.bf16.mxu0 0
    %2134 = vmatpush1.bf16.msra.mxu0 %v2112
    %2135 = vmatprep.subr.bf16.mxu0 0
    %2136 = vmatpush1.bf16.msra.mxu0 %v2113
    %2137 = vmatprep.subr.bf16.mxu0 0
    %2138 = vmatpush1.bf16.msra.mxu0 %v2114
    %2139 = vmatprep.subr.bf16.mxu0 0
    %2140 = vmatpush1.bf16.msra.mxu0 0
    %2141 = vmatprep.subr.bf16.mxu0 0
    %2142 = vmatpush1.bf16.msra.mxu0 0
    %2143 = vmatprep.subr.bf16.mxu0 0
    %2144 = vmatpush1.bf16.msra.mxu0 0
    %2145 = vmatprep.subr.bf16.mxu0 0
    %2146 = vmatpush1.bf16.msra.mxu0 0
    %2147 = vmatprep.subr.bf16.mxu0 0
    %2148 = vmatpush1.bf16.msra.mxu0 0
    %2149 = vmatprep.subr.bf16.mxu0 0
    %2150 = vmatpush1.bf16.msra.mxu0 0
    %2151 = vmatprep.subr.bf16.mxu0 0
    %2152 = vmatpush1.bf16.msra.mxu0 0
    %2153 = vmatprep.subr.bf16.mxu0 0
    %2154 = vmatpush1.bf16.msra.mxu0 0
    %2155 = vmatprep.mubr.bf16.mxu0 0
    %2156 = vmatmul.mubr.bf16.gmra.mrb[0].mxu0 %v2051
    %v2157 = vpop.f32.mrb[0].mxu0
    %v2158 = vadd.f32 %v2073, %v2157
    %v2159 = vpop.f32.mrb[0].mxu0
    %v2160 = vpop.f32.mrb[0].mxu0
    %v2161 = vadd.f32 %v2073, %v2160
    %v2162 = vpop.f32.mrb[0].mxu0
    %2163 = vdwg.mxu0
    %v2164 = vadd.f32 %v2158, %v360
    %v2165 = vadd.f32 %v2161, %v361
    %2166 = vadd.xlane.f32.xlu0 %v2164
    %v2167 = vpop.xlane.xlu0 %2166
    %2168 = vadd.xlane.f32.xlu0 %v2165
    %v2169 = vpop.xlane.xlu0 %2168
    %v2170 = vmul.f32 %v2167, %v325
    %v2171 = vmul.f32 %v2169, %v325
    %v2172 = vsub.f32 %v2164, %v2170
    %v2173 = vsub.f32 %v2165, %v2171
    %v2174 = vmul.f32 %v2172, %v2172
    %v2175 = vmul.f32 %v2173, %v2173
    %2176 = vadd.xlane.f32.xlu0 %v2174
    %v2177 = vpop.xlane.xlu0 %2176
    %2178 = vadd.xlane.f32.xlu0 %v2175
    %v2179 = vpop.xlane.xlu0 %2178
    %v2180 = vmul.f32 %v2177, %v325
    %v2181 = vmul.f32 %v2179, %v325
    %v2182 = vadd.f32 %v2180, 1e-12
    %v2183 = vadd.f32 %v2181, 1e-12
    %v2184 = vrsqrt.pop %v2182
    %v2185 = vrsqrt.pop %v2183
    %v2186 = vmul.f32 %v2172, %v2184
    %v2187 = vmul.f32 %v2173, %v2185
    %v2188 = vld [vmem:[#allocation19] sm:$0x1]
    %v2190 = vlaneseq
    %v2191 = vshrl.u32 %v2190, 7
    %v2192 = vsub.s32 0, %v2191
    %v2193 = vrot.slane %v2188, %v2192
    %v2195 = vmul.f32 %v2186, %v2193
    %v2196 = vmul.f32 %v2187, %v2193
    %v2197 = vld [vmem:[#allocation20] sm:$0x1]
    %v2199 = vlaneseq
    %v2200 = vshrl.u32 %v2199, 7
    %v2201 = vsub.s32 0, %v2200
    %v2202 = vrot.slane %v2197, %v2201
    %v2204 = vadd.f32 %v2195, %v2202
    %v2205 = vadd.f32 %v2196, %v2202
    %v2206 = vpack.c.bf16 %v2205, %v2204
    %v2207 = vld [vmem:[#allocation22] sm:$0xff]
    %v2208 = vld [vmem:[#allocation22 + $0x8] sm:$0xff]
    %v2209 = vld [vmem:[#allocation22 + $0x10] sm:$0xff]
    %v2210 = vld [vmem:[#allocation22 + $0x18] sm:$0xff]
    %v2211 = vld [vmem:[#allocation22 + $0x20] sm:$0xff]
    %v2212 = vld [vmem:[#allocation22 + $0x28] sm:$0xff]
    %v2213 = vld [vmem:[#allocation22 + $0x30] sm:$0xff]
    %v2214 = vld [vmem:[#allocation22 + $0x38] sm:$0xff]
    %v2215 = vld [vmem:[#allocation22 + $0x40] sm:$0xff]
    %v2216 = vld [vmem:[#allocation22 + $0x48] sm:$0xff]
    %v2217 = vld [vmem:[#allocation22 + $0x50] sm:$0xff]
    %v2218 = vld [vmem:[#allocation22 + $0x58] sm:$0xff]
    %v2219 = vld [vmem:[#allocation22 + $0x60] sm:$0xff]
    %v2220 = vld [vmem:[#allocation22 + $0x68] sm:$0xff]
    %v2221 = vld [vmem:[#allocation22 + $0x70] sm:$0xff]
    %v2222 = vld [vmem:[#allocation22 + $0x78] sm:$0xff]
    %v2223 = vld [vmem:[%s13] sm:$0x3]
    %v2225 = vlaneseq
    %v2226 = vshrl.u32 %v2225, 7
    %v2227 = vsub.s32 0, %v2226
    %v2228 = vrot.slane %v2223, %v2227
    %v2229 = vlaneseq
    %v2230 = vshrl.u32 %v2229, 7
    %v2231 = vsub.s32 1, %v2230
    %v2232 = vrot.slane %v2223, %v2231
    %v2251 = vunpack.c.l.b16 %v2207
    %v2252 = vunpack.c.h.b16 %v2207
    %v2253 = vunpack.c.l.b16 %v2208
    %v2254 = vunpack.c.h.b16 %v2208
    %v2255 = vunpack.c.l.b16 %v2209
    %v2256 = vunpack.c.h.b16 %v2209
    %v2257 = vunpack.c.l.b16 %v2210
    %v2258 = vunpack.c.h.b16 %v2210
    %v2259 = vunpack.c.l.b16 %v2211
    %v2260 = vunpack.c.h.b16 %v2211
    %v2261 = vunpack.c.l.b16 %v2212
    %v2262 = vunpack.c.h.b16 %v2212
    %v2263 = vunpack.c.l.b16 %v2213
    %v2264 = vunpack.c.h.b16 %v2213
    %v2265 = vunpack.c.l.b16 %v2214
    %v2266 = vunpack.c.h.b16 %v2214
    %v2267 = vunpack.c.l.b16 %v2215
    %v2268 = vunpack.c.h.b16 %v2215
    %v2269 = vunpack.c.l.b16 %v2216
    %v2270 = vunpack.c.h.b16 %v2216
    %v2271 = vunpack.c.l.b16 %v2217
    %v2272 = vunpack.c.h.b16 %v2217
    %v2273 = vunpack.c.l.b16 %v2218
    %v2274 = vunpack.c.h.b16 %v2218
    %v2275 = vunpack.c.l.b16 %v2219
    %v2276 = vunpack.c.h.b16 %v2219
    %v2277 = vunpack.c.l.b16 %v2220
    %v2278 = vunpack.c.h.b16 %v2220
    %v2279 = vunpack.c.l.b16 %v2221
    %v2280 = vunpack.c.h.b16 %v2221
    %v2281 = vunpack.c.l.b16 %v2222
    %v2282 = vunpack.c.h.b16 %v2222
    %v2283 = vpack.c.b16 %v2253, %v2251
    %v2284 = vpack.c.b16 %v2254, %v2252
    %v2285 = vpack.c.b16 %v2257, %v2255
    %v2286 = vpack.c.b16 %v2258, %v2256
    %v2287 = vpack.c.b16 %v2261, %v2259
    %v2288 = vpack.c.b16 %v2262, %v2260
    %v2289 = vpack.c.b16 %v2265, %v2263
    %v2290 = vpack.c.b16 %v2266, %v2264
    %v2291 = vpack.c.b16 %v2269, %v2267
    %v2292 = vpack.c.b16 %v2270, %v2268
    %v2293 = vpack.c.b16 %v2273, %v2271
    %v2294 = vpack.c.b16 %v2274, %v2272
    %v2295 = vpack.c.b16 %v2277, %v2275
    %v2296 = vpack.c.b16 %v2278, %v2276
    %v2297 = vpack.c.b16 %v2281, %v2279
    %v2298 = vpack.c.b16 %v2282, %v2280
    %2315 = vmatprep.subr.bf16.mxu0 %v2284
    %2316 = vmatpush1.bf16.msra.mxu0 %v2283
    %2317 = vmatprep.subr.bf16.mxu0 %v2286
    %2318 = vmatpush1.bf16.msra.mxu0 %v2285
    %2319 = vmatprep.subr.bf16.mxu0 %v2288
    %2320 = vmatpush1.bf16.msra.mxu0 %v2287
    %2321 = vmatprep.subr.bf16.mxu0 %v2290
    %2322 = vmatpush1.bf16.msra.mxu0 %v2289
    %2323 = vmatprep.subr.bf16.mxu0 %v2292
    %2324 = vmatpush1.bf16.msra.mxu0 %v2291
    %2325 = vmatprep.subr.bf16.mxu0 %v2294
    %2326 = vmatpush1.bf16.msra.mxu0 %v2293
    %2327 = vmatprep.subr.bf16.mxu0 %v2296
    %2328 = vmatpush1.bf16.msra.mxu0 %v2295
    %2329 = vmatprep.subr.bf16.mxu0 %v2298
    %2330 = vmatpush1.bf16.msra.mxu0 %v2297
    %2331 = vmatprep.subr.bf16.mxu0 0
    %2332 = vmatpush1.bf16.msra.mxu0 0
    %2333 = vmatprep.subr.bf16.mxu0 0
    %2334 = vmatpush1.bf16.msra.mxu0 0
    %2335 = vmatprep.subr.bf16.mxu0 0
    %2336 = vmatpush1.bf16.msra.mxu0 0
    %2337 = vmatprep.subr.bf16.mxu0 0
    %2338 = vmatpush1.bf16.msra.mxu0 0
    %2339 = vmatprep.subr.bf16.mxu0 0
    %2340 = vmatpush1.bf16.msra.mxu0 0
    %2341 = vmatprep.subr.bf16.mxu0 0
    %2342 = vmatpush1.bf16.msra.mxu0 0
    %2343 = vmatprep.subr.bf16.mxu0 0
    %2344 = vmatpush1.bf16.msra.mxu0 0
    %2345 = vmatprep.subr.bf16.mxu0 0
    %2346 = vmatpush1.bf16.msra.mxu0 0
    %2347 = vmatprep.mubr.bf16.mxu0 0
    %2348 = vmatmul.mubr.bf16.gmra.mrb[0].mxu0 %v2206
    %v2349 = vpop.f32.mrb[0].mxu0
    %v2350 = vadd.f32 %v2228, %v2349
    %v2351 = vpop.f32.mrb[0].mxu0
    %v2352 = vadd.f32 %v2232, %v2351
    %v2353 = vpop.f32.mrb[0].mxu0
    %v2354 = vadd.f32 %v2228, %v2353
    %v2355 = vpop.f32.mrb[0].mxu0
    %v2356 = vadd.f32 %v2232, %v2355
    %2357 = vdwg.mxu0
    %v2358 = vmul.f32 %v2350, %v2350
    %v2359 = vmul.f32 %v2352, %v2352
    %v2360 = vmul.f32 %v2354, %v2354
    %v2361 = vmul.f32 %v2356, %v2356
    %v2362 = vmul.f32 %v2350, %v2358
    %v2363 = vmul.f32 %v2352, %v2359
    %v2364 = vmul.f32 %v2354, %v2360
    %v2365 = vmul.f32 %v2356, %v2361
    %v2366 = vmul.f32 %v2362, 0.044715
    %v2367 = vmul.f32 %v2363, 0.044715
    %v2368 = vmul.f32 %v2364, 0.044715
    %v2369 = vmul.f32 %v2365, 0.044715
    %v2370 = vadd.f32 %v2350, %v2366
    %v2371 = vadd.f32 %v2352, %v2367
    %v2372 = vadd.f32 %v2354, %v2368
    %v2373 = vadd.f32 %v2356, %v2369
    %v2374 = vmul.f32 %v2370, 0.7978846
    %v2375 = vmul.f32 %v2371, 0.7978846
    %v2376 = vmul.f32 %v2372, 0.7978846
    %v2377 = vmul.f32 %v2373, 0.7978846
    %v2378 = vtanh.pop %v2374
    %v2379 = vtanh.pop %v2375
    %v2380 = vtanh.pop %v2376
    %v2381 = vtanh.pop %v2377
    %v2382 = vadd.f32 %v2378, 1.0
    %v2383 = vadd.f32 %v2379, 1.0
    %v2384 = vadd.f32 %v2380, 1.0
    %v2385 = vadd.f32 %v2381, 1.0
    %v2386 = vmul.f32 %v2382, 0.5
    %v2387 = vmul.f32 %v2383, 0.5
    %v2388 = vmul.f32 %v2384, 0.5
    %v2389 = vmul.f32 %v2385, 0.5
    %v2390 = vmul.f32 %v2350, %v2386
    %v2391 = vmul.f32 %v2352, %v2387
    %v2392 = vmul.f32 %v2354, %v2388
    %v2393 = vmul.f32 %v2356, %v2389
    %v2394 = vpack.c.bf16 %v2392, %v2390
    %v2395 = vpack.c.bf16 %v2393, %v2391
    %v2396 = vld [vmem:[#allocation23] sm:$0xf]
    %v2397 = vld [vmem:[#allocation23 + $0x4] sm:$0xf]
    %v2398 = vld [vmem:[#allocation23 + $0x8] sm:$0xf]
    %v2399 = vld [vmem:[#allocation23 + $0xc] sm:$0xf]
    %v2400 = vld [vmem:[#allocation23 + $0x10] sm:$0xf]
    %v2401 = vld [vmem:[#allocation23 + $0x14] sm:$0xf]
    %v2402 = vld [vmem:[#allocation23 + $0x18] sm:$0xf]
    %v2403 = vld [vmem:[#allocation23 + $0x1c] sm:$0xf]
    %v2404 = vld [vmem:[#allocation23 + $0x20] sm:$0xf]
    %v2405 = vld [vmem:[#allocation23 + $0x24] sm:$0xf]
    %v2406 = vld [vmem:[#allocation23 + $0x28] sm:$0xf]
    %v2407 = vld [vmem:[#allocation23 + $0x2c] sm:$0xf]
    %v2408 = vld [vmem:[#allocation23 + $0x30] sm:$0xf]
    %v2409 = vld [vmem:[#allocation23 + $0x34] sm:$0xf]
    %v2410 = vld [vmem:[#allocation23 + $0x38] sm:$0xf]
    %v2411 = vld [vmem:[#allocation23 + $0x3c] sm:$0xf]
    %v2412 = vld [vmem:[#allocation23 + $0x40] sm:$0xf]
    %v2413 = vld [vmem:[#allocation23 + $0x44] sm:$0xf]
    %v2414 = vld [vmem:[#allocation23 + $0x48] sm:$0xf]
    %v2415 = vld [vmem:[#allocation23 + $0x4c] sm:$0xf]
    %v2416 = vld [vmem:[#allocation23 + $0x50] sm:$0xf]
    %v2417 = vld [vmem:[#allocation23 + $0x54] sm:$0xf]
    %v2418 = vld [vmem:[#allocation23 + $0x58] sm:$0xf]
    %v2419 = vld [vmem:[#allocation23 + $0x5c] sm:$0xf]
    %v2420 = vld [vmem:[#allocation23 + $0x60] sm:$0xf]
    %v2421 = vld [vmem:[#allocation23 + $0x64] sm:$0xf]
    %v2422 = vld [vmem:[#allocation23 + $0x68] sm:$0xf]
    %v2423 = vld [vmem:[#allocation23 + $0x6c] sm:$0xf]
    %v2424 = vld [vmem:[#allocation23 + $0x70] sm:$0xf]
    %v2425 = vld [vmem:[#allocation23 + $0x74] sm:$0xf]
    %v2426 = vld [vmem:[#allocation23 + $0x78] sm:$0xf]
    %v2427 = vld [vmem:[#allocation23 + $0x7c] sm:$0xf]
    %v2428 = vld [vmem:[#allocation25] sm:$0x1]
    %v2430 = vlaneseq
    %v2431 = vshrl.u32 %v2430, 7
    %v2432 = vsub.s32 0, %v2431
    %v2433 = vrot.slane %v2428, %v2432
    %v2467 = vunpack.c.l.b16 %v2396
    %v2468 = vunpack.c.l.b16 %v2397
    %v2469 = vunpack.c.l.b16 %v2398
    %v2470 = vunpack.c.l.b16 %v2399
    %v2471 = vunpack.c.l.b16 %v2400
    %v2472 = vunpack.c.l.b16 %v2401
    %v2473 = vunpack.c.l.b16 %v2402
    %v2474 = vunpack.c.l.b16 %v2403
    %v2475 = vunpack.c.l.b16 %v2404
    %v2476 = vunpack.c.l.b16 %v2405
    %v2477 = vunpack.c.l.b16 %v2406
    %v2478 = vunpack.c.l.b16 %v2407
    %v2479 = vunpack.c.l.b16 %v2408
    %v2480 = vunpack.c.l.b16 %v2409
    %v2481 = vunpack.c.l.b16 %v2410
    %v2482 = vunpack.c.l.b16 %v2411
    %v2483 = vunpack.c.l.b16 %v2412
    %v2484 = vunpack.c.l.b16 %v2413
    %v2485 = vunpack.c.l.b16 %v2414
    %v2486 = vunpack.c.l.b16 %v2415
    %v2487 = vunpack.c.l.b16 %v2416
    %v2488 = vunpack.c.l.b16 %v2417
    %v2489 = vunpack.c.l.b16 %v2418
    %v2490 = vunpack.c.l.b16 %v2419
    %v2491 = vunpack.c.l.b16 %v2420
    %v2492 = vunpack.c.l.b16 %v2421
    %v2493 = vunpack.c.l.b16 %v2422
    %v2494 = vunpack.c.l.b16 %v2423
    %v2495 = vunpack.c.l.b16 %v2424
    %v2496 = vunpack.c.l.b16 %v2425
    %v2497 = vunpack.c.l.b16 %v2426
    %v2498 = vunpack.c.l.b16 %v2427
    %v2499 = vpack.c.b16 %v2468, %v2467
    %v2500 = vpack.c.b16 %v2470, %v2469
    %v2501 = vpack.c.b16 %v2472, %v2471
    %v2502 = vpack.c.b16 %v2474, %v2473
    %v2503 = vpack.c.b16 %v2476, %v2475
    %v2504 = vpack.c.b16 %v2478, %v2477
    %v2505 = vpack.c.b16 %v2480, %v2479
    %v2506 = vpack.c.b16 %v2482, %v2481
    %v2507 = vpack.c.b16 %v2484, %v2483
    %v2508 = vpack.c.b16 %v2486, %v2485
    %v2509 = vpack.c.b16 %v2488, %v2487
    %v2510 = vpack.c.b16 %v2490, %v2489
    %v2511 = vpack.c.b16 %v2492, %v2491
    %v2512 = vpack.c.b16 %v2494, %v2493
    %v2513 = vpack.c.b16 %v2496, %v2495
    %v2514 = vpack.c.b16 %v2498, %v2497
    %2531 = vmatprep.subr.bf16.mxu0 0
    %2532 = vmatpush1.bf16.msra.mxu0 %v2499
    %2533 = vmatprep.subr.bf16.mxu0 0
    %2534 = vmatpush1.bf16.msra.mxu0 %v2500
    %2535 = vmatprep.subr.bf16.mxu0 0
    %2536 = vmatpush1.bf16.msra.mxu0 %v2501
    %2537 = vmatprep.subr.bf16.mxu0 0
    %2538 = vmatpush1.bf16.msra.mxu0 %v2502
    %2539 = vmatprep.subr.bf16.mxu0 0
    %2540 = vmatpush1.bf16.msra.mxu0 %v2503
    %2541 = vmatprep.subr.bf16.mxu0 0
    %2542 = vmatpush1.bf16.msra.mxu0 %v2504
    %2543 = vmatprep.subr.bf16.mxu0 0
    %2544 = vmatpush1.bf16.msra.mxu0 %v2505
    %2545 = vmatprep.subr.bf16.mxu0 0
    %2546 = vmatpush1.bf16.msra.mxu0 %v2506
    %2547 = vmatprep.subr.bf16.mxu0 0
    %2548 = vmatpush1.bf16.msra.mxu0 %v2507
    %2549 = vmatprep.subr.bf16.mxu0 0
    %2550 = vmatpush1.bf16.msra.mxu0 %v2508
    %2551 = vmatprep.subr.bf16.mxu0 0
    %2552 = vmatpush1.bf16.msra.mxu0 %v2509
    %2553 = vmatprep.subr.bf16.mxu0 0
    %2554 = vmatpush1.bf16.msra.mxu0 %v2510
    %2555 = vmatprep.subr.bf16.mxu0 0
    %2556 = vmatpush1.bf16.msra.mxu0 %v2511
    %2557 = vmatprep.subr.bf16.mxu0 0
    %2558 = vmatpush1.bf16.msra.mxu0 %v2512
    %2559 = vmatprep.subr.bf16.mxu0 0
    %2560 = vmatpush1.bf16.msra.mxu0 %v2513
    %2561 = vmatprep.subr.bf16.mxu0 0
    %2562 = vmatpush1.bf16.msra.mxu0 %v2514
    %2563 = vmatprep.mubr.bf16.mxu0 %v2395
    %2564 = vmatmul.mubr.bf16.gmra.mrb[0].mxu0 %v2394
    %v2565 = vpop.f32.mrb[0].mxu0
    %v2566 = vadd.f32 %v2433, %v2565
    %v2567 = vpop.f32.mrb[0].mxu0
    %v2568 = vpop.f32.mrb[0].mxu0
    %v2569 = vadd.f32 %v2433, %v2568
    %v2570 = vpop.f32.mrb[0].mxu0
    %2571 = vdwg.mxu0
    %v2572 = vadd.f32 %v2566, %v2204
    %v2573 = vadd.f32 %v2569, %v2205
    %2574 = vadd.xlane.f32.xlu0 %v2572
    %v2575 = vpop.xlane.xlu0 %2574
    %2576 = vadd.xlane.f32.xlu0 %v2573
    %v2577 = vpop.xlane.xlu0 %2576
    %v2578 = vmul.f32 %v2575, %v325
    %v2579 = vmul.f32 %v2577, %v325
    %v2580 = vsub.f32 %v2572, %v2578
    %v2581 = vsub.f32 %v2573, %v2579
    %v2582 = vmul.f32 %v2580, %v2580
    %v2583 = vmul.f32 %v2581, %v2581
    %2584 = vadd.xlane.f32.xlu0 %v2582
    %v2585 = vpop.xlane.xlu0 %2584
    %2586 = vadd.xlane.f32.xlu0 %v2583
    %v2587 = vpop.xlane.xlu0 %2586
    %v2588 = vmul.f32 %v2585, %v325
    %v2589 = vmul.f32 %v2587, %v325
    %v2590 = vadd.f32 %v2588, 1e-12
    %v2591 = vadd.f32 %v2589, 1e-12
    %v2592 = vrsqrt.pop %v2590
    %v2593 = vrsqrt.pop %v2591
    %v2594 = vmul.f32 %v2580, %v2592
    %v2595 = vmul.f32 %v2581, %v2593
    %v2596 = vld [vmem:[#allocation26] sm:$0x1]
    %v2598 = vlaneseq
    %v2599 = vshrl.u32 %v2598, 7
    %v2600 = vsub.s32 0, %v2599
    %v2601 = vrot.slane %v2596, %v2600
    %v2603 = vmul.f32 %v2594, %v2601
    %v2604 = vmul.f32 %v2595, %v2601
    %v2605 = vld [vmem:[#allocation28] sm:$0x1]
    %v2607 = vlaneseq
    %v2608 = vshrl.u32 %v2607, 7
    %v2609 = vsub.s32 0, %v2608
    %v2610 = vrot.slane %v2605, %v2609
    %v2612 = vadd.f32 %v2603, %v2610
    %v2613 = vadd.f32 %v2604, %v2610
    %v2614 = vpack.c.bf16 %v2613, %v2612
    %s2615 = scalar_lea.vmem [#allocation13], 192
    %v2616 = vld [vmem:[%s2615] sm:$0xff]
    %v2617 = vld [vmem:[%s2615 + $0x8] sm:$0xf]
    %v2618 = vld [vmem:[%s2615 + $0xc] sm:$0xff]
    %v2619 = vld [vmem:[%s2615 + $0x14] sm:$0xf]
    %v2620 = vld [vmem:[%s2615 + $0x18] sm:$0xff]
    %v2621 = vld [vmem:[%s2615 + $0x20] sm:$0xf]
    %v2622 = vld [vmem:[%s2615 + $0x24] sm:$0xff]
    %v2623 = vld [vmem:[%s2615 + $0x2c] sm:$0xf]
    %v2624 = vld [vmem:[%s2615 + $0x30] sm:$0xff]
    %v2625 = vld [vmem:[%s2615 + $0x38] sm:$0xf]
    %v2626 = vld [vmem:[%s2615 + $0x3c] sm:$0xff]
    %v2627 = vld [vmem:[%s2615 + $0x44] sm:$0xf]
    %v2628 = vld [vmem:[%s2615 + $0x48] sm:$0xff]
    %v2629 = vld [vmem:[%s2615 + $0x50] sm:$0xf]
    %v2630 = vld [vmem:[%s2615 + $0x54] sm:$0xff]
    %v2631 = vld [vmem:[%s2615 + $0x5c] sm:$0xf]
    %v2632 = vld [vmem:[%s2615 + $0x60] sm:$0xff]
    %v2633 = vld [vmem:[%s2615 + $0x68] sm:$0xf]
    %v2634 = vld [vmem:[%s2615 + $0x6c] sm:$0xff]
    %v2635 = vld [vmem:[%s2615 + $0x74] sm:$0xf]
    %v2636 = vld [vmem:[%s2615 + $0x78] sm:$0xff]
    %v2637 = vld [vmem:[%s2615 + $0x80] sm:$0xf]
    %v2638 = vld [vmem:[%s2615 + $0x84] sm:$0xff]
    %v2639 = vld [vmem:[%s2615 + $0x8c] sm:$0xf]
    %v2640 = vld [vmem:[%s2615 + $0x90] sm:$0xff]
    %v2641 = vld [vmem:[%s2615 + $0x98] sm:$0xf]
    %v2642 = vld [vmem:[%s2615 + $0x9c] sm:$0xff]
    %v2643 = vld [vmem:[%s2615 + $0xa4] sm:$0xf]
    %v2644 = vld [vmem:[%s2615 + $0xa8] sm:$0xff]
    %v2645 = vld [vmem:[%s2615 + $0xb0] sm:$0xf]
    %v2646 = vld [vmem:[%s2615 + $0xb4] sm:$0xff]
    %v2647 = vld [vmem:[%s2615 + $0xbc] sm:$0xf]
    %s2648 = scalar_lea.vmem [#allocation14], 3
    %v2649 = vld [vmem:[%s2648] sm:$0x7]
    %v2651 = vlaneseq
    %v2652 = vshrl.u32 %v2651, 7
    %v2653 = vsub.s32 0, %v2652
    %v2654 = vrot.slane %v2649, %v2653
    %v2655 = vlaneseq
    %v2656 = vshrl.u32 %v2655, 7
    %v2657 = vsub.s32 1, %v2656
    %v2658 = vrot.slane %v2649, %v2657
    %v2659 = vlaneseq
    %v2660 = vshrl.u32 %v2659, 7
    %v2661 = vsub.s32 2, %v2660
    %v2662 = vrot.slane %v2649, %v2661
    %v2698 = vunpack.c.l.b16 %v2616
    %v2699 = vunpack.c.h.b16 %v2616
    %v2700 = vunpack.c.l.b16 %v2617
    %v2701 = vunpack.c.l.b16 %v2618
    %v2702 = vunpack.c.h.b16 %v2618
    %v2703 = vunpack.c.l.b16 %v2619
    %v2704 = vunpack.c.l.b16 %v2620
    %v2705 = vunpack.c.h.b16 %v2620
    %v2706 = vunpack.c.l.b16 %v2621
    %v2707 = vunpack.c.l.b16 %v2622
    %v2708 = vunpack.c.h.b16 %v2622
    %v2709 = vunpack.c.l.b16 %v2623
    %v2710 = vunpack.c.l.b16 %v2624
    %v2711 = vunpack.c.h.b16 %v2624
    %v2712 = vunpack.c.l.b16 %v2625
    %v2713 = vunpack.c.l.b16 %v2626
    %v2714 = vunpack.c.h.b16 %v2626
    %v2715 = vunpack.c.l.b16 %v2627
    %v2716 = vunpack.c.l.b16 %v2628
    %v2717 = vunpack.c.h.b16 %v2628
    %v2718 = vunpack.c.l.b16 %v2629
    %v2719 = vunpack.c.l.b16 %v2630
    %v2720 = vunpack.c.h.b16 %v2630
    %v2721 = vunpack.c.l.b16 %v2631
    %v2722 = vunpack.c.l.b16 %v2632
    %v2723 = vunpack.c.h.b16 %v2632
    %v2724 = vunpack.c.l.b16 %v2633
    %v2725 = vunpack.c.l.b16 %v2634
    %v2726 = vunpack.c.h.b16 %v2634
    %v2727 = vunpack.c.l.b16 %v2635
    %v2728 = vunpack.c.l.b16 %v2636
    %v2729 = vunpack.c.h.b16 %v2636
    %v2730 = vunpack.c.l.b16 %v2637
    %v2731 = vunpack.c.l.b16 %v2638
    %v2732 = vunpack.c.h.b16 %v2638
    %v2733 = vunpack.c.l.b16 %v2639
    %v2734 = vunpack.c.l.b16 %v2640
    %v2735 = vunpack.c.h.b16 %v2640
    %v2736 = vunpack.c.l.b16 %v2641
    %v2737 = vunpack.c.l.b16 %v2642
    %v2738 = vunpack.c.h.b16 %v2642
    %v2739 = vunpack.c.l.b16 %v2643
    %v2740 = vunpack.c.l.b16 %v2644
    %v2741 = vunpack.c.h.b16 %v2644
    %v2742 = vunpack.c.l.b16 %v2645
    %v2743 = vunpack.c.l.b16 %v2646
    %v2744 = vunpack.c.h.b16 %v2646
    %v2745 = vunpack.c.l.b16 %v2647
    %v2746 = vpack.c.b16 %v2701, %v2698
    %v2747 = vpack.c.b16 %v2702, %v2699
    %v2748 = vpack.c.b16 %v2703, %v2700
    %v2749 = vpack.c.b16 %v2707, %v2704
    %v2750 = vpack.c.b16 %v2708, %v2705
    %v2751 = vpack.c.b16 %v2709, %v2706
    %v2752 = vpack.c.b16 %v2713, %v2710
    %v2753 = vpack.c.b16 %v2714, %v2711
    %v2754 = vpack.c.b16 %v2715, %v2712
    %v2755 = vpack.c.b16 %v2719, %v2716
    %v2756 = vpack.c.b16 %v2720, %v2717
    %v2757 = vpack.c.b16 %v2721, %v2718
    %v2758 = vpack.c.b16 %v2725, %v2722
    %v2759 = vpack.c.b16 %v2726, %v2723
    %v2760 = vpack.c.b16 %v2727, %v2724
    %v2761 = vpack.c.b16 %v2731, %v2728
    %v2762 = vpack.c.b16 %v2732, %v2729
    %v2763 = vpack.c.b16 %v2733, %v2730
    %v2764 = vpack.c.b16 %v2737, %v2734
    %v2765 = vpack.c.b16 %v2738, %v2735
    %v2766 = vpack.c.b16 %v2739, %v2736
    %v2767 = vpack.c.b16 %v2743, %v2740
    %v2768 = vpack.c.b16 %v2744, %v2741
    %v2769 = vpack.c.b16 %v2745, %v2742
    %2794 = vmatprep.subr.bf16.mxu0 %v2747
    %2795 = vmatpush1.bf16.msra.mxu0 %v2746
    %2796 = vmatprep.subr.bf16.mxu0 %v2750
    %2797 = vmatpush1.bf16.msra.mxu0 %v2749
    %2798 = vmatprep.subr.bf16.mxu0 %v2753
    %2799 = vmatpush1.bf16.msra.mxu0 %v2752
    %2800 = vmatprep.subr.bf16.mxu0 %v2756
    %2801 = vmatpush1.bf16.msra.mxu0 %v2755
    %2802 = vmatprep.subr.bf16.mxu0 %v2759
    %2803 = vmatpush1.bf16.msra.mxu0 %v2758
    %2804 = vmatprep.subr.bf16.mxu0 %v2762
    %2805 = vmatpush1.bf16.msra.mxu0 %v2761
    %2806 = vmatprep.subr.bf16.mxu0 %v2765
    %2807 = vmatpush1.bf16.msra.mxu0 %v2764
    %2808 = vmatprep.subr.bf16.mxu0 %v2768
    %2809 = vmatpush1.bf16.msra.mxu0 %v2767
    %2810 = vmatprep.subr.bf16.mxu0 0
    %2811 = vmatpush1.bf16.msra.mxu0 0
    %2812 = vmatprep.subr.bf16.mxu0 0
    %2813 = vmatpush1.bf16.msra.mxu0 0
    %2814 = vmatprep.subr.bf16.mxu0 0
    %2815 = vmatpush1.bf16.msra.mxu0 0
    %2816 = vmatprep.subr.bf16.mxu0 0
    %2817 = vmatpush1.bf16.msra.mxu0 0
    %2818 = vmatprep.subr.bf16.mxu0 0
    %2819 = vmatpush1.bf16.msra.mxu0 0
    %2820 = vmatprep.subr.bf16.mxu0 0
    %2821 = vmatpush1.bf16.msra.mxu0 0
    %2822 = vmatprep.subr.bf16.mxu0 0
    %2823 = vmatpush1.bf16.msra.mxu0 0
    %2824 = vmatprep.subr.bf16.mxu0 0
    %2825 = vmatpush1.bf16.msra.mxu0 0
    %2826 = vmatprep.mubr.bf16.mxu0 0
    %2827 = vmatmul.mubr.bf16.gmra.mrb[0].mxu0 %v2614
    %v2828 = vpop.f32.mrb[0].mxu0
    %v2829 = vadd.f32 %v2654, %v2828
    %v2830 = vpop.f32.mrb[0].mxu0
    %v2831 = vadd.f32 %v2658, %v2830
    %v2832 = vpop.f32.mrb[0].mxu0
    %v2833 = vadd.f32 %v2654, %v2832
    %v2834 = vpop.f32.mrb[0].mxu0
    %v2835 = vadd.f32 %v2658, %v2834
    %2836 = vdwg.mxu0
    %2837 = vmatprep.subr.bf16.mxu0 0
    %2838 = vmatpush1.bf16.msra.mxu0 %v2748
    %2839 = vmatprep.subr.bf16.mxu0 0
    %2840 = vmatpush1.bf16.msra.mxu0 %v2751
    %2841 = vmatprep.subr.bf16.mxu0 0
    %2842 = vmatpush1.bf16.msra.mxu0 %v2754
    %2843 = vmatprep.subr.bf16.mxu0 0
    %2844 = vmatpush1.bf16.msra.mxu0 %v2757
    %2845 = vmatprep.subr.bf16.mxu0 0
    %2846 = vmatpush1.bf16.msra.mxu0 %v2760
    %2847 = vmatprep.subr.bf16.mxu0 0
    %2848 = vmatpush1.bf16.msra.mxu0 %v2763
    %2849 = vmatprep.subr.bf16.mxu0 0
    %2850 = vmatpush1.bf16.msra.mxu0 %v2766
    %2851 = vmatprep.subr.bf16.mxu0 0
    %2852 = vmatpush1.bf16.msra.mxu0 %v2769
    %2853 = vmatprep.subr.bf16.mxu0 0
    %2854 = vmatpush1.bf16.msra.mxu0 0
    %2855 = vmatprep.subr.bf16.mxu0 0
    %2856 = vmatpush1.bf16.msra.mxu0 0
    %2857 = vmatprep.subr.bf16.mxu0 0
    %2858 = vmatpush1.bf16.msra.mxu0 0
    %2859 = vmatprep.subr.bf16.mxu0 0
    %2860 = vmatpush1.bf16.msra.mxu0 0
    %2861 = vmatprep.subr.bf16.mxu0 0
    %2862 = vmatpush1.bf16.msra.mxu0 0
    %2863 = vmatprep.subr.bf16.mxu0 0
    %2864 = vmatpush1.bf16.msra.mxu0 0
    %2865 = vmatprep.subr.bf16.mxu0 0
    %2866 = vmatpush1.bf16.msra.mxu0 0
    %2867 = vmatprep.subr.bf16.mxu0 0
    %2868 = vmatpush1.bf16.msra.mxu0 0
    %2869 = vmatprep.mubr.bf16.mxu0 0
    %2870 = vmatmul.mubr.bf16.gmra.mrb[0].mxu0 %v2614
    %v2871 = vpop.f32.mrb[0].mxu0
    %v2872 = vadd.f32 %v2662, %v2871
    %v2873 = vpop.f32.mrb[0].mxu0
    %v2874 = vpop.f32.mrb[0].mxu0
    %v2875 = vadd.f32 %v2662, %v2874
    %v2876 = vpop.f32.mrb[0].mxu0
    %2877 = vdwg.mxu0
    %2880 = vrot.lane.b32.xlu0 %v2829, 64
    %v2881 = vpop.permute.xlu0 %2880
    %2882 = vrot.lane.b32.xlu0 %v2833, 64
    %v2883 = vpop.permute.xlu0 %2882
    %v2886 = vcombine.high %v2829, 0.0
    %v2888 = vunpack.c.l.s4 1983009808
    %v2889 = vunpack.c.0.s8 %v2888
    %v2890 = vlaneseq
    %v2891 = vshrl.u32 %v2890, 7
    %v2892 = vsub.s32 %v2889, %v2891
    %v2893 = vrot.slane %v2829, %v2892
    %v2895 = vunpack.c.l.s4 1983009808
    %v2896 = vunpack.c.0.s8 %v2895
    %v2897 = vlaneseq
    %v2898 = vshrl.u32 %v2897, 7
    %v2899 = vsub.s32 %v2896, %v2898
    %v2900 = vrot.slane %v2886, %v2899
    %v2901 = vcombine.high %v2881, 0.0
    %v2903 = vunpack.c.l.s4 1983009808
    %v2904 = vunpack.c.0.s8 %v2903
    %v2905 = vlaneseq
    %v2906 = vshrl.u32 %v2905, 7
    %v2907 = vsub.s32 %v2904, %v2906
    %v2908 = vrot.slane %v2881, %v2907
    %v2910 = vunpack.c.l.s4 1983009808
    %v2911 = vunpack.c.0.s8 %v2910
    %v2912 = vlaneseq
    %v2913 = vshrl.u32 %v2912, 7
    %v2914 = vsub.s32 %v2911, %v2913
    %v2915 = vrot.slane %v2901, %v2914
    %v2916 = vcombine.low %v2893, %v2908
    %v2917 = vcombine.high %v2893, %v2908
    %v2919 = vunpack.c.l.s4 1934713408
    %v2920 = vunpack.c.0.s8 %v2919
    %v2921 = vlaneseq
    %v2922 = vshrl.u32 %v2921, 7
    %v2923 = vsub.s32 %v2920, %v2922
    %v2924 = vrot.slane %v2916, %v2923
    %v2926 = vunpack.c.l.s4 1934713408
    %v2927 = vunpack.c.0.s8 %v2926
    %v2928 = vlaneseq
    %v2929 = vshrl.u32 %v2928, 7
    %v2930 = vsub.s32 %v2927, %v2929
    %v2931 = vrot.slane %v2917, %v2930
    %v2932 = vcombine.low %v2900, %v2915
    %v2933 = vcombine.high %v2900, %v2915
    %v2935 = vunpack.c.l.s4 1934713408
    %v2936 = vunpack.c.0.s8 %v2935
    %v2937 = vlaneseq
    %v2938 = vshrl.u32 %v2937, 7
    %v2939 = vsub.s32 %v2936, %v2938
    %v2940 = vrot.slane %v2932, %v2939
    %v2942 = vunpack.c.l.s4 1934713408
    %v2943 = vunpack.c.0.s8 %v2942
    %v2944 = vlaneseq
    %v2945 = vshrl.u32 %v2944, 7
    %v2946 = vsub.s32 %v2943, %v2945
    %v2947 = vrot.slane %v2933, %v2946
    %v2948 = vcombine.high %v2924, 0.0
    %v2949 = vcombine.high %v2931, 0.0
    %v2950 = vcombine.high %v2940, 0.0
    %v2951 = vcombine.high %v2947, 0.0
    %v2952 = vcombine.high %v2833, 0.0
    %v2954 = vunpack.c.l.s4 1983009808
    %v2955 = vunpack.c.0.s8 %v2954
    %v2956 = vlaneseq
    %v2957 = vshrl.u32 %v2956, 7
    %v2958 = vsub.s32 %v2955, %v2957
    %v2959 = vrot.slane %v2833, %v2958
    %v2961 = vunpack.c.l.s4 1983009808
    %v2962 = vunpack.c.0.s8 %v2961
    %v2963 = vlaneseq
    %v2964 = vshrl.u32 %v2963, 7
    %v2965 = vsub.s32 %v2962, %v2964
    %v2966 = vrot.slane %v2952, %v2965
    %v2967 = vcombine.high %v2883, 0.0
    %v2969 = vunpack.c.l.s4 1983009808
    %v2970 = vunpack.c.0.s8 %v2969
    %v2971 = vlaneseq
    %v2972 = vshrl.u32 %v2971, 7
    %v2973 = vsub.s32 %v2970, %v2972
    %v2974 = vrot.slane %v2883, %v2973
    %v2976 = vunpack.c.l.s4 1983009808
    %v2977 = vunpack.c.0.s8 %v2976
    %v2978 = vlaneseq
    %v2979 = vshrl.u32 %v2978, 7
    %v2980 = vsub.s32 %v2977, %v2979
    %v2981 = vrot.slane %v2967, %v2980
    %v2982 = vcombine.low %v2959, %v2974
    %v2983 = vcombine.high %v2959, %v2974
    %v2985 = vunpack.c.l.s4 1934713408
    %v2986 = vunpack.c.0.s8 %v2985
    %v2987 = vlaneseq
    %v2988 = vshrl.u32 %v2987, 7
    %v2989 = vsub.s32 %v2986, %v2988
    %v2990 = vrot.slane %v2982, %v2989
    %v2992 = vunpack.c.l.s4 1934713408
    %v2993 = vunpack.c.0.s8 %v2992
    %v2994 = vlaneseq
    %v2995 = vshrl.u32 %v2994, 7
    %v2996 = vsub.s32 %v2993, %v2995
    %v2997 = vrot.slane %v2983, %v2996
    %v2998 = vcombine.low %v2966, %v2981
    %v2999 = vcombine.high %v2966, %v2981
    %v3001 = vunpack.c.l.s4 1934713408
    %v3002 = vunpack.c.0.s8 %v3001
    %v3003 = vlaneseq
    %v3004 = vshrl.u32 %v3003, 7
    %v3005 = vsub.s32 %v3002, %v3004
    %v3006 = vrot.slane %v2998, %v3005
    %v3008 = vunpack.c.l.s4 1934713408
    %v3009 = vunpack.c.0.s8 %v3008
    %v3010 = vlaneseq
    %v3011 = vshrl.u32 %v3010, 7
    %v3012 = vsub.s32 %v3009, %v3011
    %v3013 = vrot.slane %v2999, %v3012
    %v3014 = vcombine.high %v2990, 0.0
    %v3015 = vcombine.high %v2997, 0.0
    %v3016 = vcombine.high %v3006, 0.0
    %v3017 = vcombine.high %v3013, 0.0
    %v3018 = vcombine.low %v2924, %v2931
    %v3020 = vunpack.c.l.s4 1983009808
    %v3021 = vunpack.c.0.s8 %v3020
    %v3022 = vlaneseq
    %v3023 = vshrl.u32 %v3022, 7
    %v3024 = vsub.s32 %v3021, %v3023
    %v3025 = vrot.slane %v3018, %v3024
    %v3026 = vcombine.low %v2948, %v2949
    %v3028 = vunpack.c.l.s4 1983009808
    %v3029 = vunpack.c.0.s8 %v3028
    %v3030 = vlaneseq
    %v3031 = vshrl.u32 %v3030, 7
    %v3032 = vsub.s32 %v3029, %v3031
    %v3033 = vrot.slane %v3026, %v3032
    %v3034 = vcombine.low %v2940, %v2947
    %v3036 = vunpack.c.l.s4 1983009808
    %v3037 = vunpack.c.0.s8 %v3036
    %v3038 = vlaneseq
    %v3039 = vshrl.u32 %v3038, 7
    %v3040 = vsub.s32 %v3037, %v3039
    %v3041 = vrot.slane %v3034, %v3040
    %v3042 = vcombine.low %v2950, %v2951
    %v3044 = vunpack.c.l.s4 1983009808
    %v3045 = vunpack.c.0.s8 %v3044
    %v3046 = vlaneseq
    %v3047 = vshrl.u32 %v3046, 7
    %v3048 = vsub.s32 %v3045, %v3047
    %v3049 = vrot.slane %v3042, %v3048
    %v3050 = vcombine.low %v3025, %v3033
    %v3052 = vunpack.c.l.s4 1934713408
    %v3053 = vunpack.c.0.s8 %v3052
    %v3054 = vlaneseq
    %v3055 = vshrl.u32 %v3054, 7
    %v3056 = vsub.s32 %v3053, %v3055
    %v3057 = vrot.slane %v3050, %v3056
    %v3058 = vcombine.low %v3041, %v3049
    %v3060 = vunpack.c.l.s4 1934713408
    %v3061 = vunpack.c.0.s8 %v3060
    %v3062 = vlaneseq
    %v3063 = vshrl.u32 %v3062, 7
    %v3064 = vsub.s32 %v3061, %v3063
    %v3065 = vrot.slane %v3058, %v3064
    %v3066 = vcombine.low %v3057, %v3065
    %v3067 = vcombine.high %v3057, %v3065
    %v3068 = vcombine.low %v2990, %v2997
    %v3070 = vunpack.c.l.s4 1983009808
    %v3071 = vunpack.c.0.s8 %v3070
    %v3072 = vlaneseq
    %v3073 = vshrl.u32 %v3072, 7
    %v3074 = vsub.s32 %v3071, %v3073
    %v3075 = vrot.slane %v3068, %v3074
    %v3076 = vcombine.low %v3014, %v3015
    %v3078 = vunpack.c.l.s4 1983009808
    %v3079 = vunpack.c.0.s8 %v3078
    %v3080 = vlaneseq
    %v3081 = vshrl.u32 %v3080, 7
    %v3082 = vsub.s32 %v3079, %v3081
    %v3083 = vrot.slane %v3076, %v3082
    %v3084 = vcombine.low %v3006, %v3013
    %v3086 = vunpack.c.l.s4 1983009808
    %v3087 = vunpack.c.0.s8 %v3086
    %v3088 = vlaneseq
    %v3089 = vshrl.u32 %v3088, 7
    %v3090 = vsub.s32 %v3087, %v3089
    %v3091 = vrot.slane %v3084, %v3090
    %v3092 = vcombine.low %v3016, %v3017
    %v3094 = vunpack.c.l.s4 1983009808
    %v3095 = vunpack.c.0.s8 %v3094
    %v3096 = vlaneseq
    %v3097 = vshrl.u32 %v3096, 7
    %v3098 = vsub.s32 %v3095, %v3097
    %v3099 = vrot.slane %v3092, %v3098
    %v3100 = vcombine.low %v3075, %v3083
    %v3102 = vunpack.c.l.s4 1934713408
    %v3103 = vunpack.c.0.s8 %v3102
    %v3104 = vlaneseq
    %v3105 = vshrl.u32 %v3104, 7
    %v3106 = vsub.s32 %v3103, %v3105
    %v3107 = vrot.slane %v3100, %v3106
    %v3108 = vcombine.low %v3091, %v3099
    %v3110 = vunpack.c.l.s4 1934713408
    %v3111 = vunpack.c.0.s8 %v3110
    %v3112 = vlaneseq
    %v3113 = vshrl.u32 %v3112, 7
    %v3114 = vsub.s32 %v3111, %v3113
    %v3115 = vrot.slane %v3108, %v3114
    %v3116 = vcombine.low %v3107, %v3115
    %v3117 = vcombine.high %v3107, %v3115
    %v3118 = vpack.c.bf16 %v3066, %v3066
    %v3119 = vpack.c.bf16 %v3067, %v3067
    %v3120 = vpack.c.bf16 %v3116, %v3116
    %v3121 = vpack.c.bf16 %v3117, %v3117
    %3124 = vrot.lane.b32.xlu0 %v2831, 64
    %v3125 = vpop.permute.xlu0 %3124
    %3126 = vrot.lane.b32.xlu0 %v2835, 64
    %v3127 = vpop.permute.xlu0 %3126
    %v3130 = vcombine.high %v2831, 0.0
    %v3132 = vunpack.c.l.s4 1983009808
    %v3133 = vunpack.c.0.s8 %v3132
    %v3134 = vlaneseq
    %v3135 = vshrl.u32 %v3134, 7
    %v3136 = vsub.s32 %v3133, %v3135
    %v3137 = vrot.slane %v2831, %v3136
    %v3139 = vunpack.c.l.s4 1983009808
    %v3140 = vunpack.c.0.s8 %v3139
    %v3141 = vlaneseq
    %v3142 = vshrl.u32 %v3141, 7
    %v3143 = vsub.s32 %v3140, %v3142
    %v3144 = vrot.slane %v3130, %v3143
    %v3145 = vcombine.high %v3125, 0.0
    %v3147 = vunpack.c.l.s4 1983009808
    %v3148 = vunpack.c.0.s8 %v3147
    %v3149 = vlaneseq
    %v3150 = vshrl.u32 %v3149, 7
    %v3151 = vsub.s32 %v3148, %v3150
    %v3152 = vrot.slane %v3125, %v3151
    %v3154 = vunpack.c.l.s4 1983009808
    %v3155 = vunpack.c.0.s8 %v3154
    %v3156 = vlaneseq
    %v3157 = vshrl.u32 %v3156, 7
    %v3158 = vsub.s32 %v3155, %v3157
    %v3159 = vrot.slane %v3145, %v3158
    %v3160 = vcombine.low %v3137, %v3152
    %v3161 = vcombine.high %v3137, %v3152
    %v3163 = vunpack.c.l.s4 1934713408
    %v3164 = vunpack.c.0.s8 %v3163
    %v3165 = vlaneseq
    %v3166 = vshrl.u32 %v3165, 7
    %v3167 = vsub.s32 %v3164, %v3166
    %v3168 = vrot.slane %v3160, %v3167
    %v3170 = vunpack.c.l.s4 1934713408
    %v3171 = vunpack.c.0.s8 %v3170
    %v3172 = vlaneseq
    %v3173 = vshrl.u32 %v3172, 7
    %v3174 = vsub.s32 %v3171, %v3173
    %v3175 = vrot.slane %v3161, %v3174
    %v3176 = vcombine.low %v3144, %v3159
    %v3177 = vcombine.high %v3144, %v3159
    %v3179 = vunpack.c.l.s4 1934713408
    %v3180 = vunpack.c.0.s8 %v3179
    %v3181 = vlaneseq
    %v3182 = vshrl.u32 %v3181, 7
    %v3183 = vsub.s32 %v3180, %v3182
    %v3184 = vrot.slane %v3176, %v3183
    %v3186 = vunpack.c.l.s4 1934713408
    %v3187 = vunpack.c.0.s8 %v3186
    %v3188 = vlaneseq
    %v3189 = vshrl.u32 %v3188, 7
    %v3190 = vsub.s32 %v3187, %v3189
    %v3191 = vrot.slane %v3177, %v3190
    %v3192 = vcombine.high %v3168, 0.0
    %v3193 = vcombine.high %v3175, 0.0
    %v3194 = vcombine.high %v3184, 0.0
    %v3195 = vcombine.high %v3191, 0.0
    %v3196 = vcombine.high %v2835, 0.0
    %v3198 = vunpack.c.l.s4 1983009808
    %v3199 = vunpack.c.0.s8 %v3198
    %v3200 = vlaneseq
    %v3201 = vshrl.u32 %v3200, 7
    %v3202 = vsub.s32 %v3199, %v3201
    %v3203 = vrot.slane %v2835, %v3202
    %v3205 = vunpack.c.l.s4 1983009808
    %v3206 = vunpack.c.0.s8 %v3205
    %v3207 = vlaneseq
    %v3208 = vshrl.u32 %v3207, 7
    %v3209 = vsub.s32 %v3206, %v3208
    %v3210 = vrot.slane %v3196, %v3209
    %v3211 = vcombine.high %v3127, 0.0
    %v3213 = vunpack.c.l.s4 1983009808
    %v3214 = vunpack.c.0.s8 %v3213
    %v3215 = vlaneseq
    %v3216 = vshrl.u32 %v3215, 7
    %v3217 = vsub.s32 %v3214, %v3216
    %v3218 = vrot.slane %v3127, %v3217
    %v3220 = vunpack.c.l.s4 1983009808
    %v3221 = vunpack.c.0.s8 %v3220
    %v3222 = vlaneseq
    %v3223 = vshrl.u32 %v3222, 7
    %v3224 = vsub.s32 %v3221, %v3223
    %v3225 = vrot.slane %v3211, %v3224
    %v3226 = vcombine.low %v3203, %v3218
    %v3227 = vcombine.high %v3203, %v3218
    %v3229 = vunpack.c.l.s4 1934713408
    %v3230 = vunpack.c.0.s8 %v3229
    %v3231 = vlaneseq
    %v3232 = vshrl.u32 %v3231, 7
    %v3233 = vsub.s32 %v3230, %v3232
    %v3234 = vrot.slane %v3226, %v3233
    %v3236 = vunpack.c.l.s4 1934713408
    %v3237 = vunpack.c.0.s8 %v3236
    %v3238 = vlaneseq
    %v3239 = vshrl.u32 %v3238, 7
    %v3240 = vsub.s32 %v3237, %v3239
    %v3241 = vrot.slane %v3227, %v3240
    %v3242 = vcombine.low %v3210, %v3225
    %v3243 = vcombine.high %v3210, %v3225
    %v3245 = vunpack.c.l.s4 1934713408
    %v3246 = vunpack.c.0.s8 %v3245
    %v3247 = vlaneseq
    %v3248 = vshrl.u32 %v3247, 7
    %v3249 = vsub.s32 %v3246, %v3248
    %v3250 = vrot.slane %v3242, %v3249
    %v3252 = vunpack.c.l.s4 1934713408
    %v3253 = vunpack.c.0.s8 %v3252
    %v3254 = vlaneseq
    %v3255 = vshrl.u32 %v3254, 7
    %v3256 = vsub.s32 %v3253, %v3255
    %v3257 = vrot.slane %v3243, %v3256
    %v3258 = vcombine.high %v3234, 0.0
    %v3259 = vcombine.high %v3241, 0.0
    %v3260 = vcombine.high %v3250, 0.0
    %v3261 = vcombine.high %v3257, 0.0
    %v3262 = vcombine.low %v3168, %v3175
    %v3264 = vunpack.c.l.s4 1983009808
    %v3265 = vunpack.c.0.s8 %v3264
    %v3266 = vlaneseq
    %v3267 = vshrl.u32 %v3266, 7
    %v3268 = vsub.s32 %v3265, %v3267
    %v3269 = vrot.slane %v3262, %v3268
    %v3270 = vcombine.low %v3192, %v3193
    %v3272 = vunpack.c.l.s4 1983009808
    %v3273 = vunpack.c.0.s8 %v3272
    %v3274 = vlaneseq
    %v3275 = vshrl.u32 %v3274, 7
    %v3276 = vsub.s32 %v3273, %v3275
    %v3277 = vrot.slane %v3270, %v3276
    %v3278 = vcombine.low %v3184, %v3191
    %v3280 = vunpack.c.l.s4 1983009808
    %v3281 = vunpack.c.0.s8 %v3280
    %v3282 = vlaneseq
    %v3283 = vshrl.u32 %v3282, 7
    %v3284 = vsub.s32 %v3281, %v3283
    %v3285 = vrot.slane %v3278, %v3284
    %v3286 = vcombine.low %v3194, %v3195
    %v3288 = vunpack.c.l.s4 1983009808
    %v3289 = vunpack.c.0.s8 %v3288
    %v3290 = vlaneseq
    %v3291 = vshrl.u32 %v3290, 7
    %v3292 = vsub.s32 %v3289, %v3291
    %v3293 = vrot.slane %v3286, %v3292
    %v3294 = vcombine.low %v3269, %v3277
    %v3296 = vunpack.c.l.s4 1934713408
    %v3297 = vunpack.c.0.s8 %v3296
    %v3298 = vlaneseq
    %v3299 = vshrl.u32 %v3298, 7
    %v3300 = vsub.s32 %v3297, %v3299
    %v3301 = vrot.slane %v3294, %v3300
    %v3302 = vcombine.low %v3285, %v3293
    %v3304 = vunpack.c.l.s4 1934713408
    %v3305 = vunpack.c.0.s8 %v3304
    %v3306 = vlaneseq
    %v3307 = vshrl.u32 %v3306, 7
    %v3308 = vsub.s32 %v3305, %v3307
    %v3309 = vrot.slane %v3302, %v3308
    %v3310 = vcombine.low %v3301, %v3309
    %v3311 = vcombine.high %v3301, %v3309
    %v3312 = vcombine.low %v3234, %v3241
    %v3314 = vunpack.c.l.s4 1983009808
    %v3315 = vunpack.c.0.s8 %v3314
    %v3316 = vlaneseq
    %v3317 = vshrl.u32 %v3316, 7
    %v3318 = vsub.s32 %v3315, %v3317
    %v3319 = vrot.slane %v3312, %v3318
    %v3320 = vcombine.low %v3258, %v3259
    %v3322 = vunpack.c.l.s4 1983009808
    %v3323 = vunpack.c.0.s8 %v3322
    %v3324 = vlaneseq
    %v3325 = vshrl.u32 %v3324, 7
    %v3326 = vsub.s32 %v3323, %v3325
    %v3327 = vrot.slane %v3320, %v3326
    %v3328 = vcombine.low %v3250, %v3257
    %v3330 = vunpack.c.l.s4 1983009808
    %v3331 = vunpack.c.0.s8 %v3330
    %v3332 = vlaneseq
    %v3333 = vshrl.u32 %v3332, 7
    %v3334 = vsub.s32 %v3331, %v3333
    %v3335 = vrot.slane %v3328, %v3334
    %v3336 = vcombine.low %v3260, %v3261
    %v3338 = vunpack.c.l.s4 1983009808
    %v3339 = vunpack.c.0.s8 %v3338
    %v3340 = vlaneseq
    %v3341 = vshrl.u32 %v3340, 7
    %v3342 = vsub.s32 %v3339, %v3341
    %v3343 = vrot.slane %v3336, %v3342
    %v3344 = vcombine.low %v3319, %v3327
    %v3346 = vunpack.c.l.s4 1934713408
    %v3347 = vunpack.c.0.s8 %v3346
    %v3348 = vlaneseq
    %v3349 = vshrl.u32 %v3348, 7
    %v3350 = vsub.s32 %v3347, %v3349
    %v3351 = vrot.slane %v3344, %v3350
    %v3352 = vcombine.low %v3335, %v3343
    %v3354 = vunpack.c.l.s4 1934713408
    %v3355 = vunpack.c.0.s8 %v3354
    %v3356 = vlaneseq
    %v3357 = vshrl.u32 %v3356, 7
    %v3358 = vsub.s32 %v3355, %v3357
    %v3359 = vrot.slane %v3352, %v3358
    %v3360 = vcombine.low %v3351, %v3359
    %v3361 = vcombine.high %v3351, %v3359
    %v3362 = vpack.c.bf16 %v3310, %v3310
    %v3363 = vpack.c.bf16 %v3311, %v3311
    %v3364 = vpack.c.bf16 %v3360, %v3360
    %v3365 = vpack.c.bf16 %v3361, %v3361
    %3368 = vrot.lane.b32.xlu0 %v2872, 64
    %v3369 = vpop.permute.xlu0 %3368
    %3370 = vrot.lane.b32.xlu0 %v2875, 64
    %v3371 = vpop.permute.xlu0 %3370
    %v3374 = vcombine.high %v2872, 0.0
    %v3376 = vunpack.c.l.s4 1983009808
    %v3377 = vunpack.c.0.s8 %v3376
    %v3378 = vlaneseq
    %v3379 = vshrl.u32 %v3378, 7
    %v3380 = vsub.s32 %v3377, %v3379
    %v3381 = vrot.slane %v2872, %v3380
    %v3383 = vunpack.c.l.s4 1983009808
    %v3384 = vunpack.c.0.s8 %v3383
    %v3385 = vlaneseq
    %v3386 = vshrl.u32 %v3385, 7
    %v3387 = vsub.s32 %v3384, %v3386
    %v3388 = vrot.slane %v3374, %v3387
    %v3389 = vcombine.high %v3369, 0.0
    %v3391 = vunpack.c.l.s4 1983009808
    %v3392 = vunpack.c.0.s8 %v3391
    %v3393 = vlaneseq
    %v3394 = vshrl.u32 %v3393, 7
    %v3395 = vsub.s32 %v3392, %v3394
    %v3396 = vrot.slane %v3369, %v3395
    %v3398 = vunpack.c.l.s4 1983009808
    %v3399 = vunpack.c.0.s8 %v3398
    %v3400 = vlaneseq
    %v3401 = vshrl.u32 %v3400, 7
    %v3402 = vsub.s32 %v3399, %v3401
    %v3403 = vrot.slane %v3389, %v3402
    %v3404 = vcombine.low %v3381, %v3396
    %v3405 = vcombine.high %v3381, %v3396
    %v3407 = vunpack.c.l.s4 1934713408
    %v3408 = vunpack.c.0.s8 %v3407
    %v3409 = vlaneseq
    %v3410 = vshrl.u32 %v3409, 7
    %v3411 = vsub.s32 %v3408, %v3410
    %v3412 = vrot.slane %v3404, %v3411
    %v3414 = vunpack.c.l.s4 1934713408
    %v3415 = vunpack.c.0.s8 %v3414
    %v3416 = vlaneseq
    %v3417 = vshrl.u32 %v3416, 7
    %v3418 = vsub.s32 %v3415, %v3417
    %v3419 = vrot.slane %v3405, %v3418
    %v3420 = vcombine.low %v3388, %v3403
    %v3421 = vcombine.high %v3388, %v3403
    %v3423 = vunpack.c.l.s4 1934713408
    %v3424 = vunpack.c.0.s8 %v3423
    %v3425 = vlaneseq
    %v3426 = vshrl.u32 %v3425, 7
    %v3427 = vsub.s32 %v3424, %v3426
    %v3428 = vrot.slane %v3420, %v3427
    %v3430 = vunpack.c.l.s4 1934713408
    %v3431 = vunpack.c.0.s8 %v3430
    %v3432 = vlaneseq
    %v3433 = vshrl.u32 %v3432, 7
    %v3434 = vsub.s32 %v3431, %v3433
    %v3435 = vrot.slane %v3421, %v3434
    %v3436 = vcombine.high %v3412, 0.0
    %v3437 = vcombine.high %v3419, 0.0
    %v3438 = vcombine.high %v3428, 0.0
    %v3439 = vcombine.high %v3435, 0.0
    %v3440 = vcombine.high %v2875, 0.0
    %v3442 = vunpack.c.l.s4 1983009808
    %v3443 = vunpack.c.0.s8 %v3442
    %v3444 = vlaneseq
    %v3445 = vshrl.u32 %v3444, 7
    %v3446 = vsub.s32 %v3443, %v3445
    %v3447 = vrot.slane %v2875, %v3446
    %v3449 = vunpack.c.l.s4 1983009808
    %v3450 = vunpack.c.0.s8 %v3449
    %v3451 = vlaneseq
    %v3452 = vshrl.u32 %v3451, 7
    %v3453 = vsub.s32 %v3450, %v3452
    %v3454 = vrot.slane %v3440, %v3453
    %v3455 = vcombine.high %v3371, 0.0
    %v3457 = vunpack.c.l.s4 1983009808
    %v3458 = vunpack.c.0.s8 %v3457
    %v3459 = vlaneseq
    %v3460 = vshrl.u32 %v3459, 7
    %v3461 = vsub.s32 %v3458, %v3460
    %v3462 = vrot.slane %v3371, %v3461
    %v3464 = vunpack.c.l.s4 1983009808
    %v3465 = vunpack.c.0.s8 %v3464
    %v3466 = vlaneseq
    %v3467 = vshrl.u32 %v3466, 7
    %v3468 = vsub.s32 %v3465, %v3467
    %v3469 = vrot.slane %v3455, %v3468
    %v3470 = vcombine.low %v3447, %v3462
    %v3471 = vcombine.high %v3447, %v3462
    %v3473 = vunpack.c.l.s4 1934713408
    %v3474 = vunpack.c.0.s8 %v3473
    %v3475 = vlaneseq
    %v3476 = vshrl.u32 %v3475, 7
    %v3477 = vsub.s32 %v3474, %v3476
    %v3478 = vrot.slane %v3470, %v3477
    %v3480 = vunpack.c.l.s4 1934713408
    %v3481 = vunpack.c.0.s8 %v3480
    %v3482 = vlaneseq
    %v3483 = vshrl.u32 %v3482, 7
    %v3484 = vsub.s32 %v3481, %v3483
    %v3485 = vrot.slane %v3471, %v3484
    %v3486 = vcombine.low %v3454, %v3469
    %v3487 = vcombine.high %v3454, %v3469
    %v3489 = vunpack.c.l.s4 1934713408
    %v3490 = vunpack.c.0.s8 %v3489
    %v3491 = vlaneseq
    %v3492 = vshrl.u32 %v3491, 7
    %v3493 = vsub.s32 %v3490, %v3492
    %v3494 = vrot.slane %v3486, %v3493
    %v3496 = vunpack.c.l.s4 1934713408
    %v3497 = vunpack.c.0.s8 %v3496
    %v3498 = vlaneseq
    %v3499 = vshrl.u32 %v3498, 7
    %v3500 = vsub.s32 %v3497, %v3499
    %v3501 = vrot.slane %v3487, %v3500
    %v3502 = vcombine.high %v3478, 0.0
    %v3503 = vcombine.high %v3485, 0.0
    %v3504 = vcombine.high %v3494, 0.0
    %v3505 = vcombine.high %v3501, 0.0
    %v3506 = vcombine.low %v3412, %v3419
    %v3508 = vunpack.c.l.s4 1983009808
    %v3509 = vunpack.c.0.s8 %v3508
    %v3510 = vlaneseq
    %v3511 = vshrl.u32 %v3510, 7
    %v3512 = vsub.s32 %v3509, %v3511
    %v3513 = vrot.slane %v3506, %v3512
    %v3514 = vcombine.low %v3436, %v3437
    %v3516 = vunpack.c.l.s4 1983009808
    %v3517 = vunpack.c.0.s8 %v3516
    %v3518 = vlaneseq
    %v3519 = vshrl.u32 %v3518, 7
    %v3520 = vsub.s32 %v3517, %v3519
    %v3521 = vrot.slane %v3514, %v3520
    %v3522 = vcombine.low %v3428, %v3435
    %v3524 = vunpack.c.l.s4 1983009808
    %v3525 = vunpack.c.0.s8 %v3524
    %v3526 = vlaneseq
    %v3527 = vshrl.u32 %v3526, 7
    %v3528 = vsub.s32 %v3525, %v3527
    %v3529 = vrot.slane %v3522, %v3528
    %v3530 = vcombine.low %v3438, %v3439
    %v3532 = vunpack.c.l.s4 1983009808
    %v3533 = vunpack.c.0.s8 %v3532
    %v3534 = vlaneseq
    %v3535 = vshrl.u32 %v3534, 7
    %v3536 = vsub.s32 %v3533, %v3535
    %v3537 = vrot.slane %v3530, %v3536
    %v3538 = vcombine.low %v3513, %v3521
    %v3540 = vunpack.c.l.s4 1934713408
    %v3541 = vunpack.c.0.s8 %v3540
    %v3542 = vlaneseq
    %v3543 = vshrl.u32 %v3542, 7
    %v3544 = vsub.s32 %v3541, %v3543
    %v3545 = vrot.slane %v3538, %v3544
    %v3546 = vcombine.low %v3529, %v3537
    %v3548 = vunpack.c.l.s4 1934713408
    %v3549 = vunpack.c.0.s8 %v3548
    %v3550 = vlaneseq
    %v3551 = vshrl.u32 %v3550, 7
    %v3552 = vsub.s32 %v3549, %v3551
    %v3553 = vrot.slane %v3546, %v3552
    %v3554 = vcombine.low %v3545, %v3553
    %v3555 = vcombine.high %v3545, %v3553
    %v3556 = vcombine.low %v3478, %v3485
    %v3558 = vunpack.c.l.s4 1983009808
    %v3559 = vunpack.c.0.s8 %v3558
    %v3560 = vlaneseq
    %v3561 = vshrl.u32 %v3560, 7
    %v3562 = vsub.s32 %v3559, %v3561
    %v3563 = vrot.slane %v3556, %v3562
    %v3564 = vcombine.low %v3502, %v3503
    %v3566 = vunpack.c.l.s4 1983009808
    %v3567 = vunpack.c.0.s8 %v3566
    %v3568 = vlaneseq
    %v3569 = vshrl.u32 %v3568, 7
    %v3570 = vsub.s32 %v3567, %v3569
    %v3571 = vrot.slane %v3564, %v3570
    %v3572 = vcombine.low %v3494, %v3501
    %v3574 = vunpack.c.l.s4 1983009808
    %v3575 = vunpack.c.0.s8 %v3574
    %v3576 = vlaneseq
    %v3577 = vshrl.u32 %v3576, 7
    %v3578 = vsub.s32 %v3575, %v3577
    %v3579 = vrot.slane %v3572, %v3578
    %v3580 = vcombine.low %v3504, %v3505
    %v3582 = vunpack.c.l.s4 1983009808
    %v3583 = vunpack.c.0.s8 %v3582
    %v3584 = vlaneseq
    %v3585 = vshrl.u32 %v3584, 7
    %v3586 = vsub.s32 %v3583, %v3585
    %v3587 = vrot.slane %v3580, %v3586
    %v3588 = vcombine.low %v3563, %v3571
    %v3590 = vunpack.c.l.s4 1934713408
    %v3591 = vunpack.c.0.s8 %v3590
    %v3592 = vlaneseq
    %v3593 = vshrl.u32 %v3592, 7
    %v3594 = vsub.s32 %v3591, %v3593
    %v3595 = vrot.slane %v3588, %v3594
    %v3596 = vcombine.low %v3579, %v3587
    %v3598 = vunpack.c.l.s4 1934713408
    %v3599 = vunpack.c.0.s8 %v3598
    %v3600 = vlaneseq
    %v3601 = vshrl.u32 %v3600, 7
    %v3602 = vsub.s32 %v3599, %v3601
    %v3603 = vrot.slane %v3596, %v3602
    %v3604 = vcombine.low %v3595, %v3603
    %v3605 = vcombine.high %v3595, %v3603
    %v3606 = vpack.c.bf16 %v3554, %v3554
    %v3607 = vpack.c.bf16 %v3555, %v3555
    %v3608 = vpack.c.bf16 %v3604, %v3604
    %v3609 = vpack.c.bf16 %v3605, %v3605
    %v3611 = vsel %vm1390, %v3118, 0
    %v3614 = vsel %vm1390, %v3362, 0
    %3616 = vmatprep.subr.bf16.mxu0 0
    %3617 = vmatpush1.bf16.xpose.msra.mxu0 %v3614
    %3618 = vmatprep.subr.bf16.mxu0 0
    %3619 = vmatpush1.bf16.xpose.msra.mxu0 0
    %3620 = vmatprep.subr.bf16.mxu0 0
    %3621 = vmatpush1.bf16.xpose.msra.mxu0 0
    %3622 = vmatprep.subr.bf16.mxu0 0
    %3623 = vmatpush1.bf16.xpose.msra.mxu0 0
    %3624 = vmatprep.subr.bf16.mxu0 0
    %3625 = vmatpush1.bf16.xpose.msra.mxu0 0
    %3626 = vmatprep.subr.bf16.mxu0 0
    %3627 = vmatpush1.bf16.xpose.msra.mxu0 0
    %3628 = vmatprep.subr.bf16.mxu0 0
    %3629 = vmatpush1.bf16.xpose.msra.mxu0 0
    %3630 = vmatprep.subr.bf16.mxu0 0
    %3631 = vmatpush1.bf16.xpose.msra.mxu0 0
    %3632 = vmatprep.subr.bf16.mxu0 0
    %3633 = vmatpush1.bf16.xpose.msra.mxu0 0
    %3634 = vmatprep.subr.bf16.mxu0 0
    %3635 = vmatpush1.bf16.xpose.msra.mxu0 0
    %3636 = vmatprep.subr.bf16.mxu0 0
    %3637 = vmatpush1.bf16.xpose.msra.mxu0 0
    %3638 = vmatprep.subr.bf16.mxu0 0
    %3639 = vmatpush1.bf16.xpose.msra.mxu0 0
    %3640 = vmatprep.subr.bf16.mxu0 0
    %3641 = vmatpush1.bf16.xpose.msra.mxu0 0
    %3642 = vmatprep.subr.bf16.mxu0 0
    %3643 = vmatpush1.bf16.xpose.msra.mxu0 0
    %3644 = vmatprep.subr.bf16.mxu0 0
    %3645 = vmatpush1.bf16.xpose.msra.mxu0 0
    %3646 = vmatprep.subr.bf16.mxu0 0
    %3647 = vmatpush1.bf16.xpose.msra.mxu0 0
    %3648 = vmatprep.mubr.bf16.mxu0 0
    %3649 = vmatmul.mubr.bf16.gmra.mrb[0].mxu0 %v3611
    %v3650 = vpop.f32.mrb[0].mxu0
    %v3651 = vadd.f32 %v1383, %v3650
    %v3652 = vpop.f32.mrb[0].mxu0
    %v3653 = vpop.f32.mrb[0].mxu0
    %v3654 = vpop.f32.mrb[0].mxu0
    %3655 = vdwg.mxu0
    %v3657 = vsel %vm1390, %v3119, 0
    %v3660 = vsel %vm1390, %v3363, 0
    %3662 = vmatprep.subr.bf16.mxu0 0
    %3663 = vmatpush1.bf16.xpose.msra.mxu0 %v3660
    %3664 = vmatprep.subr.bf16.mxu0 0
    %3665 = vmatpush1.bf16.xpose.msra.mxu0 0
    %3666 = vmatprep.subr.bf16.mxu0 0
    %3667 = vmatpush1.bf16.xpose.msra.mxu0 0
    %3668 = vmatprep.subr.bf16.mxu0 0
    %3669 = vmatpush1.bf16.xpose.msra.mxu0 0
    %3670 = vmatprep.subr.bf16.mxu0 0
    %3671 = vmatpush1.bf16.xpose.msra.mxu0 0
    %3672 = vmatprep.subr.bf16.mxu0 0
    %3673 = vmatpush1.bf16.xpose.msra.mxu0 0
    %3674 = vmatprep.subr.bf16.mxu0 0
    %3675 = vmatpush1.bf16.xpose.msra.mxu0 0
    %3676 = vmatprep.subr.bf16.mxu0 0
    %3677 = vmatpush1.bf16.xpose.msra.mxu0 0
    %3678 = vmatprep.subr.bf16.mxu0 0
    %3679 = vmatpush1.bf16.xpose.msra.mxu0 0
    %3680 = vmatprep.subr.bf16.mxu0 0
    %3681 = vmatpush1.bf16.xpose.msra.mxu0 0
    %3682 = vmatprep.subr.bf16.mxu0 0
    %3683 = vmatpush1.bf16.xpose.msra.mxu0 0
    %3684 = vmatprep.subr.bf16.mxu0 0
    %3685 = vmatpush1.bf16.xpose.msra.mxu0 0
    %3686 = vmatprep.subr.bf16.mxu0 0
    %3687 = vmatpush1.bf16.xpose.msra.mxu0 0
    %3688 = vmatprep.subr.bf16.mxu0 0
    %3689 = vmatpush1.bf16.xpose.msra.mxu0 0
    %3690 = vmatprep.subr.bf16.mxu0 0
    %3691 = vmatpush1.bf16.xpose.msra.mxu0 0
    %3692 = vmatprep.subr.bf16.mxu0 0
    %3693 = vmatpush1.bf16.xpose.msra.mxu0 0
    %3694 = vmatprep.mubr.bf16.mxu0 0
    %3695 = vmatmul.mubr.bf16.gmra.mrb[0].mxu0 %v3657
    %v3696 = vpop.f32.mrb[0].mxu0
    %v3697 = vadd.f32 %v1383, %v3696
    %v3698 = vpop.f32.mrb[0].mxu0
    %v3699 = vpop.f32.mrb[0].mxu0
    %v3700 = vpop.f32.mrb[0].mxu0
    %3701 = vdwg.mxu0
    %v3703 = vsel %vm1390, %v3120, 0
    %v3706 = vsel %vm1390, %v3364, 0
    %3708 = vmatprep.subr.bf16.mxu0 0
    %3709 = vmatpush1.bf16.xpose.msra.mxu0 %v3706
    %3710 = vmatprep.subr.bf16.mxu0 0
    %3711 = vmatpush1.bf16.xpose.msra.mxu0 0
    %3712 = vmatprep.subr.bf16.mxu0 0
    %3713 = vmatpush1.bf16.xpose.msra.mxu0 0
    %3714 = vmatprep.subr.bf16.mxu0 0
    %3715 = vmatpush1.bf16.xpose.msra.mxu0 0
    %3716 = vmatprep.subr.bf16.mxu0 0
    %3717 = vmatpush1.bf16.xpose.msra.mxu0 0
    %3718 = vmatprep.subr.bf16.mxu0 0
    %3719 = vmatpush1.bf16.xpose.msra.mxu0 0
    %3720 = vmatprep.subr.bf16.mxu0 0
    %3721 = vmatpush1.bf16.xpose.msra.mxu0 0
    %3722 = vmatprep.subr.bf16.mxu0 0
    %3723 = vmatpush1.bf16.xpose.msra.mxu0 0
    %3724 = vmatprep.subr.bf16.mxu0 0
    %3725 = vmatpush1.bf16.xpose.msra.mxu0 0
    %3726 = vmatprep.subr.bf16.mxu0 0
    %3727 = vmatpush1.bf16.xpose.msra.mxu0 0
    %3728 = vmatprep.subr.bf16.mxu0 0
    %3729 = vmatpush1.bf16.xpose.msra.mxu0 0
    %3730 = vmatprep.subr.bf16.mxu0 0
    %3731 = vmatpush1.bf16.xpose.msra.mxu0 0
    %3732 = vmatprep.subr.bf16.mxu0 0
    %3733 = vmatpush1.bf16.xpose.msra.mxu0 0
    %3734 = vmatprep.subr.bf16.mxu0 0
    %3735 = vmatpush1.bf16.xpose.msra.mxu0 0
    %3736 = vmatprep.subr.bf16.mxu0 0
    %3737 = vmatpush1.bf16.xpose.msra.mxu0 0
    %3738 = vmatprep.subr.bf16.mxu0 0
    %3739 = vmatpush1.bf16.xpose.msra.mxu0 0
    %3740 = vmatprep.mubr.bf16.mxu0 0
    %3741 = vmatmul.mubr.bf16.gmra.mrb[0].mxu0 %v3703
    %v3742 = vpop.f32.mrb[0].mxu0
    %v3743 = vadd.f32 %v1387, %v3742
    %v3744 = vpop.f32.mrb[0].mxu0
    %v3745 = vpop.f32.mrb[0].mxu0
    %v3746 = vpop.f32.mrb[0].mxu0
    %3747 = vdwg.mxu0
    %v3749 = vsel %vm1390, %v3121, 0
    %v3752 = vsel %vm1390, %v3365, 0
    %3754 = vmatprep.subr.bf16.mxu0 0
    %3755 = vmatpush1.bf16.xpose.msra.mxu0 %v3752
    %3756 = vmatprep.subr.bf16.mxu0 0
    %3757 = vmatpush1.bf16.xpose.msra.mxu0 0
    %3758 = vmatprep.subr.bf16.mxu0 0
    %3759 = vmatpush1.bf16.xpose.msra.mxu0 0
    %3760 = vmatprep.subr.bf16.mxu0 0
    %3761 = vmatpush1.bf16.xpose.msra.mxu0 0
    %3762 = vmatprep.subr.bf16.mxu0 0
    %3763 = vmatpush1.bf16.xpose.msra.mxu0 0
    %3764 = vmatprep.subr.bf16.mxu0 0
    %3765 = vmatpush1.bf16.xpose.msra.mxu0 0
    %3766 = vmatprep.subr.bf16.mxu0 0
    %3767 = vmatpush1.bf16.xpose.msra.mxu0 0
    %3768 = vmatprep.subr.bf16.mxu0 0
    %3769 = vmatpush1.bf16.xpose.msra.mxu0 0
    %3770 = vmatprep.subr.bf16.mxu0 0
    %3771 = vmatpush1.bf16.xpose.msra.mxu0 0
    %3772 = vmatprep.subr.bf16.mxu0 0
    %3773 = vmatpush1.bf16.xpose.msra.mxu0 0
    %3774 = vmatprep.subr.bf16.mxu0 0
    %3775 = vmatpush1.bf16.xpose.msra.mxu0 0
    %3776 = vmatprep.subr.bf16.mxu0 0
    %3777 = vmatpush1.bf16.xpose.msra.mxu0 0
    %3778 = vmatprep.subr.bf16.mxu0 0
    %3779 = vmatpush1.bf16.xpose.msra.mxu0 0
    %3780 = vmatprep.subr.bf16.mxu0 0
    %3781 = vmatpush1.bf16.xpose.msra.mxu0 0
    %3782 = vmatprep.subr.bf16.mxu0 0
    %3783 = vmatpush1.bf16.xpose.msra.mxu0 0
    %3784 = vmatprep.subr.bf16.mxu0 0
    %3785 = vmatpush1.bf16.xpose.msra.mxu0 0
    %3786 = vmatprep.mubr.bf16.mxu0 0
    %3787 = vmatmul.mubr.bf16.gmra.mrb[0].mxu0 %v3749
    %v3788 = vpop.f32.mrb[0].mxu0
    %v3789 = vadd.f32 %v1387, %v3788
    %v3790 = vpop.f32.mrb[0].mxu0
    %v3791 = vpop.f32.mrb[0].mxu0
    %v3792 = vpop.f32.mrb[0].mxu0
    %3793 = vdwg.mxu0
    %v3794 = vsel %vm1575, %v3651, -inf
    %3795 = vmax.xlane.f32.xlu0 %v3794
    %v3796 = vpop.xlane.xlu0 %3795
    %v3797 = vsel %vm1575, %v3697, -inf
    %3798 = vmax.xlane.f32.xlu0 %v3797
    %v3799 = vpop.xlane.xlu0 %3798
    %v3800 = vsel %vm1575, %v3743, -inf
    %3801 = vmax.xlane.f32.xlu0 %v3800
    %v3802 = vpop.xlane.xlu0 %3801
    %v3803 = vsel %vm1575, %v3789, -inf
    %3804 = vmax.xlane.f32.xlu0 %v3803
    %v3805 = vpop.xlane.xlu0 %3804
    %v3806 = vsub.f32 %v3651, %v3796
    %v3807 = vsub.f32 %v3697, %v3799
    %v3808 = vsub.f32 %v3743, %v3802
    %v3809 = vsub.f32 %v3789, %v3805
    %v3810 = vmul.f32 %v3806, 1.442695
    %v3811 = vpow.pop %v3810
    %v3812 = vmul.f32 %v3807, 1.442695
    %v3813 = vpow.pop %v3812
    %v3814 = vmul.f32 %v3808, 1.442695
    %v3815 = vpow.pop %v3814
    %v3816 = vmul.f32 %v3809, 1.442695
    %v3817 = vpow.pop %v3816
    %v3818 = vsel %vm1575, %v3811, 0.0
    %3819 = vadd.xlane.f32.xlu0 %v3818
    %v3820 = vpop.xlane.xlu0 %3819
    %v3821 = vsel %vm1575, %v3813, 0.0
    %3822 = vadd.xlane.f32.xlu0 %v3821
    %v3823 = vpop.xlane.xlu0 %3822
    %v3824 = vsel %vm1575, %v3815, 0.0
    %3825 = vadd.xlane.f32.xlu0 %v3824
    %v3826 = vpop.xlane.xlu0 %3825
    %v3827 = vsel %vm1575, %v3817, 0.0
    %3828 = vadd.xlane.f32.xlu0 %v3827
    %v3829 = vpop.xlane.xlu0 %3828
    %v3830 = vrcp.pop %v3820
    %v3831 = vrcp.pop %v3823
    %v3832 = vrcp.pop %v3826
    %v3833 = vrcp.pop %v3829
    %v3834 = vmul.f32 %v3811, %v3830
    %v3835 = vmul.f32 %v3813, %v3831
    %v3836 = vmul.f32 %v3815, %v3832
    %v3837 = vmul.f32 %v3817, %v3833
    %v3838 = vpack.c.bf16 %v3834, %v3834
    %v3839 = vpack.c.bf16 %v3835, %v3835
    %v3840 = vpack.c.bf16 %v3836, %v3836
    %v3841 = vpack.c.bf16 %v3837, %v3837
    %v3843 = vsel %vm1575, %v3838, 0
    %v3846 = vsel %vm1627, %v3606, 0
    %3848 = vmatprep.subr.bf16.mxu0 0
    %3849 = vmatpush1.bf16.msra.mxu0 %v3846
    %3850 = vmatprep.subr.bf16.mxu0 0
    %3851 = vmatpush1.bf16.msra.mxu0 0
    %3852 = vmatprep.subr.bf16.mxu0 0
    %3853 = vmatpush1.bf16.msra.mxu0 0
    %3854 = vmatprep.subr.bf16.mxu0 0
    %3855 = vmatpush1.bf16.msra.mxu0 0
    %3856 = vmatprep.subr.bf16.mxu0 0
    %3857 = vmatpush1.bf16.msra.mxu0 0
    %3858 = vmatprep.subr.bf16.mxu0 0
    %3859 = vmatpush1.bf16.msra.mxu0 0
    %3860 = vmatprep.subr.bf16.mxu0 0
    %3861 = vmatpush1.bf16.msra.mxu0 0
    %3862 = vmatprep.subr.bf16.mxu0 0
    %3863 = vmatpush1.bf16.msra.mxu0 0
    %3864 = vmatprep.subr.bf16.mxu0 0
    %3865 = vmatpush1.bf16.msra.mxu0 0
    %3866 = vmatprep.subr.bf16.mxu0 0
    %3867 = vmatpush1.bf16.msra.mxu0 0
    %3868 = vmatprep.subr.bf16.mxu0 0
    %3869 = vmatpush1.bf16.msra.mxu0 0
    %3870 = vmatprep.subr.bf16.mxu0 0
    %3871 = vmatpush1.bf16.msra.mxu0 0
    %3872 = vmatprep.subr.bf16.mxu0 0
    %3873 = vmatpush1.bf16.msra.mxu0 0
    %3874 = vmatprep.subr.bf16.mxu0 0
    %3875 = vmatpush1.bf16.msra.mxu0 0
    %3876 = vmatprep.subr.bf16.mxu0 0
    %3877 = vmatpush1.bf16.msra.mxu0 0
    %3878 = vmatprep.subr.bf16.mxu0 0
    %3879 = vmatpush1.bf16.msra.mxu0 0
    %3880 = vmatprep.mubr.bf16.mxu0 0
    %3881 = vmatmul.mubr.bf16.gmra.mrb[0].mxu0 %v3843
    %v3882 = vpop.f32.mrb[0].mxu0
    %v3883 = vadd.f32 0.0, %v3882
    %v3884 = vpop.f32.mrb[0].mxu0
    %v3885 = vpop.f32.mrb[0].mxu0
    %v3886 = vpop.f32.mrb[0].mxu0
    %3887 = vdwg.mxu0
    %v3889 = vsel %vm1575, %v3839, 0
    %v3892 = vsel %vm1627, %v3607, 0
    %3894 = vmatprep.subr.bf16.mxu0 0
    %3895 = vmatpush1.bf16.msra.mxu0 %v3892
    %3896 = vmatprep.subr.bf16.mxu0 0
    %3897 = vmatpush1.bf16.msra.mxu0 0
    %3898 = vmatprep.subr.bf16.mxu0 0
    %3899 = vmatpush1.bf16.msra.mxu0 0
    %3900 = vmatprep.subr.bf16.mxu0 0
    %3901 = vmatpush1.bf16.msra.mxu0 0
    %3902 = vmatprep.subr.bf16.mxu0 0
    %3903 = vmatpush1.bf16.msra.mxu0 0
    %3904 = vmatprep.subr.bf16.mxu0 0
    %3905 = vmatpush1.bf16.msra.mxu0 0
    %3906 = vmatprep.subr.bf16.mxu0 0
    %3907 = vmatpush1.bf16.msra.mxu0 0
    %3908 = vmatprep.subr.bf16.mxu0 0
    %3909 = vmatpush1.bf16.msra.mxu0 0
    %3910 = vmatprep.subr.bf16.mxu0 0
    %3911 = vmatpush1.bf16.msra.mxu0 0
    %3912 = vmatprep.subr.bf16.mxu0 0
    %3913 = vmatpush1.bf16.msra.mxu0 0
    %3914 = vmatprep.subr.bf16.mxu0 0
    %3915 = vmatpush1.bf16.msra.mxu0 0
    %3916 = vmatprep.subr.bf16.mxu0 0
    %3917 = vmatpush1.bf16.msra.mxu0 0
    %3918 = vmatprep.subr.bf16.mxu0 0
    %3919 = vmatpush1.bf16.msra.mxu0 0
    %3920 = vmatprep.subr.bf16.mxu0 0
    %3921 = vmatpush1.bf16.msra.mxu0 0
    %3922 = vmatprep.subr.bf16.mxu0 0
    %3923 = vmatpush1.bf16.msra.mxu0 0
    %3924 = vmatprep.subr.bf16.mxu0 0
    %3925 = vmatpush1.bf16.msra.mxu0 0
    %3926 = vmatprep.mubr.bf16.mxu0 0
    %3927 = vmatmul.mubr.bf16.gmra.mrb[0].mxu0 %v3889
    %v3928 = vpop.f32.mrb[0].mxu0
    %v3929 = vadd.f32 0.0, %v3928
    %v3930 = vpop.f32.mrb[0].mxu0
    %v3931 = vpop.f32.mrb[0].mxu0
    %v3932 = vpop.f32.mrb[0].mxu0
    %3933 = vdwg.mxu0
    %v3935 = vsel %vm1575, %v3840, 0
    %v3938 = vsel %vm1627, %v3608, 0
    %3940 = vmatprep.subr.bf16.mxu0 0
    %3941 = vmatpush1.bf16.msra.mxu0 %v3938
    %3942 = vmatprep.subr.bf16.mxu0 0
    %3943 = vmatpush1.bf16.msra.mxu0 0
    %3944 = vmatprep.subr.bf16.mxu0 0
    %3945 = vmatpush1.bf16.msra.mxu0 0
    %3946 = vmatprep.subr.bf16.mxu0 0
    %3947 = vmatpush1.bf16.msra.mxu0 0
    %3948 = vmatprep.subr.bf16.mxu0 0
    %3949 = vmatpush1.bf16.msra.mxu0 0
    %3950 = vmatprep.subr.bf16.mxu0 0
    %3951 = vmatpush1.bf16.msra.mxu0 0
    %3952 = vmatprep.subr.bf16.mxu0 0
    %3953 = vmatpush1.bf16.msra.mxu0 0
    %3954 = vmatprep.subr.bf16.mxu0 0
    %3955 = vmatpush1.bf16.msra.mxu0 0
    %3956 = vmatprep.subr.bf16.mxu0 0
    %3957 = vmatpush1.bf16.msra.mxu0 0
    %3958 = vmatprep.subr.bf16.mxu0 0
    %3959 = vmatpush1.bf16.msra.mxu0 0
    %3960 = vmatprep.subr.bf16.mxu0 0
    %3961 = vmatpush1.bf16.msra.mxu0 0
    %3962 = vmatprep.subr.bf16.mxu0 0
    %3963 = vmatpush1.bf16.msra.mxu0 0
    %3964 = vmatprep.subr.bf16.mxu0 0
    %3965 = vmatpush1.bf16.msra.mxu0 0
    %3966 = vmatprep.subr.bf16.mxu0 0
    %3967 = vmatpush1.bf16.msra.mxu0 0
    %3968 = vmatprep.subr.bf16.mxu0 0
    %3969 = vmatpush1.bf16.msra.mxu0 0
    %3970 = vmatprep.subr.bf16.mxu0 0
    %3971 = vmatpush1.bf16.msra.mxu0 0
    %3972 = vmatprep.mubr.bf16.mxu0 0
    %3973 = vmatmul.mubr.bf16.gmra.mrb[0].mxu0 %v3935
    %v3974 = vpop.f32.mrb[0].mxu0
    %v3975 = vadd.f32 0.0, %v3974
    %v3976 = vpop.f32.mrb[0].mxu0
    %v3977 = vpop.f32.mrb[0].mxu0
    %v3978 = vpop.f32.mrb[0].mxu0
    %3979 = vdwg.mxu0
    %v3981 = vsel %vm1575, %v3841, 0
    %v3984 = vsel %vm1627, %v3609, 0
    %3986 = vmatprep.subr.bf16.mxu0 0
    %3987 = vmatpush1.bf16.msra.mxu0 %v3984
    %3988 = vmatprep.subr.bf16.mxu0 0
    %3989 = vmatpush1.bf16.msra.mxu0 0
    %3990 = vmatprep.subr.bf16.mxu0 0
    %3991 = vmatpush1.bf16.msra.mxu0 0
    %3992 = vmatprep.subr.bf16.mxu0 0
    %3993 = vmatpush1.bf16.msra.mxu0 0
    %3994 = vmatprep.subr.bf16.mxu0 0
    %3995 = vmatpush1.bf16.msra.mxu0 0
    %3996 = vmatprep.subr.bf16.mxu0 0
    %3997 = vmatpush1.bf16.msra.mxu0 0
    %3998 = vmatprep.subr.bf16.mxu0 0
    %3999 = vmatpush1.bf16.msra.mxu0 0
    %4000 = vmatprep.subr.bf16.mxu0 0
    %4001 = vmatpush1.bf16.msra.mxu0 0
    %4002 = vmatprep.subr.bf16.mxu0 0
    %4003 = vmatpush1.bf16.msra.mxu0 0
    %4004 = vmatprep.subr.bf16.mxu0 0
    %4005 = vmatpush1.bf16.msra.mxu0 0
    %4006 = vmatprep.subr.bf16.mxu0 0
    %4007 = vmatpush1.bf16.msra.mxu0 0
    %4008 = vmatprep.subr.bf16.mxu0 0
    %4009 = vmatpush1.bf16.msra.mxu0 0
    %4010 = vmatprep.subr.bf16.mxu0 0
    %4011 = vmatpush1.bf16.msra.mxu0 0
    %4012 = vmatprep.subr.bf16.mxu0 0
    %4013 = vmatpush1.bf16.msra.mxu0 0
    %4014 = vmatprep.subr.bf16.mxu0 0
    %4015 = vmatpush1.bf16.msra.mxu0 0
    %4016 = vmatprep.subr.bf16.mxu0 0
    %4017 = vmatpush1.bf16.msra.mxu0 0
    %4018 = vmatprep.mubr.bf16.mxu0 0
    %4019 = vmatmul.mubr.bf16.gmra.mrb[0].mxu0 %v3981
    %v4020 = vpop.f32.mrb[0].mxu0
    %v4021 = vadd.f32 0.0, %v4020
    %v4022 = vpop.f32.mrb[0].mxu0
    %v4023 = vpop.f32.mrb[0].mxu0
    %v4024 = vpop.f32.mrb[0].mxu0
    %4025 = vdwg.mxu0
    %v4026 = vcombine.high %v3883, 0.0
    %v4028 = vunpack.c.l.s4 1983009808
    %v4029 = vunpack.c.0.s8 %v4028
    %v4030 = vlaneseq
    %v4031 = vshrl.u32 %v4030, 7
    %v4032 = vsub.s32 %v4029, %v4031
    %v4033 = vrot.slane %v3883, %v4032
    %v4035 = vunpack.c.l.s4 1983009808
    %v4036 = vunpack.c.0.s8 %v4035
    %v4037 = vlaneseq
    %v4038 = vshrl.u32 %v4037, 7
    %v4039 = vsub.s32 %v4036, %v4038
    %v4040 = vrot.slane %v4026, %v4039
    %v4041 = vcombine.high %v3929, 0.0
    %v4043 = vunpack.c.l.s4 1983009808
    %v4044 = vunpack.c.0.s8 %v4043
    %v4045 = vlaneseq
    %v4046 = vshrl.u32 %v4045, 7
    %v4047 = vsub.s32 %v4044, %v4046
    %v4048 = vrot.slane %v3929, %v4047
    %v4050 = vunpack.c.l.s4 1983009808
    %v4051 = vunpack.c.0.s8 %v4050
    %v4052 = vlaneseq
    %v4053 = vshrl.u32 %v4052, 7
    %v4054 = vsub.s32 %v4051, %v4053
    %v4055 = vrot.slane %v4041, %v4054
    %v4056 = vcombine.low %v4033, %v4048
    %v4057 = vcombine.high %v4033, %v4048
    %v4059 = vunpack.c.l.s4 1934713408
    %v4060 = vunpack.c.0.s8 %v4059
    %v4061 = vlaneseq
    %v4062 = vshrl.u32 %v4061, 7
    %v4063 = vsub.s32 %v4060, %v4062
    %v4064 = vrot.slane %v4056, %v4063
    %v4066 = vunpack.c.l.s4 1934713408
    %v4067 = vunpack.c.0.s8 %v4066
    %v4068 = vlaneseq
    %v4069 = vshrl.u32 %v4068, 7
    %v4070 = vsub.s32 %v4067, %v4069
    %v4071 = vrot.slane %v4057, %v4070
    %v4072 = vcombine.low %v4040, %v4055
    %v4073 = vcombine.high %v4040, %v4055
    %v4075 = vunpack.c.l.s4 1934713408
    %v4076 = vunpack.c.0.s8 %v4075
    %v4077 = vlaneseq
    %v4078 = vshrl.u32 %v4077, 7
    %v4079 = vsub.s32 %v4076, %v4078
    %v4080 = vrot.slane %v4072, %v4079
    %v4082 = vunpack.c.l.s4 1934713408
    %v4083 = vunpack.c.0.s8 %v4082
    %v4084 = vlaneseq
    %v4085 = vshrl.u32 %v4084, 7
    %v4086 = vsub.s32 %v4083, %v4085
    %v4087 = vrot.slane %v4073, %v4086
    %v4088 = vcombine.high %v4064, 0.0
    %v4089 = vcombine.high %v4071, 0.0
    %v4090 = vcombine.high %v4080, 0.0
    %v4091 = vcombine.high %v4087, 0.0
    %v4092 = vcombine.high %v3975, 0.0
    %v4094 = vunpack.c.l.s4 1983009808
    %v4095 = vunpack.c.0.s8 %v4094
    %v4096 = vlaneseq
    %v4097 = vshrl.u32 %v4096, 7
    %v4098 = vsub.s32 %v4095, %v4097
    %v4099 = vrot.slane %v3975, %v4098
    %v4101 = vunpack.c.l.s4 1983009808
    %v4102 = vunpack.c.0.s8 %v4101
    %v4103 = vlaneseq
    %v4104 = vshrl.u32 %v4103, 7
    %v4105 = vsub.s32 %v4102, %v4104
    %v4106 = vrot.slane %v4092, %v4105
    %v4107 = vcombine.high %v4021, 0.0
    %v4109 = vunpack.c.l.s4 1983009808
    %v4110 = vunpack.c.0.s8 %v4109
    %v4111 = vlaneseq
    %v4112 = vshrl.u32 %v4111, 7
    %v4113 = vsub.s32 %v4110, %v4112
    %v4114 = vrot.slane %v4021, %v4113
    %v4116 = vunpack.c.l.s4 1983009808
    %v4117 = vunpack.c.0.s8 %v4116
    %v4118 = vlaneseq
    %v4119 = vshrl.u32 %v4118, 7
    %v4120 = vsub.s32 %v4117, %v4119
    %v4121 = vrot.slane %v4107, %v4120
    %v4122 = vcombine.low %v4099, %v4114
    %v4123 = vcombine.high %v4099, %v4114
    %v4125 = vunpack.c.l.s4 1934713408
    %v4126 = vunpack.c.0.s8 %v4125
    %v4127 = vlaneseq
    %v4128 = vshrl.u32 %v4127, 7
    %v4129 = vsub.s32 %v4126, %v4128
    %v4130 = vrot.slane %v4122, %v4129
    %v4132 = vunpack.c.l.s4 1934713408
    %v4133 = vunpack.c.0.s8 %v4132
    %v4134 = vlaneseq
    %v4135 = vshrl.u32 %v4134, 7
    %v4136 = vsub.s32 %v4133, %v4135
    %v4137 = vrot.slane %v4123, %v4136
    %v4138 = vcombine.low %v4106, %v4121
    %v4139 = vcombine.high %v4106, %v4121
    %v4141 = vunpack.c.l.s4 1934713408
    %v4142 = vunpack.c.0.s8 %v4141
    %v4143 = vlaneseq
    %v4144 = vshrl.u32 %v4143, 7
    %v4145 = vsub.s32 %v4142, %v4144
    %v4146 = vrot.slane %v4138, %v4145
    %v4148 = vunpack.c.l.s4 1934713408
    %v4149 = vunpack.c.0.s8 %v4148
    %v4150 = vlaneseq
    %v4151 = vshrl.u32 %v4150, 7
    %v4152 = vsub.s32 %v4149, %v4151
    %v4153 = vrot.slane %v4139, %v4152
    %v4154 = vcombine.high %v4130, 0.0
    %v4155 = vcombine.high %v4137, 0.0
    %v4156 = vcombine.high %v4146, 0.0
    %v4157 = vcombine.high %v4153, 0.0
    %v4158 = vcombine.low %v4064, %v4071
    %v4160 = vunpack.c.l.s4 1983009808
    %v4161 = vunpack.c.0.s8 %v4160
    %v4162 = vlaneseq
    %v4163 = vshrl.u32 %v4162, 7
    %v4164 = vsub.s32 %v4161, %v4163
    %v4165 = vrot.slane %v4158, %v4164
    %v4166 = vcombine.low %v4088, %v4089
    %v4168 = vunpack.c.l.s4 1983009808
    %v4169 = vunpack.c.0.s8 %v4168
    %v4170 = vlaneseq
    %v4171 = vshrl.u32 %v4170, 7
    %v4172 = vsub.s32 %v4169, %v4171
    %v4173 = vrot.slane %v4166, %v4172
    %v4174 = vcombine.low %v4080, %v4087
    %v4176 = vunpack.c.l.s4 1983009808
    %v4177 = vunpack.c.0.s8 %v4176
    %v4178 = vlaneseq
    %v4179 = vshrl.u32 %v4178, 7
    %v4180 = vsub.s32 %v4177, %v4179
    %v4181 = vrot.slane %v4174, %v4180
    %v4182 = vcombine.low %v4090, %v4091
    %v4184 = vunpack.c.l.s4 1983009808
    %v4185 = vunpack.c.0.s8 %v4184
    %v4186 = vlaneseq
    %v4187 = vshrl.u32 %v4186, 7
    %v4188 = vsub.s32 %v4185, %v4187
    %v4189 = vrot.slane %v4182, %v4188
    %v4190 = vcombine.low %v4165, %v4173
    %v4192 = vunpack.c.l.s4 1934713408
    %v4193 = vunpack.c.0.s8 %v4192
    %v4194 = vlaneseq
    %v4195 = vshrl.u32 %v4194, 7
    %v4196 = vsub.s32 %v4193, %v4195
    %v4197 = vrot.slane %v4190, %v4196
    %v4198 = vcombine.low %v4181, %v4189
    %v4200 = vunpack.c.l.s4 1934713408
    %v4201 = vunpack.c.0.s8 %v4200
    %v4202 = vlaneseq
    %v4203 = vshrl.u32 %v4202, 7
    %v4204 = vsub.s32 %v4201, %v4203
    %v4205 = vrot.slane %v4198, %v4204
    %v4206 = vcombine.low %v4197, %v4205
    %v4207 = vcombine.high %v4197, %v4205
    %v4208 = vcombine.low %v4130, %v4137
    %v4210 = vunpack.c.l.s4 1983009808
    %v4211 = vunpack.c.0.s8 %v4210
    %v4212 = vlaneseq
    %v4213 = vshrl.u32 %v4212, 7
    %v4214 = vsub.s32 %v4211, %v4213
    %v4215 = vrot.slane %v4208, %v4214
    %v4216 = vcombine.low %v4154, %v4155
    %v4218 = vunpack.c.l.s4 1983009808
    %v4219 = vunpack.c.0.s8 %v4218
    %v4220 = vlaneseq
    %v4221 = vshrl.u32 %v4220, 7
    %v4222 = vsub.s32 %v4219, %v4221
    %v4223 = vrot.slane %v4216, %v4222
    %v4224 = vcombine.low %v4146, %v4153
    %v4226 = vunpack.c.l.s4 1983009808
    %v4227 = vunpack.c.0.s8 %v4226
    %v4228 = vlaneseq
    %v4229 = vshrl.u32 %v4228, 7
    %v4230 = vsub.s32 %v4227, %v4229
    %v4231 = vrot.slane %v4224, %v4230
    %v4232 = vcombine.low %v4156, %v4157
    %v4234 = vunpack.c.l.s4 1983009808
    %v4235 = vunpack.c.0.s8 %v4234
    %v4236 = vlaneseq
    %v4237 = vshrl.u32 %v4236, 7
    %v4238 = vsub.s32 %v4235, %v4237
    %v4239 = vrot.slane %v4232, %v4238
    %v4240 = vcombine.low %v4215, %v4223
    %v4242 = vunpack.c.l.s4 1934713408
    %v4243 = vunpack.c.0.s8 %v4242
    %v4244 = vlaneseq
    %v4245 = vshrl.u32 %v4244, 7
    %v4246 = vsub.s32 %v4243, %v4245
    %v4247 = vrot.slane %v4240, %v4246
    %v4248 = vcombine.low %v4231, %v4239
    %v4250 = vunpack.c.l.s4 1934713408
    %v4251 = vunpack.c.0.s8 %v4250
    %v4252 = vlaneseq
    %v4253 = vshrl.u32 %v4252, 7
    %v4254 = vsub.s32 %v4251, %v4253
    %v4255 = vrot.slane %v4248, %v4254
    %v4256 = vcombine.low %v4247, %v4255
    %v4257 = vcombine.high %v4247, %v4255
    %4260 = vrot.lane.b32.xlu0 %v4207, 64
    %v4261 = vpop.permute.xlu0 %4260
    %4262 = vrot.lane.b32.xlu0 %v4257, 64
    %v4263 = vpop.permute.xlu0 %4262
    %v4266 = vsel %vm1390, %v4206, %v4261
    %v4267 = vsel %vm1390, %v4256, %v4263
    %v4268 = vpack.c.bf16 %v4267, %v4266
    %s4269 = scalar_lea.vmem [#allocation16], 64
    %v4270 = vld [vmem:[%s4269] sm:$0xf]
    %v4271 = vld [vmem:[%s4269 + $0x4] sm:$0xf]
    %v4272 = vld [vmem:[%s4269 + $0x8] sm:$0xf]
    %v4273 = vld [vmem:[%s4269 + $0xc] sm:$0xf]
    %v4274 = vld [vmem:[%s4269 + $0x10] sm:$0xf]
    %v4275 = vld [vmem:[%s4269 + $0x14] sm:$0xf]
    %v4276 = vld [vmem:[%s4269 + $0x18] sm:$0xf]
    %v4277 = vld [vmem:[%s4269 + $0x1c] sm:$0xf]
    %v4278 = vld [vmem:[%s4269 + $0x20] sm:$0xf]
    %v4279 = vld [vmem:[%s4269 + $0x24] sm:$0xf]
    %v4280 = vld [vmem:[%s4269 + $0x28] sm:$0xf]
    %v4281 = vld [vmem:[%s4269 + $0x2c] sm:$0xf]
    %v4282 = vld [vmem:[%s4269 + $0x30] sm:$0xf]
    %v4283 = vld [vmem:[%s4269 + $0x34] sm:$0xf]
    %v4284 = vld [vmem:[%s4269 + $0x38] sm:$0xf]
    %v4285 = vld [vmem:[%s4269 + $0x3c] sm:$0xf]
    %s4286 = scalar_lea.vmem [#allocation17], 1
    %v4287 = vld [vmem:[%s4286] sm:$0x1]
    %v4289 = vlaneseq
    %v4290 = vshrl.u32 %v4289, 7
    %v4291 = vsub.s32 0, %v4290
    %v4292 = vrot.slane %v4287, %v4291
    %v4310 = vunpack.c.l.b16 %v4270
    %v4311 = vunpack.c.l.b16 %v4271
    %v4312 = vunpack.c.l.b16 %v4272
    %v4313 = vunpack.c.l.b16 %v4273
    %v4314 = vunpack.c.l.b16 %v4274
    %v4315 = vunpack.c.l.b16 %v4275
    %v4316 = vunpack.c.l.b16 %v4276
    %v4317 = vunpack.c.l.b16 %v4277
    %v4318 = vunpack.c.l.b16 %v4278
    %v4319 = vunpack.c.l.b16 %v4279
    %v4320 = vunpack.c.l.b16 %v4280
    %v4321 = vunpack.c.l.b16 %v4281
    %v4322 = vunpack.c.l.b16 %v4282
    %v4323 = vunpack.c.l.b16 %v4283
    %v4324 = vunpack.c.l.b16 %v4284
    %v4325 = vunpack.c.l.b16 %v4285
    %v4326 = vpack.c.b16 %v4311, %v4310
    %v4327 = vpack.c.b16 %v4313, %v4312
    %v4328 = vpack.c.b16 %v4315, %v4314
    %v4329 = vpack.c.b16 %v4317, %v4316
    %v4330 = vpack.c.b16 %v4319, %v4318
    %v4331 = vpack.c.b16 %v4321, %v4320
    %v4332 = vpack.c.b16 %v4323, %v4322
    %v4333 = vpack.c.b16 %v4325, %v4324
    %4342 = vmatprep.subr.bf16.mxu0 0
    %4343 = vmatpush1.bf16.msra.mxu0 %v4326
    %4344 = vmatprep.subr.bf16.mxu0 0
    %4345 = vmatpush1.bf16.msra.mxu0 %v4327
    %4346 = vmatprep.subr.bf16.mxu0 0
    %4347 = vmatpush1.bf16.msra.mxu0 %v4328
    %4348 = vmatprep.subr.bf16.mxu0 0
    %4349 = vmatpush1.bf16.msra.mxu0 %v4329
    %4350 = vmatprep.subr.bf16.mxu0 0
    %4351 = vmatpush1.bf16.msra.mxu0 %v4330
    %4352 = vmatprep.subr.bf16.mxu0 0
    %4353 = vmatpush1.bf16.msra.mxu0 %v4331
    %4354 = vmatprep.subr.bf16.mxu0 0
    %4355 = vmatpush1.bf16.msra.mxu0 %v4332
    %4356 = vmatprep.subr.bf16.mxu0 0
    %4357 = vmatpush1.bf16.msra.mxu0 %v4333
    %4358 = vmatprep.subr.bf16.mxu0 0
    %4359 = vmatpush1.bf16.msra.mxu0 0
    %4360 = vmatprep.subr.bf16.mxu0 0
    %4361 = vmatpush1.bf16.msra.mxu0 0
    %4362 = vmatprep.subr.bf16.mxu0 0
    %4363 = vmatpush1.bf16.msra.mxu0 0
    %4364 = vmatprep.subr.bf16.mxu0 0
    %4365 = vmatpush1.bf16.msra.mxu0 0
    %4366 = vmatprep.subr.bf16.mxu0 0
    %4367 = vmatpush1.bf16.msra.mxu0 0
    %4368 = vmatprep.subr.bf16.mxu0 0
    %4369 = vmatpush1.bf16.msra.mxu0 0
    %4370 = vmatprep.subr.bf16.mxu0 0
    %4371 = vmatpush1.bf16.msra.mxu0 0
    %4372 = vmatprep.subr.bf16.mxu0 0
    %4373 = vmatpush1.bf16.msra.mxu0 0
    %4374 = vmatprep.mubr.bf16.mxu0 0
    %4375 = vmatmul.mubr.bf16.gmra.mrb[0].mxu0 %v4268
    %v4376 = vpop.f32.mrb[0].mxu0
    %v4377 = vadd.f32 %v4292, %v4376
    %v4378 = vpop.f32.mrb[0].mxu0
    %v4379 = vpop.f32.mrb[0].mxu0
    %v4380 = vadd.f32 %v4292, %v4379
    %v4381 = vpop.f32.mrb[0].mxu0
    %4382 = vdwg.mxu0
    %v4383 = vadd.f32 %v4377, %v2612
    %v4384 = vadd.f32 %v4380, %v2613
    %4385 = vadd.xlane.f32.xlu0 %v4383
    %v4386 = vpop.xlane.xlu0 %4385
    %4387 = vadd.xlane.f32.xlu0 %v4384
    %v4388 = vpop.xlane.xlu0 %4387
    %v4389 = vmul.f32 %v4386, %v325
    %v4390 = vmul.f32 %v4388, %v325
    %v4391 = vsub.f32 %v4383, %v4389
    %v4392 = vsub.f32 %v4384, %v4390
    %v4393 = vmul.f32 %v4391, %v4391
    %v4394 = vmul.f32 %v4392, %v4392
    %4395 = vadd.xlane.f32.xlu0 %v4393
    %v4396 = vpop.xlane.xlu0 %4395
    %4397 = vadd.xlane.f32.xlu0 %v4394
    %v4398 = vpop.xlane.xlu0 %4397
    %v4399 = vmul.f32 %v4396, %v325
    %v4400 = vmul.f32 %v4398, %v325
    %v4401 = vadd.f32 %v4399, 1e-12
    %v4402 = vadd.f32 %v4400, 1e-12
    %v4403 = vrsqrt.pop %v4401
    %v4404 = vrsqrt.pop %v4402
    %v4405 = vmul.f32 %v4391, %v4403
    %v4406 = vmul.f32 %v4392, %v4404
    %s4407 = scalar_lea.vmem [#allocation19], 1
    %v4408 = vld [vmem:[%s4407] sm:$0x1]
    %v4410 = vlaneseq
    %v4411 = vshrl.u32 %v4410, 7
    %v4412 = vsub.s32 0, %v4411
    %v4413 = vrot.slane %v4408, %v4412
    %v4415 = vmul.f32 %v4405, %v4413
    %v4416 = vmul.f32 %v4406, %v4413
    %s4417 = scalar_lea.vmem [#allocation20], 1
    %v4418 = vld [vmem:[%s4417] sm:$0x1]
    %v4420 = vlaneseq
    %v4421 = vshrl.u32 %v4420, 7
    %v4422 = vsub.s32 0, %v4421
    %v4423 = vrot.slane %v4418, %v4422
    %v4425 = vadd.f32 %v4415, %v4423
    %v4426 = vadd.f32 %v4416, %v4423
    %v4427 = vpack.c.bf16 %v4426, %v4425
    %s4428 = scalar_lea.vmem [#allocation22], 128
    %v4429 = vld [vmem:[%s4428] sm:$0xff]
    %v4430 = vld [vmem:[%s4428 + $0x8] sm:$0xff]
    %v4431 = vld [vmem:[%s4428 + $0x10] sm:$0xff]
    %v4432 = vld [vmem:[%s4428 + $0x18] sm:$0xff]
    %v4433 = vld [vmem:[%s4428 + $0x20] sm:$0xff]
    %v4434 = vld [vmem:[%s4428 + $0x28] sm:$0xff]
    %v4435 = vld [vmem:[%s4428 + $0x30] sm:$0xff]
    %v4436 = vld [vmem:[%s4428 + $0x38] sm:$0xff]
    %v4437 = vld [vmem:[%s4428 + $0x40] sm:$0xff]
    %v4438 = vld [vmem:[%s4428 + $0x48] sm:$0xff]
    %v4439 = vld [vmem:[%s4428 + $0x50] sm:$0xff]
    %v4440 = vld [vmem:[%s4428 + $0x58] sm:$0xff]
    %v4441 = vld [vmem:[%s4428 + $0x60] sm:$0xff]
    %v4442 = vld [vmem:[%s4428 + $0x68] sm:$0xff]
    %v4443 = vld [vmem:[%s4428 + $0x70] sm:$0xff]
    %v4444 = vld [vmem:[%s4428 + $0x78] sm:$0xff]
    %s4445 = scalar_lea.vmem %s13, 2
    %v4446 = vld [vmem:[%s4445] sm:$0x3]
    %v4448 = vlaneseq
    %v4449 = vshrl.u32 %v4448, 7
    %v4450 = vsub.s32 0, %v4449
    %v4451 = vrot.slane %v4446, %v4450
    %v4452 = vlaneseq
    %v4453 = vshrl.u32 %v4452, 7
    %v4454 = vsub.s32 1, %v4453
    %v4455 = vrot.slane %v4446, %v4454
    %v4474 = vunpack.c.l.b16 %v4429
    %v4475 = vunpack.c.h.b16 %v4429
    %v4476 = vunpack.c.l.b16 %v4430
    %v4477 = vunpack.c.h.b16 %v4430
    %v4478 = vunpack.c.l.b16 %v4431
    %v4479 = vunpack.c.h.b16 %v4431
    %v4480 = vunpack.c.l.b16 %v4432
    %v4481 = vunpack.c.h.b16 %v4432
    %v4482 = vunpack.c.l.b16 %v4433
    %v4483 = vunpack.c.h.b16 %v4433
    %v4484 = vunpack.c.l.b16 %v4434
    %v4485 = vunpack.c.h.b16 %v4434
    %v4486 = vunpack.c.l.b16 %v4435
    %v4487 = vunpack.c.h.b16 %v4435
    %v4488 = vunpack.c.l.b16 %v4436
    %v4489 = vunpack.c.h.b16 %v4436
    %v4490 = vunpack.c.l.b16 %v4437
    %v4491 = vunpack.c.h.b16 %v4437
    %v4492 = vunpack.c.l.b16 %v4438
    %v4493 = vunpack.c.h.b16 %v4438
    %v4494 = vunpack.c.l.b16 %v4439
    %v4495 = vunpack.c.h.b16 %v4439
    %v4496 = vunpack.c.l.b16 %v4440
    %v4497 = vunpack.c.h.b16 %v4440
    %v4498 = vunpack.c.l.b16 %v4441
    %v4499 = vunpack.c.h.b16 %v4441
    %v4500 = vunpack.c.l.b16 %v4442
    %v4501 = vunpack.c.h.b16 %v4442
    %v4502 = vunpack.c.l.b16 %v4443
    %v4503 = vunpack.c.h.b16 %v4443
    %v4504 = vunpack.c.l.b16 %v4444
    %v4505 = vunpack.c.h.b16 %v4444
    %v4506 = vpack.c.b16 %v4476, %v4474
    %v4507 = vpack.c.b16 %v4477, %v4475
    %v4508 = vpack.c.b16 %v4480, %v4478
    %v4509 = vpack.c.b16 %v4481, %v4479
    %v4510 = vpack.c.b16 %v4484, %v4482
    %v4511 = vpack.c.b16 %v4485, %v4483
    %v4512 = vpack.c.b16 %v4488, %v4486
    %v4513 = vpack.c.b16 %v4489, %v4487
    %v4514 = vpack.c.b16 %v4492, %v4490
    %v4515 = vpack.c.b16 %v4493, %v4491
    %v4516 = vpack.c.b16 %v4496, %v4494
    %v4517 = vpack.c.b16 %v4497, %v4495
    %v4518 = vpack.c.b16 %v4500, %v4498
    %v4519 = vpack.c.b16 %v4501, %v4499
    %v4520 = vpack.c.b16 %v4504, %v4502
    %v4521 = vpack.c.b16 %v4505, %v4503
    %4538 = vmatprep.subr.bf16.mxu0 %v4507
    %4539 = vmatpush1.bf16.msra.mxu0 %v4506
    %4540 = vmatprep.subr.bf16.mxu0 %v4509
    %4541 = vmatpush1.bf16.msra.mxu0 %v4508
    %4542 = vmatprep.subr.bf16.mxu0 %v4511
    %4543 = vmatpush1.bf16.msra.mxu0 %v4510
    %4544 = vmatprep.subr.bf16.mxu0 %v4513
    %4545 = vmatpush1.bf16.msra.mxu0 %v4512
    %4546 = vmatprep.subr.bf16.mxu0 %v4515
    %4547 = vmatpush1.bf16.msra.mxu0 %v4514
    %4548 = vmatprep.subr.bf16.mxu0 %v4517
    %4549 = vmatpush1.bf16.msra.mxu0 %v4516
    %4550 = vmatprep.subr.bf16.mxu0 %v4519
    %4551 = vmatpush1.bf16.msra.mxu0 %v4518
    %4552 = vmatprep.subr.bf16.mxu0 %v4521
    %4553 = vmatpush1.bf16.msra.mxu0 %v4520
    %4554 = vmatprep.subr.bf16.mxu0 0
    %4555 = vmatpush1.bf16.msra.mxu0 0
    %4556 = vmatprep.subr.bf16.mxu0 0
    %4557 = vmatpush1.bf16.msra.mxu0 0
    %4558 = vmatprep.subr.bf16.mxu0 0
    %4559 = vmatpush1.bf16.msra.mxu0 0
    %4560 = vmatprep.subr.bf16.mxu0 0
    %4561 = vmatpush1.bf16.msra.mxu0 0
    %4562 = vmatprep.subr.bf16.mxu0 0
    %4563 = vmatpush1.bf16.msra.mxu0 0
    %4564 = vmatprep.subr.bf16.mxu0 0
    %4565 = vmatpush1.bf16.msra.mxu0 0
    %4566 = vmatprep.subr.bf16.mxu0 0
    %4567 = vmatpush1.bf16.msra.mxu0 0
    %4568 = vmatprep.subr.bf16.mxu0 0
    %4569 = vmatpush1.bf16.msra.mxu0 0
    %4570 = vmatprep.mubr.bf16.mxu0 0
    %4571 = vmatmul.mubr.bf16.gmra.mrb[0].mxu0 %v4427
    %v4572 = vpop.f32.mrb[0].mxu0
    %v4573 = vadd.f32 %v4451, %v4572
    %v4574 = vpop.f32.mrb[0].mxu0
    %v4575 = vadd.f32 %v4455, %v4574
    %v4576 = vpop.f32.mrb[0].mxu0
    %v4577 = vadd.f32 %v4451, %v4576
    %v4578 = vpop.f32.mrb[0].mxu0
    %v4579 = vadd.f32 %v4455, %v4578
    %4580 = vdwg.mxu0
    %v4581 = vmul.f32 %v4573, %v4573
    %v4582 = vmul.f32 %v4575, %v4575
    %v4583 = vmul.f32 %v4577, %v4577
    %v4584 = vmul.f32 %v4579, %v4579
    %v4585 = vmul.f32 %v4573, %v4581
    %v4586 = vmul.f32 %v4575, %v4582
    %v4587 = vmul.f32 %v4577, %v4583
    %v4588 = vmul.f32 %v4579, %v4584
    %v4589 = vmul.f32 %v4585, 0.044715
    %v4590 = vmul.f32 %v4586, 0.044715
    %v4591 = vmul.f32 %v4587, 0.044715
    %v4592 = vmul.f32 %v4588, 0.044715
    %v4593 = vadd.f32 %v4573, %v4589
    %v4594 = vadd.f32 %v4575, %v4590
    %v4595 = vadd.f32 %v4577, %v4591
    %v4596 = vadd.f32 %v4579, %v4592
    %v4597 = vmul.f32 %v4593, 0.7978846
    %v4598 = vmul.f32 %v4594, 0.7978846
    %v4599 = vmul.f32 %v4595, 0.7978846
    %v4600 = vmul.f32 %v4596, 0.7978846
    %v4601 = vtanh.pop %v4597
    %v4602 = vtanh.pop %v4598
    %v4603 = vtanh.pop %v4599
    %v4604 = vtanh.pop %v4600
    %v4605 = vadd.f32 %v4601, 1.0
    %v4606 = vadd.f32 %v4602, 1.0
    %v4607 = vadd.f32 %v4603, 1.0
    %v4608 = vadd.f32 %v4604, 1.0
    %v4609 = vmul.f32 %v4605, 0.5
    %v4610 = vmul.f32 %v4606, 0.5
    %v4611 = vmul.f32 %v4607, 0.5
    %v4612 = vmul.f32 %v4608, 0.5
    %v4613 = vmul.f32 %v4573, %v4609
    %v4614 = vmul.f32 %v4575, %v4610
    %v4615 = vmul.f32 %v4577, %v4611
    %v4616 = vmul.f32 %v4579, %v4612
    %v4617 = vpack.c.bf16 %v4615, %v4613
    %v4618 = vpack.c.bf16 %v4616, %v4614
    %s4619 = scalar_lea.vmem [#allocation23], 128
    %v4620 = vld [vmem:[%s4619] sm:$0xf]
    %v4621 = vld [vmem:[%s4619 + $0x4] sm:$0xf]
    %v4622 = vld [vmem:[%s4619 + $0x8] sm:$0xf]
    %v4623 = vld [vmem:[%s4619 + $0xc] sm:$0xf]
    %v4624 = vld [vmem:[%s4619 + $0x10] sm:$0xf]
    %v4625 = vld [vmem:[%s4619 + $0x14] sm:$0xf]
    %v4626 = vld [vmem:[%s4619 + $0x18] sm:$0xf]
    %v4627 = vld [vmem:[%s4619 + $0x1c] sm:$0xf]
    %v4628 = vld [vmem:[%s4619 + $0x20] sm:$0xf]
    %v4629 = vld [vmem:[%s4619 + $0x24] sm:$0xf]
    %v4630 = vld [vmem:[%s4619 + $0x28] sm:$0xf]
    %v4631 = vld [vmem:[%s4619 + $0x2c] sm:$0xf]
    %v4632 = vld [vmem:[%s4619 + $0x30] sm:$0xf]
    %v4633 = vld [vmem:[%s4619 + $0x34] sm:$0xf]
    %v4634 = vld [vmem:[%s4619 + $0x38] sm:$0xf]
    %v4635 = vld [vmem:[%s4619 + $0x3c] sm:$0xf]
    %v4636 = vld [vmem:[%s4619 + $0x40] sm:$0xf]
    %v4637 = vld [vmem:[%s4619 + $0x44] sm:$0xf]
    %v4638 = vld [vmem:[%s4619 + $0x48] sm:$0xf]
    %v4639 = vld [vmem:[%s4619 + $0x4c] sm:$0xf]
    %v4640 = vld [vmem:[%s4619 + $0x50] sm:$0xf]
    %v4641 = vld [vmem:[%s4619 + $0x54] sm:$0xf]
    %v4642 = vld [vmem:[%s4619 + $0x58] sm:$0xf]
    %v4643 = vld [vmem:[%s4619 + $0x5c] sm:$0xf]
    %v4644 = vld [vmem:[%s4619 + $0x60] sm:$0xf]
    %v4645 = vld [vmem:[%s4619 + $0x64] sm:$0xf]
    %v4646 = vld [vmem:[%s4619 + $0x68] sm:$0xf]
    %v4647 = vld [vmem:[%s4619 + $0x6c] sm:$0xf]
    %v4648 = vld [vmem:[%s4619 + $0x70] sm:$0xf]
    %v4649 = vld [vmem:[%s4619 + $0x74] sm:$0xf]
    %v4650 = vld [vmem:[%s4619 + $0x78] sm:$0xf]
    %v4651 = vld [vmem:[%s4619 + $0x7c] sm:$0xf]
    %s4652 = scalar_lea.vmem [#allocation25], 1
    %v4653 = vld [vmem:[%s4652] sm:$0x1]
    %v4655 = vlaneseq
    %v4656 = vshrl.u32 %v4655, 7
    %v4657 = vsub.s32 0, %v4656
    %v4658 = vrot.slane %v4653, %v4657
    %v4692 = vunpack.c.l.b16 %v4620
    %v4693 = vunpack.c.l.b16 %v4621
    %v4694 = vunpack.c.l.b16 %v4622
    %v4695 = vunpack.c.l.b16 %v4623
    %v4696 = vunpack.c.l.b16 %v4624
    %v4697 = vunpack.c.l.b16 %v4625
    %v4698 = vunpack.c.l.b16 %v4626
    %v4699 = vunpack.c.l.b16 %v4627
    %v4700 = vunpack.c.l.b16 %v4628
    %v4701 = vunpack.c.l.b16 %v4629
    %v4702 = vunpack.c.l.b16 %v4630
    %v4703 = vunpack.c.l.b16 %v4631
    %v4704 = vunpack.c.l.b16 %v4632
    %v4705 = vunpack.c.l.b16 %v4633
    %v4706 = vunpack.c.l.b16 %v4634
    %v4707 = vunpack.c.l.b16 %v4635
    %v4708 = vunpack.c.l.b16 %v4636
    %v4709 = vunpack.c.l.b16 %v4637
    %v4710 = vunpack.c.l.b16 %v4638
    %v4711 = vunpack.c.l.b16 %v4639
    %v4712 = vunpack.c.l.b16 %v4640
    %v4713 = vunpack.c.l.b16 %v4641
    %v4714 = vunpack.c.l.b16 %v4642
    %v4715 = vunpack.c.l.b16 %v4643
    %v4716 = vunpack.c.l.b16 %v4644
    %v4717 = vunpack.c.l.b16 %v4645
    %v4718 = vunpack.c.l.b16 %v4646
    %v4719 = vunpack.c.l.b16 %v4647
    %v4720 = vunpack.c.l.b16 %v4648
    %v4721 = vunpack.c.l.b16 %v4649
    %v4722 = vunpack.c.l.b16 %v4650
    %v4723 = vunpack.c.l.b16 %v4651
    %v4724 = vpack.c.b16 %v4693, %v4692
    %v4725 = vpack.c.b16 %v4695, %v4694
    %v4726 = vpack.c.b16 %v4697, %v4696
    %v4727 = vpack.c.b16 %v4699, %v4698
    %v4728 = vpack.c.b16 %v4701, %v4700
    %v4729 = vpack.c.b16 %v4703, %v4702
    %v4730 = vpack.c.b16 %v4705, %v4704
    %v4731 = vpack.c.b16 %v4707, %v4706
    %v4732 = vpack.c.b16 %v4709, %v4708
    %v4733 = vpack.c.b16 %v4711, %v4710
    %v4734 = vpack.c.b16 %v4713, %v4712
    %v4735 = vpack.c.b16 %v4715, %v4714
    %v4736 = vpack.c.b16 %v4717, %v4716
    %v4737 = vpack.c.b16 %v4719, %v4718
    %v4738 = vpack.c.b16 %v4721, %v4720
    %v4739 = vpack.c.b16 %v4723, %v4722
    %4756 = vmatprep.subr.bf16.mxu0 0
    %4757 = vmatpush1.bf16.msra.mxu0 %v4724
    %4758 = vmatprep.subr.bf16.mxu0 0
    %4759 = vmatpush1.bf16.msra.mxu0 %v4725
    %4760 = vmatprep.subr.bf16.mxu0 0
    %4761 = vmatpush1.bf16.msra.mxu0 %v4726
    %4762 = vmatprep.subr.bf16.mxu0 0
    %4763 = vmatpush1.bf16.msra.mxu0 %v4727
    %4764 = vmatprep.subr.bf16.mxu0 0
    %4765 = vmatpush1.bf16.msra.mxu0 %v4728
    %4766 = vmatprep.subr.bf16.mxu0 0
    %4767 = vmatpush1.bf16.msra.mxu0 %v4729
    %4768 = vmatprep.subr.bf16.mxu0 0
    %4769 = vmatpush1.bf16.msra.mxu0 %v4730
    %4770 = vmatprep.subr.bf16.mxu0 0
    %4771 = vmatpush1.bf16.msra.mxu0 %v4731
    %4772 = vmatprep.subr.bf16.mxu0 0
    %4773 = vmatpush1.bf16.msra.mxu0 %v4732
    %4774 = vmatprep.subr.bf16.mxu0 0
    %4775 = vmatpush1.bf16.msra.mxu0 %v4733
    %4776 = vmatprep.subr.bf16.mxu0 0
    %4777 = vmatpush1.bf16.msra.mxu0 %v4734
    %4778 = vmatprep.subr.bf16.mxu0 0
    %4779 = vmatpush1.bf16.msra.mxu0 %v4735
    %4780 = vmatprep.subr.bf16.mxu0 0
    %4781 = vmatpush1.bf16.msra.mxu0 %v4736
    %4782 = vmatprep.subr.bf16.mxu0 0
    %4783 = vmatpush1.bf16.msra.mxu0 %v4737
    %4784 = vmatprep.subr.bf16.mxu0 0
    %4785 = vmatpush1.bf16.msra.mxu0 %v4738
    %4786 = vmatprep.subr.bf16.mxu0 0
    %4787 = vmatpush1.bf16.msra.mxu0 %v4739
    %4788 = vmatprep.mubr.bf16.mxu0 %v4618
    %4789 = vmatmul.mubr.bf16.gmra.mrb[0].mxu0 %v4617
    %v4790 = vpop.f32.mrb[0].mxu0
    %v4791 = vadd.f32 %v4658, %v4790
    %v4792 = vpop.f32.mrb[0].mxu0
    %v4793 = vpop.f32.mrb[0].mxu0
    %v4794 = vadd.f32 %v4658, %v4793
    %v4795 = vpop.f32.mrb[0].mxu0
    %4796 = vdwg.mxu0
    %v4797 = vadd.f32 %v4791, %v4425
    %v4798 = vadd.f32 %v4794, %v4426
    %4799 = vadd.xlane.f32.xlu0 %v4797
    %v4800 = vpop.xlane.xlu0 %4799
    %4801 = vadd.xlane.f32.xlu0 %v4798
    %v4802 = vpop.xlane.xlu0 %4801
    %v4803 = vmul.f32 %v4800, %v325
    %v4804 = vmul.f32 %v4802, %v325
    %v4805 = vsub.f32 %v4797, %v4803
    %v4806 = vsub.f32 %v4798, %v4804
    %v4807 = vmul.f32 %v4805, %v4805
    %v4808 = vmul.f32 %v4806, %v4806
    %4809 = vadd.xlane.f32.xlu0 %v4807
    %v4810 = vpop.xlane.xlu0 %4809
    %4811 = vadd.xlane.f32.xlu0 %v4808
    %v4812 = vpop.xlane.xlu0 %4811
    %v4813 = vmul.f32 %v4810, %v325
    %v4814 = vmul.f32 %v4812, %v325
    %v4815 = vadd.f32 %v4813, 1e-12
    %v4816 = vadd.f32 %v4814, 1e-12
    %v4817 = vrsqrt.pop %v4815
    %v4818 = vrsqrt.pop %v4816
    %v4819 = vmul.f32 %v4805, %v4817
    %v4820 = vmul.f32 %v4806, %v4818
    %s4821 = scalar_lea.vmem [#allocation26], 1
    %v4822 = vld [vmem:[%s4821] sm:$0x1]
    %v4824 = vlaneseq
    %v4825 = vshrl.u32 %v4824, 7
    %v4826 = vsub.s32 0, %v4825
    %v4827 = vrot.slane %v4822, %v4826
    %v4829 = vmul.f32 %v4819, %v4827
    %v4830 = vmul.f32 %v4820, %v4827
    %s4831 = scalar_lea.vmem [#allocation28], 1
    %v4832 = vld [vmem:[%s4831] sm:$0x1]
    %v4834 = vlaneseq
    %v4835 = vshrl.u32 %v4834, 7
    %v4836 = vsub.s32 0, %v4835
    %v4837 = vrot.slane %v4832, %v4836
    %v4839 = vadd.f32 %v4829, %v4837
    %v4840 = vadd.f32 %v4830, %v4837
    %v4841 = vpack.c.bf16 %v4839, %v4839
    %v4842 = vpack.c.bf16 %v4840, %v4840
    %v4843 = vld [vmem:[%s18] sm:$0xf]
    %v4844 = vld [vmem:[%s18 + $0x4] sm:$0xf]
    %v4845 = vld [vmem:[%s18 + $0x8] sm:$0xf]
    %v4846 = vld [vmem:[%s18 + $0xc] sm:$0xf]
    %v4847 = vld [vmem:[%s18 + $0x10] sm:$0xf]
    %v4848 = vld [vmem:[%s18 + $0x14] sm:$0xf]
    %v4849 = vld [vmem:[%s18 + $0x18] sm:$0xf]
    %v4850 = vld [vmem:[%s18 + $0x1c] sm:$0xf]
    %v4851 = vld [vmem:[%s18 + $0x20] sm:$0xf]
    %v4852 = vld [vmem:[%s18 + $0x24] sm:$0xf]
    %v4853 = vld [vmem:[%s18 + $0x28] sm:$0xf]
    %v4854 = vld [vmem:[%s18 + $0x2c] sm:$0xf]
    %v4855 = vld [vmem:[%s18 + $0x30] sm:$0xf]
    %v4856 = vld [vmem:[%s18 + $0x34] sm:$0xf]
    %v4857 = vld [vmem:[%s18 + $0x38] sm:$0xf]
    %v4858 = vld [vmem:[%s18 + $0x3c] sm:$0xf]
    %v4859 = vld [vmem:[%s19] sm:$0x1]
    %v4861 = vlaneseq
    %v4862 = vshrl.u32 %v4861, 7
    %v4863 = vsub.s32 0, %v4862
    %v4864 = vrot.slane %v4859, %v4863
    %v4868 = vunpack.c.l.b16 %v4841
    %v4869 = vunpack.c.l.b16 %v4842
    %v4870 = vrot.slane %v4869, 7
    %vm4871 = vcmask 1041409
    %v4872 = vsel %vm4871, %v4870, %v4868
    %v4873 = vpack.c.b16 %v4872, %v4872
    %v4891 = vunpack.c.l.b16 %v4843
    %v4892 = vunpack.c.l.b16 %v4844
    %v4893 = vunpack.c.l.b16 %v4845
    %v4894 = vunpack.c.l.b16 %v4846
    %v4895 = vunpack.c.l.b16 %v4847
    %v4896 = vunpack.c.l.b16 %v4848
    %v4897 = vunpack.c.l.b16 %v4849
    %v4898 = vunpack.c.l.b16 %v4850
    %v4899 = vunpack.c.l.b16 %v4851
    %v4900 = vunpack.c.l.b16 %v4852
    %v4901 = vunpack.c.l.b16 %v4853
    %v4902 = vunpack.c.l.b16 %v4854
    %v4903 = vunpack.c.l.b16 %v4855
    %v4904 = vunpack.c.l.b16 %v4856
    %v4905 = vunpack.c.l.b16 %v4857
    %v4906 = vunpack.c.l.b16 %v4858
    %v4907 = vpack.c.b16 %v4892, %v4891
    %v4908 = vpack.c.b16 %v4894, %v4893
    %v4909 = vpack.c.b16 %v4896, %v4895
    %v4910 = vpack.c.b16 %v4898, %v4897
    %v4911 = vpack.c.b16 %v4900, %v4899
    %v4912 = vpack.c.b16 %v4902, %v4901
    %v4913 = vpack.c.b16 %v4904, %v4903
    %v4914 = vpack.c.b16 %v4906, %v4905
    %4923 = vmatprep.subr.bf16.mxu0 0
    %4924 = vmatpush1.bf16.msra.mxu0 %v4907
    %4925 = vmatprep.subr.bf16.mxu0 0
    %4926 = vmatpush1.bf16.msra.mxu0 %v4908
    %4927 = vmatprep.subr.bf16.mxu0 0
    %4928 = vmatpush1.bf16.msra.mxu0 %v4909
    %4929 = vmatprep.subr.bf16.mxu0 0
    %4930 = vmatpush1.bf16.msra.mxu0 %v4910
    %4931 = vmatprep.subr.bf16.mxu0 0
    %4932 = vmatpush1.bf16.msra.mxu0 %v4911
    %4933 = vmatprep.subr.bf16.mxu0 0
    %4934 = vmatpush1.bf16.msra.mxu0 %v4912
    %4935 = vmatprep.subr.bf16.mxu0 0
    %4936 = vmatpush1.bf16.msra.mxu0 %v4913
    %4937 = vmatprep.subr.bf16.mxu0 0
    %4938 = vmatpush1.bf16.msra.mxu0 %v4914
    %4939 = vmatprep.subr.bf16.mxu0 0
    %4940 = vmatpush1.bf16.msra.mxu0 0
    %4941 = vmatprep.subr.bf16.mxu0 0
    %4942 = vmatpush1.bf16.msra.mxu0 0
    %4943 = vmatprep.subr.bf16.mxu0 0
    %4944 = vmatpush1.bf16.msra.mxu0 0
    %4945 = vmatprep.subr.bf16.mxu0 0
    %4946 = vmatpush1.bf16.msra.mxu0 0
    %4947 = vmatprep.subr.bf16.mxu0 0
    %4948 = vmatpush1.bf16.msra.mxu0 0
    %4949 = vmatprep.subr.bf16.mxu0 0
    %4950 = vmatpush1.bf16.msra.mxu0 0
    %4951 = vmatprep.subr.bf16.mxu0 0
    %4952 = vmatpush1.bf16.msra.mxu0 0
    %4953 = vmatprep.subr.bf16.mxu0 0
    %4954 = vmatpush1.bf16.msra.mxu0 0
    %4955 = vmatprep.mubr.bf16.mxu0 0
    %4956 = vmatmul.mubr.bf16.gmra.mrb[0].mxu0 %v4873
    %v4957 = vpop.f32.mrb[0].mxu0
    %v4958 = vadd.f32 %v4864, %v4957
    %v4959 = vpop.f32.mrb[0].mxu0
    %v4960 = vpop.f32.mrb[0].mxu0
    %v4961 = vpop.f32.mrb[0].mxu0
    %4962 = vdwg.mxu0
    %v4963 = vtanh.pop %v4958
    %v4964 = vpack.c.bf16 %v4963, %v4963
    %v4965 = vld [vmem:[#allocation29] sm:$0xf]
    %v4966 = vld [vmem:[#allocation29 + $0x4] sm:$0xf]
    %v4967 = vld [vmem:[#allocation29 + $0x8] sm:$0xf]
    %v4968 = vld [vmem:[#allocation29 + $0xc] sm:$0xf]
    %v4969 = vld [vmem:[#allocation29 + $0x10] sm:$0xf]
    %v4970 = vld [vmem:[#allocation29 + $0x14] sm:$0xf]
    %v4971 = vld [vmem:[#allocation29 + $0x18] sm:$0xf]
    %v4972 = vld [vmem:[#allocation29 + $0x1c] sm:$0xf]
    %v4973 = vld [vmem:[#allocation29 + $0x20] sm:$0xf]
    %v4974 = vld [vmem:[#allocation29 + $0x24] sm:$0xf]
    %v4975 = vld [vmem:[#allocation29 + $0x28] sm:$0xf]
    %v4976 = vld [vmem:[#allocation29 + $0x2c] sm:$0xf]
    %v4977 = vld [vmem:[#allocation29 + $0x30] sm:$0xf]
    %v4978 = vld [vmem:[#allocation29 + $0x34] sm:$0xf]
    %v4979 = vld [vmem:[#allocation29 + $0x38] sm:$0xf]
    %v4980 = vld [vmem:[#allocation29 + $0x3c] sm:$0xf]
    %v4981 = vld [vmem:[%s21] sm:$0x1]
    %v4983 = vlaneseq
    %v4984 = vshrl.u32 %v4983, 7
    %v4985 = vsub.s32 0, %v4984
    %v4986 = vrot.slane %v4981, %v4985
    %v5004 = vunpack.c.l.b16 %v4965
    %v5005 = vunpack.c.l.b16 %v4966
    %v5006 = vunpack.c.l.b16 %v4967
    %v5007 = vunpack.c.l.b16 %v4968
    %v5008 = vunpack.c.l.b16 %v4969
    %v5009 = vunpack.c.l.b16 %v4970
    %v5010 = vunpack.c.l.b16 %v4971
    %v5011 = vunpack.c.l.b16 %v4972
    %v5012 = vunpack.c.l.b16 %v4973
    %v5013 = vunpack.c.l.b16 %v4974
    %v5014 = vunpack.c.l.b16 %v4975
    %v5015 = vunpack.c.l.b16 %v4976
    %v5016 = vunpack.c.l.b16 %v4977
    %v5017 = vunpack.c.l.b16 %v4978
    %v5018 = vunpack.c.l.b16 %v4979
    %v5019 = vunpack.c.l.b16 %v4980
    %v5020 = vpack.c.b16 %v5005, %v5004
    %v5021 = vpack.c.b16 %v5007, %v5006
    %v5022 = vpack.c.b16 %v5009, %v5008
    %v5023 = vpack.c.b16 %v5011, %v5010
    %v5024 = vpack.c.b16 %v5013, %v5012
    %v5025 = vpack.c.b16 %v5015, %v5014
    %v5026 = vpack.c.b16 %v5017, %v5016
    %v5027 = vpack.c.b16 %v5019, %v5018
    %5036 = vmatprep.subr.bf16.mxu0 0
    %5037 = vmatpush1.bf16.msra.mxu0 %v5020
    %5038 = vmatprep.subr.bf16.mxu0 0
    %5039 = vmatpush1.bf16.msra.mxu0 %v5021
    %5040 = vmatprep.subr.bf16.mxu0 0
    %5041 = vmatpush1.bf16.msra.mxu0 %v5022
    %5042 = vmatprep.subr.bf16.mxu0 0
    %5043 = vmatpush1.bf16.msra.mxu0 %v5023
    %5044 = vmatprep.subr.bf16.mxu0 0
    %5045 = vmatpush1.bf16.msra.mxu0 %v5024
    %5046 = vmatprep.subr.bf16.mxu0 0
    %5047 = vmatpush1.bf16.msra.mxu0 %v5025
    %5048 = vmatprep.subr.bf16.mxu0 0
    %5049 = vmatpush1.bf16.msra.mxu0 %v5026
    %5050 = vmatprep.subr.bf16.mxu0 0
    %5051 = vmatpush1.bf16.msra.mxu0 %v5027
    %5052 = vmatprep.subr.bf16.mxu0 0
    %5053 = vmatpush1.bf16.msra.mxu0 0
    %5054 = vmatprep.subr.bf16.mxu0 0
    %5055 = vmatpush1.bf16.msra.mxu0 0
    %5056 = vmatprep.subr.bf16.mxu0 0
    %5057 = vmatpush1.bf16.msra.mxu0 0
    %5058 = vmatprep.subr.bf16.mxu0 0
    %5059 = vmatpush1.bf16.msra.mxu0 0
    %5060 = vmatprep.subr.bf16.mxu0 0
    %5061 = vmatpush1.bf16.msra.mxu0 0
    %5062 = vmatprep.subr.bf16.mxu0 0
    %5063 = vmatpush1.bf16.msra.mxu0 0
    %5064 = vmatprep.subr.bf16.mxu0 0
    %5065 = vmatpush1.bf16.msra.mxu0 0
    %5066 = vmatprep.subr.bf16.mxu0 0
    %5067 = vmatpush1.bf16.msra.mxu0 0
    %5068 = vmatprep.mubr.bf16.mxu0 0
    %5069 = vmatmul.mubr.bf16.gmra.mrb[0].mxu0 %v4964
    %v5070 = vpop.f32.mrb[0].mxu0
    %v5071 = vadd.f32 %v4986, %v5070
    %v5072 = vpop.f32.mrb[0].mxu0
    %v5073 = vpop.f32.mrb[0].mxu0
    %v5074 = vpop.f32.mrb[0].mxu0
    %5075 = vdwg.mxu0
    %v5076 = vmax.f32 %v5071, 0.0
    %5077 = vst [vmem:[#allocation31] sm:$0x3] %v5076
    // Predicated region
    $region162: #{tpu_custom_call.1} parent=1 // pred_check
      _
    $region163: #{tpu_custom_call.1} parent=1 // pred_check_branch
      %5079 = sbr.rel (0) target = $region165
    $region164: #{tpu_custom_call.1} parent=1 // pred_region
      %s5081 = ssub.s32 32, 32
      %5082 = vsyncadd [#allocation4], %s5081
      %s5084 = sshll.u32 [#allocation31], 4
      %s5085 = int_to_ptr.vmem [resolvable:$true] %s5084
      %5087 = dma.vmem_to_hbm [thread:$0]  %s5085, 32, %s22, [#allocation4]
    $region165: #{tpu_custom_call.1} parent=1 // pred_fallthru
      _
    // Predicated region
    $region166: #{tpu_custom_call.1} parent=1 // pred_check
      _
    $region167: #{tpu_custom_call.1} parent=1 // pred_check_branch
      %5089 = sbr.rel (0) target = $region169
    $region168: #{tpu_custom_call.1} parent=1 // pred_region
      %5090 = dma.done [#allocation4], 32
    $region169: #{tpu_custom_call.1} parent=1 // pred_fallthru
      _
    %5091 = vsyncpa [#allocation3], 1
    %5092 = vsyncpa [#allocation6], 1
    %5093 = vsyncpa [#allocation9], 1
    %5094 = vsyncpa [#allocation12], 1
    %5095 = vsyncpa [#allocation15], 1
    %5096 = vsyncpa [#allocation18], 1
    %5097 = vsyncpa [#allocation21], 1
    %5098 = vsyncpa [#allocation24], 1
    %5099 = vsyncpa [#allocation27], 1
    %5100 = vsyncpa [#allocation30], 1
    %5101 = vsyncpa [#allocation4], 1

</llo_original>
